<compile_context>
chip_gen: v6e
topology: v6e:2x2x1
jax: 0.10.0
libtpu: 0.0.40
codegen_flags: <defaults>
</compile_context>

<pallas_src>
import functools

import jax
import jax.numpy as jnp
from jax.experimental import pallas as pl
from jax.experimental.pallas import tpu as pltpu

COL_TILE = 512            # final-layer column tile: >=256 fills the v6e/v7x MXU lane dim
FUSED_CHW_PAD_MAX = 2048  # w5 bf16 <= 4 MiB -> keep it resident and skip the grid
_EPS = 0.8                # nn.BatchNorm1d(out_feat, 0.8): second positional arg is eps


def _round_up(x, m):
    return (x + m - 1) // m * m


def _leaky_relu(x, slope=0.2):
    return jnp.where(x > 0, x, slope * x)


def _batchnorm_train(x, gamma, beta, eps):
    # PyTorch BatchNorm1d training mode: biased batch variance, eps inside rsqrt.
    # Two-pass form (mean, then E[(x-mean)^2]) avoids E[x^2]-mean^2 cancellation.
    mean = jnp.mean(x, axis=0, keepdims=True)
    d = x - mean
    var = jnp.mean(d * d, axis=0, keepdims=True)
    return d * jax.lax.rsqrt(var + eps) * gamma + beta


def _mxu_dot(a, w_bf16):
    # bf16 operands on the MXU, f32 accumulation.
    return jnp.dot(a.astype(jnp.bfloat16), w_bf16, preferred_element_type=jnp.float32)


def _hidden_stack(z, w1, b1, w2, b2, g2, be2, w3, b3, g3, be3, w4, b4, g4, be4):
    h1 = _leaky_relu(_mxu_dot(z, w1) + b1)
    h2 = _leaky_relu(_batchnorm_train(_mxu_dot(h1, w2) + b2, g2, be2, _EPS))
    h3 = _leaky_relu(_batchnorm_train(_mxu_dot(h2, w3) + b3, g3, be3, _EPS))
    h4 = _leaky_relu(_batchnorm_train(_mxu_dot(h3, w4) + b4, g4, be4, _EPS))
    return h4


# ---------------- Small-CHW path: one fused, grid-less kernel ----------------
def generator_fused_kernel(
    z_ref,
    w1_ref, b1_ref,
    w2_ref, b2_ref, g2_ref, be2_ref,
    w3_ref, b3_ref, g3_ref, be3_ref,
    w4_ref, b4_ref, g4_ref, be4_ref,
    w5_ref, b5_ref,
    out_ref,
):
    h4 = _hidden_stack(
        z_ref[...],
        w1_ref[...], b1_ref[...],
        w2_ref[...], b2_ref[...], g2_ref[...], be2_ref[...],
        w3_ref[...], b3_ref[...], g3_ref[...], be3_ref[...],
        w4_ref[...], b4_ref[...], g4_ref[...], be4_ref[...],
    )
    out = jnp.dot(h4.astype(jnp.bfloat16), w5_ref[...],
                  preferred_element_type=jnp.float32)
    out_ref[...] = jnp.tanh(out + b5_ref[...])


# ----------- Large-CHW path: hidden stack kernel + streamed final layer ------
def hidden_stack_kernel(
    z_ref,
    w1_ref, b1_ref,
    w2_ref, b2_ref, g2_ref, be2_ref,
    w3_ref, b3_ref, g3_ref, be3_ref,
    w4_ref, b4_ref, g4_ref, be4_ref,
    h4_ref,
):
    h4 = _hidden_stack(
        z_ref[...],
        w1_ref[...], b1_ref[...],
        w2_ref[...], b2_ref[...], g2_ref[...], be2_ref[...],
        w3_ref[...], b3_ref[...], g3_ref[...], be3_ref[...],
        w4_ref[...], b4_ref[...], g4_ref[...], be4_ref[...],
    )
    h4_ref[...] = h4.astype(jnp.bfloat16)


def final_layer_kernel(h4_ref, w5_ref, b5_ref, out_ref):
    # Column-tiled Linear(1024, CHW_pad) + Tanh.  No cross-step state, so the
    # column axis is "parallel" (shards across v7x's two TensorCores).
    out = jnp.dot(h4_ref[...], w5_ref[...], preferred_element_type=jnp.float32)
    out_ref[...] = jnp.tanh(out + b5_ref[...])


def make_generator_params(key, latent_dim, img_shape):
    """Deterministic init (PyTorch-Linear-like uniform, BN gamma=1, beta=0)."""
    c, h, w = img_shape
    dims = [latent_dim, 128, 256, 512, 1024, c * h * w]
    params = {}
    for i in range(5):
        key, kw, kb = jax.random.split(key, 3)
        bound = 1.0 / jnp.sqrt(float(dims[i]))
        params[f"w{i + 1}"] = jax.random.uniform(
            kw, (dims[i], dims[i + 1]), jnp.float32, -bound, bound)
        params[f"b{i + 1}"] = jax.random.uniform(
            kb, (1, dims[i + 1]), jnp.float32, -bound, bound)
    for i, n in zip((2, 3, 4), (256, 512, 1024)):
        params[f"g{i}"] = jnp.ones((1, n), jnp.float32)
        params[f"be{i}"] = jnp.zeros((1, n), jnp.float32)
    return params


@functools.partial(jax.jit, static_argnames=("img_shape", "force_tiled", "col_tile"))
def generator_forward(z, params, img_shape, force_tiled=False, col_tile=COL_TILE):
    c, h, w = img_shape
    chw = c * h * w
    batch = z.shape[0]

    # bf16 weights: halves weight HBM traffic and feeds the MXU natively.
    w1 = params["w1"].astype(jnp.bfloat16)
    w2 = params["w2"].astype(jnp.bfloat16)
    w3 = params["w3"].astype(jnp.bfloat16)
    w4 = params["w4"].astype(jnp.bfloat16)

    # Whole-operand, single-buffer VMEM residency (no useless double-buffering).
    resident = pl.BlockSpec(memory_space=pltpu.MemorySpace.VMEM)

    hidden_inputs = [
        z,
        w1, params["b1"],
        w2, params["b2"], params["g2"], params["be2"],
        w3, params["b3"], params["g3"], params["be3"],
        w4, params["b4"], params["g4"], params["be4"],
    ]

    cparams = pltpu.CompilerParams(vmem_limit_bytes=16 << 20)
    use_fused = (not force_tiled) and (_round_up(chw, 128) <= FUSED_CHW_PAD_MAX)

    if use_fused:
        # Small output: no grid at all; w5/b5 resident; one lane-dense store of
        # the full (batch, chw_pad) block.
        chw_pad = _round_up(chw, 128)
        w5 = jnp.pad(params["w5"].astype(jnp.bfloat16), ((0, 0), (0, chw_pad - chw)))
        b5 = jnp.pad(params["b5"], ((0, 0), (0, chw_pad - chw)))
        out_flat = pl.pallas_call(
            generator_fused_kernel,
            out_shape=jax.ShapeDtypeStruct((batch, chw_pad), jnp.float32),
            in_specs=[resident] * 17,
            out_specs=resident,
            compiler_params=cparams,
        )(*hidden_inputs, w5, b5)
    else:
        # Large output: w5 must NOT be resident (v7x has only 64 MiB VMEM).
        # Stage 1: layers 1-4 (tiny, ~20M MACs), grid-less.
        h4 = pl.pallas_call(
            hidden_stack_kernel,
            out_shape=jax.ShapeDtypeStruct((batch, 1024), jnp.bfloat16),
            in_specs=[resident] * 15,
            out_specs=resident,
            compiler_params=cparams,
        )(*hidden_inputs)

        # Stage 2: stream w5 in wide column tiles, 3-deep pipeline, parallel axis.
        chw_pad = _round_up(chw, col_tile)
        col_tiles = chw_pad // col_tile
        w5 = jnp.pad(params["w5"].astype(jnp.bfloat16), ((0, 0), (0, chw_pad - chw)))
        b5 = jnp.pad(params["b5"], ((0, 0), (0, chw_pad - chw)))
        out_flat = pl.pallas_call(
            final_layer_kernel,
            out_shape=jax.ShapeDtypeStruct((batch, chw_pad), jnp.float32),
            grid=(col_tiles,),
            in_specs=[
                resident,  # h4 (bf16), reused by every column tile
                pl.BlockSpec((1024, col_tile), lambda j: (0, j),
                             pipeline_mode=pl.Buffered(3)),
                pl.BlockSpec((1, col_tile), lambda j: (0, j),
                             pipeline_mode=pl.Buffered(3)),
            ],
            out_specs=pl.BlockSpec((batch, col_tile), lambda j: (0, j)),
            compiler_params=pltpu.CompilerParams(
                dimension_semantics=("parallel",),
                vmem_limit_bytes=16 << 20,
            ),
        )(h4, w5, b5)

    return out_flat[:, :chw].reshape(batch, c, h, w)


def generator_reference(z, params, img_shape):
    """Pure-JAX f32 reference with PyTorch training-mode BN semantics."""
    eps = _EPS
    c, h, w = img_shape

    def bn(x, g, b):
        m = jnp.mean(x, axis=0, keepdims=True)
        v = jnp.mean((x - m) ** 2, axis=0, keepdims=True)
        return (x - m) / jnp.sqrt(v + eps) * g + b

    lrelu = lambda x: jnp.where(x > 0, x, 0.2 * x)
    h1 = lrelu(z @ params["w1"] + params["b1"])
    h2 = lrelu(bn(h1 @ params["w2"] + params["b2"], params["g2"], params["be2"]))
    h3 = lrelu(bn(h2 @ params["w3"] + params["b3"], params["g3"], params["be3"]))
    h4 = lrelu(bn(h3 @ params["w4"] + params["b4"], params["g4"], params["be4"]))
    out = jnp.tanh(h4 @ params["w5"] + params["b5"])
    return out.reshape(z.shape[0], c, h, w)


if __name__ == "__main__":
    key = jax.random.PRNGKey(0)
    latent_dim = 32
    batch = 32  # BatchNorm training mode needs batch >= 2

    # --- Case 1: small output (CHW=144 -> chw_pad=256): fused grid-less path.
    img_shape_small = (1, 12, 12)
    key, kz, kp = jax.random.split(key, 3)
    z = jax.random.normal(kz, (batch, latent_dim), jnp.float32)
    params_small = make_generator_params(kp, latent_dim, img_shape_small)

    img = generator_forward(z, params_small, img_shape_small)
    img = jax.block_until_ready(img)
    ref = generator_reference(z, params_small, img_shape_small)
    assert img.shape == (batch,) + img_shape_small, img.shape
    # Loose tolerance: kernel matmuls use bf16 MXU operands (f32 accumulation),
    # reference is pure f32.
    assert jnp.allclose(img, ref, atol=5e-2, rtol=5e-2), "fused path mismatch"

    # --- Case 2: exercise the streamed/tiled path (CHW=576 -> 2 x 512 tiles).
    img_shape_big = (1, 24, 24)
    key, kz2, kp2 = jax.random.split(key, 3)
    z2 = jax.random.normal(kz2, (batch, latent_dim), jnp.float32)
    params_big = make_generator_params(kp2, latent_dim, img_shape_big)

    img2 = generator_forward(z2, params_big, img_shape_big, force_tiled=True)
    img2 = jax.block_until_ready(img2)
    ref2 = generator_reference(z2, params_big, img_shape_big)
    assert img2.shape == (batch,) + img_shape_big, img2.shape
    assert jnp.allclose(img2, ref2, atol=5e-2, rtol=5e-2), "tiled path mismatch"

    print("KERNEL_OK")
</pallas_src>

<mosaic_0001>
module attributes {stable_mosaic.version = 11 : i64} {
  func.func @generator_fused_kernel(%arg0: memref<32x32xf32, #tpu.memory_space<vmem>>, %arg1: memref<32x128xbf16, #tpu.memory_space<vmem>>, %arg2: memref<1x128xf32, #tpu.memory_space<vmem>>, %arg3: memref<128x256xbf16, #tpu.memory_space<vmem>>, %arg4: memref<1x256xf32, #tpu.memory_space<vmem>>, %arg5: memref<1x256xf32, #tpu.memory_space<vmem>>, %arg6: memref<1x256xf32, #tpu.memory_space<vmem>>, %arg7: memref<256x512xbf16, #tpu.memory_space<vmem>>, %arg8: memref<1x512xf32, #tpu.memory_space<vmem>>, %arg9: memref<1x512xf32, #tpu.memory_space<vmem>>, %arg10: memref<1x512xf32, #tpu.memory_space<vmem>>, %arg11: memref<512x1024xbf16, #tpu.memory_space<vmem>>, %arg12: memref<1x1024xf32, #tpu.memory_space<vmem>>, %arg13: memref<1x1024xf32, #tpu.memory_space<vmem>>, %arg14: memref<1x1024xf32, #tpu.memory_space<vmem>>, %arg15: memref<1024x256xbf16, #tpu.memory_space<vmem>>, %arg16: memref<1x256xf32, #tpu.memory_space<vmem>>, %arg17: memref<32x256xf32, #tpu.memory_space<vmem>>) attributes {dimension_semantics = [], scalar_prefetch = 0 : i64, scratch_operands = 0 : i64, tpu.core_type = #tpu.core_type<tc>} {
    %c0 = arith.constant 0 : index
    %c0_0 = arith.constant 0 : index
    %0 = vector.load %arg0[%c0, %c0_0] : memref<32x32xf32, #tpu.memory_space<vmem>>, vector<32x32xf32>
    %c0_1 = arith.constant 0 : index
    %c0_2 = arith.constant 0 : index
    %1 = vector.load %arg1[%c0_1, %c0_2] : memref<32x128xbf16, #tpu.memory_space<vmem>>, vector<32x128xbf16>
    %c0_3 = arith.constant 0 : index
    %c0_4 = arith.constant 0 : index
    %2 = vector.load %arg2[%c0_3, %c0_4] : memref<1x128xf32, #tpu.memory_space<vmem>>, vector<1x128xf32>
    %c0_5 = arith.constant 0 : index
    %c0_6 = arith.constant 0 : index
    %3 = vector.load %arg3[%c0_5, %c0_6] : memref<128x256xbf16, #tpu.memory_space<vmem>>, vector<128x256xbf16>
    %c0_7 = arith.constant 0 : index
    %c0_8 = arith.constant 0 : index
    %4 = vector.load %arg4[%c0_7, %c0_8] : memref<1x256xf32, #tpu.memory_space<vmem>>, vector<1x256xf32>
    %c0_9 = arith.constant 0 : index
    %c0_10 = arith.constant 0 : index
    %5 = vector.load %arg5[%c0_9, %c0_10] : memref<1x256xf32, #tpu.memory_space<vmem>>, vector<1x256xf32>
    %c0_11 = arith.constant 0 : index
    %c0_12 = arith.constant 0 : index
    %6 = vector.load %arg6[%c0_11, %c0_12] : memref<1x256xf32, #tpu.memory_space<vmem>>, vector<1x256xf32>
    %c0_13 = arith.constant 0 : index
    %c0_14 = arith.constant 0 : index
    %7 = vector.load %arg7[%c0_13, %c0_14] : memref<256x512xbf16, #tpu.memory_space<vmem>>, vector<256x512xbf16>
    %c0_15 = arith.constant 0 : index
    %c0_16 = arith.constant 0 : index
    %8 = vector.load %arg8[%c0_15, %c0_16] : memref<1x512xf32, #tpu.memory_space<vmem>>, vector<1x512xf32>
    %c0_17 = arith.constant 0 : index
    %c0_18 = arith.constant 0 : index
    %9 = vector.load %arg9[%c0_17, %c0_18] : memref<1x512xf32, #tpu.memory_space<vmem>>, vector<1x512xf32>
    %c0_19 = arith.constant 0 : index
    %c0_20 = arith.constant 0 : index
    %10 = vector.load %arg10[%c0_19, %c0_20] : memref<1x512xf32, #tpu.memory_space<vmem>>, vector<1x512xf32>
    %c0_21 = arith.constant 0 : index
    %c0_22 = arith.constant 0 : index
    %11 = vector.load %arg11[%c0_21, %c0_22] : memref<512x1024xbf16, #tpu.memory_space<vmem>>, vector<512x1024xbf16>
    %c0_23 = arith.constant 0 : index
    %c0_24 = arith.constant 0 : index
    %12 = vector.load %arg12[%c0_23, %c0_24] : memref<1x1024xf32, #tpu.memory_space<vmem>>, vector<1x1024xf32>
    %c0_25 = arith.constant 0 : index
    %c0_26 = arith.constant 0 : index
    %13 = vector.load %arg13[%c0_25, %c0_26] : memref<1x1024xf32, #tpu.memory_space<vmem>>, vector<1x1024xf32>
    %c0_27 = arith.constant 0 : index
    %c0_28 = arith.constant 0 : index
    %14 = vector.load %arg14[%c0_27, %c0_28] : memref<1x1024xf32, #tpu.memory_space<vmem>>, vector<1x1024xf32>
    %15 = arith.truncf %0 : vector<32x32xf32> to vector<32x32xbf16>
    %cst = arith.constant dense<0.000000e+00> : vector<32x128xf32>
    %16 = tpu.matmul %15, %1, %cst {dimension_numbers = #tpu.dot_dimension_numbers<[1], [0], [0], [1], [0, 0, 1, 1], [], []>} : vector<32x32xbf16>, vector<32x128xbf16>, vector<32x128xf32> -> vector<32x128xf32>
    %17 = vector.broadcast %2 : vector<1x128xf32> to vector<32x128xf32>
    %18 = arith.addf %16, %17 : vector<32x128xf32>
    %cst_29 = arith.constant 0.000000e+00 : f32
    %19 = vector.broadcast %cst_29 : f32 to vector<32x128xf32>
    %20 = arith.cmpf ogt, %18, %19 : vector<32x128xf32>
    %cst_30 = arith.constant 2.000000e-01 : f32
    %21 = vector.broadcast %cst_30 : f32 to vector<32x128xf32>
    %22 = arith.mulf %21, %18 : vector<32x128xf32>
    %23 = arith.select %20, %18, %22 : vector<32x128xi1>, vector<32x128xf32>
    %24 = arith.truncf %23 : vector<32x128xf32> to vector<32x128xbf16>
    %cst_31 = arith.constant dense<0.000000e+00> : vector<32x256xf32>
    %25 = tpu.matmul %24, %3, %cst_31 {dimension_numbers = #tpu.dot_dimension_numbers<[1], [0], [0], [1], [0, 0, 1, 1], [], []>} : vector<32x128xbf16>, vector<128x256xbf16>, vector<32x256xf32> -> vector<32x256xf32>
    %26 = vector.broadcast %4 : vector<1x256xf32> to vector<32x256xf32>
    %27 = arith.addf %25, %26 : vector<32x256xf32>
    %cst_32 = arith.constant dense<0.000000e+00> : vector<256xf32>
    %28 = vector.multi_reduction <add>, %27, %cst_32 [0] : vector<32x256xf32> to vector<256xf32>
    %29 = vector.shape_cast %28 : vector<256xf32> to vector<1x256xf32>
    %cst_33 = arith.constant 3.200000e+01 : f32
    %30 = vector.broadcast %cst_33 : f32 to vector<1x256xf32>
    %31 = arith.divf %29, %30 : vector<1x256xf32>
    %32 = vector.broadcast %31 : vector<1x256xf32> to vector<32x256xf32>
    %33 = arith.subf %27, %32 : vector<32x256xf32>
    %34 = arith.mulf %33, %33 : vector<32x256xf32>
    %cst_34 = arith.constant dense<0.000000e+00> : vector<256xf32>
    %35 = vector.multi_reduction <add>, %34, %cst_34 [0] : vector<32x256xf32> to vector<256xf32>
    %36 = vector.shape_cast %35 : vector<256xf32> to vector<1x256xf32>
    %cst_35 = arith.constant 3.200000e+01 : f32
    %37 = vector.broadcast %cst_35 : f32 to vector<1x256xf32>
    %38 = arith.divf %36, %37 : vector<1x256xf32>
    %cst_36 = arith.constant 8.000000e-01 : f32
    %39 = vector.broadcast %cst_36 : f32 to vector<1x256xf32>
    %40 = arith.addf %38, %39 : vector<1x256xf32>
    %41 = math.rsqrt %40 : vector<1x256xf32>
    %42 = vector.broadcast %41 : vector<1x256xf32> to vector<32x256xf32>
    %43 = arith.mulf %33, %42 : vector<32x256xf32>
    %44 = vector.broadcast %5 : vector<1x256xf32> to vector<32x256xf32>
    %45 = arith.mulf %43, %44 : vector<32x256xf32>
    %46 = vector.broadcast %6 : vector<1x256xf32> to vector<32x256xf32>
    %47 = arith.addf %45, %46 : vector<32x256xf32>
    %cst_37 = arith.constant 0.000000e+00 : f32
    %48 = vector.broadcast %cst_37 : f32 to vector<32x256xf32>
    %49 = arith.cmpf ogt, %47, %48 : vector<32x256xf32>
    %cst_38 = arith.constant 2.000000e-01 : f32
    %50 = vector.broadcast %cst_38 : f32 to vector<32x256xf32>
    %51 = arith.mulf %50, %47 : vector<32x256xf32>
    %52 = arith.select %49, %47, %51 : vector<32x256xi1>, vector<32x256xf32>
    %53 = arith.truncf %52 : vector<32x256xf32> to vector<32x256xbf16>
    %cst_39 = arith.constant dense<0.000000e+00> : vector<32x512xf32>
    %54 = tpu.matmul %53, %7, %cst_39 {dimension_numbers = #tpu.dot_dimension_numbers<[1], [0], [0], [1], [0, 0, 1, 1], [], []>} : vector<32x256xbf16>, vector<256x512xbf16>, vector<32x512xf32> -> vector<32x512xf32>
    %55 = vector.broadcast %8 : vector<1x512xf32> to vector<32x512xf32>
    %56 = arith.addf %54, %55 : vector<32x512xf32>
    %cst_40 = arith.constant dense<0.000000e+00> : vector<512xf32>
    %57 = vector.multi_reduction <add>, %56, %cst_40 [0] : vector<32x512xf32> to vector<512xf32>
    %58 = vector.shape_cast %57 : vector<512xf32> to vector<1x512xf32>
    %cst_41 = arith.constant 3.200000e+01 : f32
    %59 = vector.broadcast %cst_41 : f32 to vector<1x512xf32>
    %60 = arith.divf %58, %59 : vector<1x512xf32>
    %61 = vector.broadcast %60 : vector<1x512xf32> to vector<32x512xf32>
    %62 = arith.subf %56, %61 : vector<32x512xf32>
    %63 = arith.mulf %62, %62 : vector<32x512xf32>
    %cst_42 = arith.constant dense<0.000000e+00> : vector<512xf32>
    %64 = vector.multi_reduction <add>, %63, %cst_42 [0] : vector<32x512xf32> to vector<512xf32>
    %65 = vector.shape_cast %64 : vector<512xf32> to vector<1x512xf32>
    %cst_43 = arith.constant 3.200000e+01 : f32
    %66 = vector.broadcast %cst_43 : f32 to vector<1x512xf32>
    %67 = arith.divf %65, %66 : vector<1x512xf32>
    %cst_44 = arith.constant 8.000000e-01 : f32
    %68 = vector.broadcast %cst_44 : f32 to vector<1x512xf32>
    %69 = arith.addf %67, %68 : vector<1x512xf32>
    %70 = math.rsqrt %69 : vector<1x512xf32>
    %71 = vector.broadcast %70 : vector<1x512xf32> to vector<32x512xf32>
    %72 = arith.mulf %62, %71 : vector<32x512xf32>
    %73 = vector.broadcast %9 : vector<1x512xf32> to vector<32x512xf32>
    %74 = arith.mulf %72, %73 : vector<32x512xf32>
    %75 = vector.broadcast %10 : vector<1x512xf32> to vector<32x512xf32>
    %76 = arith.addf %74, %75 : vector<32x512xf32>
    %cst_45 = arith.constant 0.000000e+00 : f32
    %77 = vector.broadcast %cst_45 : f32 to vector<32x512xf32>
    %78 = arith.cmpf ogt, %76, %77 : vector<32x512xf32>
    %cst_46 = arith.constant 2.000000e-01 : f32
    %79 = vector.broadcast %cst_46 : f32 to vector<32x512xf32>
    %80 = arith.mulf %79, %76 : vector<32x512xf32>
    %81 = arith.select %78, %76, %80 : vector<32x512xi1>, vector<32x512xf32>
    %82 = arith.truncf %81 : vector<32x512xf32> to vector<32x512xbf16>
    %cst_47 = arith.constant dense<0.000000e+00> : vector<32x1024xf32>
    %83 = tpu.matmul %82, %11, %cst_47 {dimension_numbers = #tpu.dot_dimension_numbers<[1], [0], [0], [1], [0, 0, 1, 1], [], []>} : vector<32x512xbf16>, vector<512x1024xbf16>, vector<32x1024xf32> -> vector<32x1024xf32>
    %84 = vector.broadcast %12 : vector<1x1024xf32> to vector<32x1024xf32>
    %85 = arith.addf %83, %84 : vector<32x1024xf32>
    %cst_48 = arith.constant dense<0.000000e+00> : vector<1024xf32>
    %86 = vector.multi_reduction <add>, %85, %cst_48 [0] : vector<32x1024xf32> to vector<1024xf32>
    %87 = vector.shape_cast %86 : vector<1024xf32> to vector<1x1024xf32>
    %cst_49 = arith.constant 3.200000e+01 : f32
    %88 = vector.broadcast %cst_49 : f32 to vector<1x1024xf32>
    %89 = arith.divf %87, %88 : vector<1x1024xf32>
    %90 = vector.broadcast %89 : vector<1x1024xf32> to vector<32x1024xf32>
    %91 = arith.subf %85, %90 : vector<32x1024xf32>
    %92 = arith.mulf %91, %91 : vector<32x1024xf32>
    %cst_50 = arith.constant dense<0.000000e+00> : vector<1024xf32>
    %93 = vector.multi_reduction <add>, %92, %cst_50 [0] : vector<32x1024xf32> to vector<1024xf32>
    %94 = vector.shape_cast %93 : vector<1024xf32> to vector<1x1024xf32>
    %cst_51 = arith.constant 3.200000e+01 : f32
    %95 = vector.broadcast %cst_51 : f32 to vector<1x1024xf32>
    %96 = arith.divf %94, %95 : vector<1x1024xf32>
    %cst_52 = arith.constant 8.000000e-01 : f32
    %97 = vector.broadcast %cst_52 : f32 to vector<1x1024xf32>
    %98 = arith.addf %96, %97 : vector<1x1024xf32>
    %99 = math.rsqrt %98 : vector<1x1024xf32>
    %100 = vector.broadcast %99 : vector<1x1024xf32> to vector<32x1024xf32>
    %101 = arith.mulf %91, %100 : vector<32x1024xf32>
    %102 = vector.broadcast %13 : vector<1x1024xf32> to vector<32x1024xf32>
    %103 = arith.mulf %101, %102 : vector<32x1024xf32>
    %104 = vector.broadcast %14 : vector<1x1024xf32> to vector<32x1024xf32>
    %105 = arith.addf %103, %104 : vector<32x1024xf32>
    %cst_53 = arith.constant 0.000000e+00 : f32
    %106 = vector.broadcast %cst_53 : f32 to vector<32x1024xf32>
    %107 = arith.cmpf ogt, %105, %106 : vector<32x1024xf32>
    %cst_54 = arith.constant 2.000000e-01 : f32
    %108 = vector.broadcast %cst_54 : f32 to vector<32x1024xf32>
    %109 = arith.mulf %108, %105 : vector<32x1024xf32>
    %110 = arith.select %107, %105, %109 : vector<32x1024xi1>, vector<32x1024xf32>
    %111 = arith.truncf %110 : vector<32x1024xf32> to vector<32x1024xbf16>
    %c0_55 = arith.constant 0 : index
    %c0_56 = arith.constant 0 : index
    %112 = vector.load %arg15[%c0_55, %c0_56] : memref<1024x256xbf16, #tpu.memory_space<vmem>>, vector<1024x256xbf16>
    %cst_57 = arith.constant dense<0.000000e+00> : vector<32x256xf32>
    %113 = tpu.matmul %111, %112, %cst_57 {dimension_numbers = #tpu.dot_dimension_numbers<[1], [0], [0], [1], [0, 0, 1, 1], [], []>} : vector<32x1024xbf16>, vector<1024x256xbf16>, vector<32x256xf32> -> vector<32x256xf32>
    %c0_58 = arith.constant 0 : index
    %c0_59 = arith.constant 0 : index
    %114 = vector.load %arg16[%c0_58, %c0_59] : memref<1x256xf32, #tpu.memory_space<vmem>>, vector<1x256xf32>
    %115 = vector.broadcast %114 : vector<1x256xf32> to vector<32x256xf32>
    %116 = arith.addf %113, %115 : vector<32x256xf32>
    %117 = math.tanh %116 : vector<32x256xf32>
    %c0_60 = arith.constant 0 : index
    %c0_61 = arith.constant 0 : index
    %118 = vector.load %arg17[%c0_60, %c0_61] : memref<32x256xf32, #tpu.memory_space<vmem>>, vector<32x256xf32>
    tpu.vector_store %arg17[%c0_60, %c0_61], %117 {strides = array<i32>} : memref<32x256xf32, #tpu.memory_space<vmem>>, vector<32x256xf32>,
    return
  }
}

</mosaic_0001>

<llo_original>
// kernel: generator_forward.1
$region0: #{generator_forward.1}
  #allocation0 [shape = 'u32[]', space=smem, size = 0x4, offset = 0x4, fixed_abs, tag = 'smem constant byte address 0x4 - core index']
  #allocation1 [shape = 'u32[144,128]{1,0:T(1,128)}', space=vmem, size = 0x12000, scoped, tag = 'internal scratch']
  %s0 = inlined_call_operand.vmem [shape: f32[32,32], index: 0, kind: input, shape index: {}]
  %s1 = inlined_call_operand.vmem [shape: bf16[32,128], index: 1, kind: input, shape index: {}]
  %s2 = inlined_call_operand.vmem [shape: f32[1,128], index: 2, kind: input, shape index: {}]
  %s3 = inlined_call_operand.vmem [shape: bf16[128,256], index: 3, kind: input, shape index: {}]
  %s4 = inlined_call_operand.vmem [shape: f32[1,256], index: 4, kind: input, shape index: {}]
  %s5 = inlined_call_operand.vmem [shape: f32[1,256], index: 5, kind: input, shape index: {}]
  %s6 = inlined_call_operand.vmem [shape: f32[1,256], index: 6, kind: input, shape index: {}]
  %s7 = inlined_call_operand.vmem [shape: bf16[256,512], index: 7, kind: input, shape index: {}]
  %s8 = inlined_call_operand.vmem [shape: f32[1,512], index: 8, kind: input, shape index: {}]
  %s9 = inlined_call_operand.vmem [shape: f32[1,512], index: 9, kind: input, shape index: {}]
  %s10 = inlined_call_operand.vmem [shape: f32[1,512], index: 10, kind: input, shape index: {}]
  %s11 = inlined_call_operand.vmem [shape: bf16[512,1024], index: 11, kind: input, shape index: {}]
  %s12 = inlined_call_operand.vmem [shape: f32[1,1024], index: 12, kind: input, shape index: {}]
  %s13 = inlined_call_operand.vmem [shape: f32[1,1024], index: 13, kind: input, shape index: {}]
  %s14 = inlined_call_operand.vmem [shape: f32[1,1024], index: 14, kind: input, shape index: {}]
  %s15 = inlined_call_operand.vmem [shape: bf16[1024,256], index: 15, kind: input, shape index: {}]
  %s16 = inlined_call_operand.vmem [shape: f32[1,256], index: 16, kind: input, shape index: {}]
  %s17 = inlined_call_operand.vmem [shape: f32[32,256], index: 17, kind: output, shape index: {}]
  %s18 = sld [smem:[#allocation0]]
  $region78: #{generator_forward.1} parent=0
    _
  %s20 = ssub.s32 1, %s18
  %s21 = scalar_select 0, %s20, %s18
  // Predicated region
  $region2: #{generator_forward.1} parent=0 // pred_check
    _
  $region3: #{generator_forward.1} parent=0 // pred_check_branch
    %23 = sbr.rel (0) target = $region5
  $region4: #{generator_forward.1} parent=0 // pred_region
    _
  $region5: #{generator_forward.1} parent=0 // pred_fallthru
    _
  // Predicated region
  $region6: #{generator_forward.1} parent=0 // pred_check
    _
  $region7: #{generator_forward.1} parent=0 // pred_check_branch
    %25 = sbr.rel (0) target = $region9
  $region8: #{generator_forward.1} parent=0 // pred_region
    _
  $region9: #{generator_forward.1} parent=0 // pred_fallthru
    _
  // Predicated region
  $region10: #{generator_forward.1} parent=0 // pred_check
    _
  $region11: #{generator_forward.1} parent=0 // pred_check_branch
    %27 = sbr.rel (0) target = $region13
  $region12: #{generator_forward.1} parent=0 // pred_region
    _
  $region13: #{generator_forward.1} parent=0 // pred_fallthru
    _
  // Predicated region
  $region14: #{generator_forward.1} parent=0 // pred_check
    _
  $region15: #{generator_forward.1} parent=0 // pred_check_branch
    %29 = sbr.rel (0) target = $region17
  $region16: #{generator_forward.1} parent=0 // pred_region
    _
  $region17: #{generator_forward.1} parent=0 // pred_fallthru
    _
  // Predicated region
  $region18: #{generator_forward.1} parent=0 // pred_check
    _
  $region19: #{generator_forward.1} parent=0 // pred_check_branch
    %31 = sbr.rel (0) target = $region21
  $region20: #{generator_forward.1} parent=0 // pred_region
    _
  $region21: #{generator_forward.1} parent=0 // pred_fallthru
    _
  // Predicated region
  $region22: #{generator_forward.1} parent=0 // pred_check
    _
  $region23: #{generator_forward.1} parent=0 // pred_check_branch
    %33 = sbr.rel (0) target = $region25
  $region24: #{generator_forward.1} parent=0 // pred_region
    _
  $region25: #{generator_forward.1} parent=0 // pred_fallthru
    _
  // Predicated region
  $region26: #{generator_forward.1} parent=0 // pred_check
    _
  $region27: #{generator_forward.1} parent=0 // pred_check_branch
    %35 = sbr.rel (0) target = $region29
  $region28: #{generator_forward.1} parent=0 // pred_region
    _
  $region29: #{generator_forward.1} parent=0 // pred_fallthru
    _
  // Predicated region
  $region30: #{generator_forward.1} parent=0 // pred_check
    _
  $region31: #{generator_forward.1} parent=0 // pred_check_branch
    %37 = sbr.rel (0) target = $region33
  $region32: #{generator_forward.1} parent=0 // pred_region
    _
  $region33: #{generator_forward.1} parent=0 // pred_fallthru
    _
  // Predicated region
  $region34: #{generator_forward.1} parent=0 // pred_check
    _
  $region35: #{generator_forward.1} parent=0 // pred_check_branch
    %39 = sbr.rel (0) target = $region37
  $region36: #{generator_forward.1} parent=0 // pred_region
    _
  $region37: #{generator_forward.1} parent=0 // pred_fallthru
    _
  // Predicated region
  $region38: #{generator_forward.1} parent=0 // pred_check
    _
  $region39: #{generator_forward.1} parent=0 // pred_check_branch
    %41 = sbr.rel (0) target = $region41
  $region40: #{generator_forward.1} parent=0 // pred_region
    _
  $region41: #{generator_forward.1} parent=0 // pred_fallthru
    _
  // Predicated region
  $region42: #{generator_forward.1} parent=0 // pred_check
    _
  $region43: #{generator_forward.1} parent=0 // pred_check_branch
    %43 = sbr.rel (0) target = $region45
  $region44: #{generator_forward.1} parent=0 // pred_region
    _
  $region45: #{generator_forward.1} parent=0 // pred_fallthru
    _
  // Predicated region
  $region46: #{generator_forward.1} parent=0 // pred_check
    _
  $region47: #{generator_forward.1} parent=0 // pred_check_branch
    %45 = sbr.rel (0) target = $region49
  $region48: #{generator_forward.1} parent=0 // pred_region
    _
  $region49: #{generator_forward.1} parent=0 // pred_fallthru
    _
  // Predicated region
  $region50: #{generator_forward.1} parent=0 // pred_check
    _
  $region51: #{generator_forward.1} parent=0 // pred_check_branch
    %47 = sbr.rel (0) target = $region53
  $region52: #{generator_forward.1} parent=0 // pred_region
    _
  $region53: #{generator_forward.1} parent=0 // pred_fallthru
    _
  // Predicated region
  $region54: #{generator_forward.1} parent=0 // pred_check
    _
  $region55: #{generator_forward.1} parent=0 // pred_check_branch
    %49 = sbr.rel (0) target = $region57
  $region56: #{generator_forward.1} parent=0 // pred_region
    _
  $region57: #{generator_forward.1} parent=0 // pred_fallthru
    _
  // Predicated region
  $region58: #{generator_forward.1} parent=0 // pred_check
    _
  $region59: #{generator_forward.1} parent=0 // pred_check_branch
    %51 = sbr.rel (0) target = $region61
  $region60: #{generator_forward.1} parent=0 // pred_region
    _
  $region61: #{generator_forward.1} parent=0 // pred_fallthru
    _
  // Predicated region
  $region62: #{generator_forward.1} parent=0 // pred_check
    _
  $region63: #{generator_forward.1} parent=0 // pred_check_branch
    %53 = sbr.rel (0) target = $region65
  $region64: #{generator_forward.1} parent=0 // pred_region
    _
  $region65: #{generator_forward.1} parent=0 // pred_fallthru
    _
  // Predicated region
  $region66: #{generator_forward.1} parent=0 // pred_check
    _
  $region67: #{generator_forward.1} parent=0 // pred_check_branch
    %55 = sbr.rel (0) target = $region69
  $region68: #{generator_forward.1} parent=0 // pred_region
    _
  $region69: #{generator_forward.1} parent=0 // pred_fallthru
    _
  %v57 = vld [vmem:[%s0] sm:$0xff]
  %v58 = vld [vmem:[%s0 + $0x8] sm:$0xff]
  %v59 = vld [vmem:[%s0 + $0x10] sm:$0xff]
  %v60 = vld [vmem:[%s0 + $0x18] sm:$0xff]
  %v61 = vld [vmem:[%s1] sm:$0xf]
  %v62 = vld [vmem:[%s1 + $0x4] sm:$0xf]
  %v63 = vld [vmem:[%s1 + $0x8] sm:$0xf]
  %v64 = vld [vmem:[%s1 + $0xc] sm:$0xf]
  %v65 = vld [vmem:[%s2] sm:$0x1]
  %v66 = vld [vmem:[%s3] sm:$0xff]
  %v67 = vld [vmem:[%s3 + $0x8] sm:$0xff]
  %v68 = vld [vmem:[%s3 + $0x10] sm:$0xff]
  %v69 = vld [vmem:[%s3 + $0x18] sm:$0xff]
  %v70 = vld [vmem:[%s3 + $0x20] sm:$0xff]
  %v71 = vld [vmem:[%s3 + $0x28] sm:$0xff]
  %v72 = vld [vmem:[%s3 + $0x30] sm:$0xff]
  %v73 = vld [vmem:[%s3 + $0x38] sm:$0xff]
  %v74 = vld [vmem:[%s3 + $0x40] sm:$0xff]
  %v75 = vld [vmem:[%s3 + $0x48] sm:$0xff]
  %v76 = vld [vmem:[%s3 + $0x50] sm:$0xff]
  %v77 = vld [vmem:[%s3 + $0x58] sm:$0xff]
  %v78 = vld [vmem:[%s3 + $0x60] sm:$0xff]
  %v79 = vld [vmem:[%s3 + $0x68] sm:$0xff]
  %v80 = vld [vmem:[%s3 + $0x70] sm:$0xff]
  %v81 = vld [vmem:[%s3 + $0x78] sm:$0xff]
  %v82 = vld [vmem:[%s4] sm:$0x3]
  %v83 = vld [vmem:[%s5] sm:$0x3]
  %v84 = vld [vmem:[%s6] sm:$0x3]
  %v85 = vld [vmem:[%s7] sm:$0xff]
  %v86 = vld [vmem:[%s7 + $0x8] sm:$0xff]
  %v87 = vld [vmem:[%s7 + $0x10] sm:$0xff]
  %v88 = vld [vmem:[%s7 + $0x18] sm:$0xff]
  %v89 = vld [vmem:[%s7 + $0x20] sm:$0xff]
  %v90 = vld [vmem:[%s7 + $0x28] sm:$0xff]
  %v91 = vld [vmem:[%s7 + $0x30] sm:$0xff]
  %v92 = vld [vmem:[%s7 + $0x38] sm:$0xff]
  %v93 = vld [vmem:[%s7 + $0x40] sm:$0xff]
  %v94 = vld [vmem:[%s7 + $0x48] sm:$0xff]
  %v95 = vld [vmem:[%s7 + $0x50] sm:$0xff]
  %v96 = vld [vmem:[%s7 + $0x58] sm:$0xff]
  %v97 = vld [vmem:[%s7 + $0x60] sm:$0xff]
  %v98 = vld [vmem:[%s7 + $0x68] sm:$0xff]
  %v99 = vld [vmem:[%s7 + $0x70] sm:$0xff]
  %v100 = vld [vmem:[%s7 + $0x78] sm:$0xff]
  %v101 = vld [vmem:[%s7 + $0x80] sm:$0xff]
  %v102 = vld [vmem:[%s7 + $0x88] sm:$0xff]
  %v103 = vld [vmem:[%s7 + $0x90] sm:$0xff]
  %v104 = vld [vmem:[%s7 + $0x98] sm:$0xff]
  %v105 = vld [vmem:[%s7 + $0xa0] sm:$0xff]
  %v106 = vld [vmem:[%s7 + $0xa8] sm:$0xff]
  %v107 = vld [vmem:[%s7 + $0xb0] sm:$0xff]
  %v108 = vld [vmem:[%s7 + $0xb8] sm:$0xff]
  %v109 = vld [vmem:[%s7 + $0xc0] sm:$0xff]
  %v110 = vld [vmem:[%s7 + $0xc8] sm:$0xff]
  %v111 = vld [vmem:[%s7 + $0xd0] sm:$0xff]
  %v112 = vld [vmem:[%s7 + $0xd8] sm:$0xff]
  %v113 = vld [vmem:[%s7 + $0xe0] sm:$0xff]
  %v114 = vld [vmem:[%s7 + $0xe8] sm:$0xff]
  %v115 = vld [vmem:[%s7 + $0xf0] sm:$0xff]
  %v116 = vld [vmem:[%s7 + $0xf8] sm:$0xff]
  %v117 = vld [vmem:[%s7 + $0x100] sm:$0xff]
  %v118 = vld [vmem:[%s7 + $0x108] sm:$0xff]
  %v119 = vld [vmem:[%s7 + $0x110] sm:$0xff]
  %v120 = vld [vmem:[%s7 + $0x118] sm:$0xff]
  %v121 = vld [vmem:[%s7 + $0x120] sm:$0xff]
  %v122 = vld [vmem:[%s7 + $0x128] sm:$0xff]
  %v123 = vld [vmem:[%s7 + $0x130] sm:$0xff]
  %v124 = vld [vmem:[%s7 + $0x138] sm:$0xff]
  %v125 = vld [vmem:[%s7 + $0x140] sm:$0xff]
  %v126 = vld [vmem:[%s7 + $0x148] sm:$0xff]
  %v127 = vld [vmem:[%s7 + $0x150] sm:$0xff]
  %v128 = vld [vmem:[%s7 + $0x158] sm:$0xff]
  %v129 = vld [vmem:[%s7 + $0x160] sm:$0xff]
  %v130 = vld [vmem:[%s7 + $0x168] sm:$0xff]
  %v131 = vld [vmem:[%s7 + $0x170] sm:$0xff]
  %v132 = vld [vmem:[%s7 + $0x178] sm:$0xff]
  %v133 = vld [vmem:[%s7 + $0x180] sm:$0xff]
  %v134 = vld [vmem:[%s7 + $0x188] sm:$0xff]
  %v135 = vld [vmem:[%s7 + $0x190] sm:$0xff]
  %v136 = vld [vmem:[%s7 + $0x198] sm:$0xff]
  %v137 = vld [vmem:[%s7 + $0x1a0] sm:$0xff]
  %v138 = vld [vmem:[%s7 + $0x1a8] sm:$0xff]
  %v139 = vld [vmem:[%s7 + $0x1b0] sm:$0xff]
  %v140 = vld [vmem:[%s7 + $0x1b8] sm:$0xff]
  %v141 = vld [vmem:[%s7 + $0x1c0] sm:$0xff]
  %v142 = vld [vmem:[%s7 + $0x1c8] sm:$0xff]
  %v143 = vld [vmem:[%s7 + $0x1d0] sm:$0xff]
  %v144 = vld [vmem:[%s7 + $0x1d8] sm:$0xff]
  %v145 = vld [vmem:[%s7 + $0x1e0] sm:$0xff]
  %v146 = vld [vmem:[%s7 + $0x1e8] sm:$0xff]
  %v147 = vld [vmem:[%s7 + $0x1f0] sm:$0xff]
  %v148 = vld [vmem:[%s7 + $0x1f8] sm:$0xff]
  %v149 = vld [vmem:[%s8] sm:$0xf]
  %v150 = vld [vmem:[%s9] sm:$0xf]
  %v151 = vld [vmem:[%s10] sm:$0xf]
  %v152 = vld [vmem:[%s11] sm:$0xff]
  %v153 = vld [vmem:[%s11 + $0x8] sm:$0xff]
  %v154 = vld [vmem:[%s11 + $0x10] sm:$0xff]
  %v155 = vld [vmem:[%s11 + $0x18] sm:$0xff]
  %v156 = vld [vmem:[%s11 + $0x20] sm:$0xff]
  %v157 = vld [vmem:[%s11 + $0x28] sm:$0xff]
  %v158 = vld [vmem:[%s11 + $0x30] sm:$0xff]
  %v159 = vld [vmem:[%s11 + $0x38] sm:$0xff]
  %v160 = vld [vmem:[%s11 + $0x40] sm:$0xff]
  %v161 = vld [vmem:[%s11 + $0x48] sm:$0xff]
  %v162 = vld [vmem:[%s11 + $0x50] sm:$0xff]
  %v163 = vld [vmem:[%s11 + $0x58] sm:$0xff]
  %v164 = vld [vmem:[%s11 + $0x60] sm:$0xff]
  %v165 = vld [vmem:[%s11 + $0x68] sm:$0xff]
  %v166 = vld [vmem:[%s11 + $0x70] sm:$0xff]
  %v167 = vld [vmem:[%s11 + $0x78] sm:$0xff]
  %v168 = vld [vmem:[%s11 + $0x80] sm:$0xff]
  %v169 = vld [vmem:[%s11 + $0x88] sm:$0xff]
  %v170 = vld [vmem:[%s11 + $0x90] sm:$0xff]
  %v171 = vld [vmem:[%s11 + $0x98] sm:$0xff]
  %v172 = vld [vmem:[%s11 + $0xa0] sm:$0xff]
  %v173 = vld [vmem:[%s11 + $0xa8] sm:$0xff]
  %v174 = vld [vmem:[%s11 + $0xb0] sm:$0xff]
  %v175 = vld [vmem:[%s11 + $0xb8] sm:$0xff]
  %v176 = vld [vmem:[%s11 + $0xc0] sm:$0xff]
  %v177 = vld [vmem:[%s11 + $0xc8] sm:$0xff]
  %v178 = vld [vmem:[%s11 + $0xd0] sm:$0xff]
  %v179 = vld [vmem:[%s11 + $0xd8] sm:$0xff]
  %v180 = vld [vmem:[%s11 + $0xe0] sm:$0xff]
  %v181 = vld [vmem:[%s11 + $0xe8] sm:$0xff]
  %v182 = vld [vmem:[%s11 + $0xf0] sm:$0xff]
  %v183 = vld [vmem:[%s11 + $0xf8] sm:$0xff]
  %v184 = vld [vmem:[%s11 + $0x100] sm:$0xff]
  %v185 = vld [vmem:[%s11 + $0x108] sm:$0xff]
  %v186 = vld [vmem:[%s11 + $0x110] sm:$0xff]
  %v187 = vld [vmem:[%s11 + $0x118] sm:$0xff]
  %v188 = vld [vmem:[%s11 + $0x120] sm:$0xff]
  %v189 = vld [vmem:[%s11 + $0x128] sm:$0xff]
  %v190 = vld [vmem:[%s11 + $0x130] sm:$0xff]
  %v191 = vld [vmem:[%s11 + $0x138] sm:$0xff]
  %v192 = vld [vmem:[%s11 + $0x140] sm:$0xff]
  %v193 = vld [vmem:[%s11 + $0x148] sm:$0xff]
  %v194 = vld [vmem:[%s11 + $0x150] sm:$0xff]
  %v195 = vld [vmem:[%s11 + $0x158] sm:$0xff]
  %v196 = vld [vmem:[%s11 + $0x160] sm:$0xff]
  %v197 = vld [vmem:[%s11 + $0x168] sm:$0xff]
  %v198 = vld [vmem:[%s11 + $0x170] sm:$0xff]
  %v199 = vld [vmem:[%s11 + $0x178] sm:$0xff]
  %v200 = vld [vmem:[%s11 + $0x180] sm:$0xff]
  %v201 = vld [vmem:[%s11 + $0x188] sm:$0xff]
  %v202 = vld [vmem:[%s11 + $0x190] sm:$0xff]
  %v203 = vld [vmem:[%s11 + $0x198] sm:$0xff]
  %v204 = vld [vmem:[%s11 + $0x1a0] sm:$0xff]
  %v205 = vld [vmem:[%s11 + $0x1a8] sm:$0xff]
  %v206 = vld [vmem:[%s11 + $0x1b0] sm:$0xff]
  %v207 = vld [vmem:[%s11 + $0x1b8] sm:$0xff]
  %v208 = vld [vmem:[%s11 + $0x1c0] sm:$0xff]
  %v209 = vld [vmem:[%s11 + $0x1c8] sm:$0xff]
  %v210 = vld [vmem:[%s11 + $0x1d0] sm:$0xff]
  %v211 = vld [vmem:[%s11 + $0x1d8] sm:$0xff]
  %v212 = vld [vmem:[%s11 + $0x1e0] sm:$0xff]
  %v213 = vld [vmem:[%s11 + $0x1e8] sm:$0xff]
  %v214 = vld [vmem:[%s11 + $0x1f0] sm:$0xff]
  %v215 = vld [vmem:[%s11 + $0x1f8] sm:$0xff]
  %v216 = vld [vmem:[%s11 + $0x200] sm:$0xff]
  %v217 = vld [vmem:[%s11 + $0x208] sm:$0xff]
  %v218 = vld [vmem:[%s11 + $0x210] sm:$0xff]
  %v219 = vld [vmem:[%s11 + $0x218] sm:$0xff]
  %v220 = vld [vmem:[%s11 + $0x220] sm:$0xff]
  %v221 = vld [vmem:[%s11 + $0x228] sm:$0xff]
  %v222 = vld [vmem:[%s11 + $0x230] sm:$0xff]
  %v223 = vld [vmem:[%s11 + $0x238] sm:$0xff]
  %v224 = vld [vmem:[%s11 + $0x240] sm:$0xff]
  %v225 = vld [vmem:[%s11 + $0x248] sm:$0xff]
  %v226 = vld [vmem:[%s11 + $0x250] sm:$0xff]
  %v227 = vld [vmem:[%s11 + $0x258] sm:$0xff]
  %v228 = vld [vmem:[%s11 + $0x260] sm:$0xff]
  %v229 = vld [vmem:[%s11 + $0x268] sm:$0xff]
  %v230 = vld [vmem:[%s11 + $0x270] sm:$0xff]
  %v231 = vld [vmem:[%s11 + $0x278] sm:$0xff]
  %v232 = vld [vmem:[%s11 + $0x280] sm:$0xff]
  %v233 = vld [vmem:[%s11 + $0x288] sm:$0xff]
  %v234 = vld [vmem:[%s11 + $0x290] sm:$0xff]
  %v235 = vld [vmem:[%s11 + $0x298] sm:$0xff]
  %v236 = vld [vmem:[%s11 + $0x2a0] sm:$0xff]
  %v237 = vld [vmem:[%s11 + $0x2a8] sm:$0xff]
  %v238 = vld [vmem:[%s11 + $0x2b0] sm:$0xff]
  %v239 = vld [vmem:[%s11 + $0x2b8] sm:$0xff]
  %v240 = vld [vmem:[%s11 + $0x2c0] sm:$0xff]
  %v241 = vld [vmem:[%s11 + $0x2c8] sm:$0xff]
  %v242 = vld [vmem:[%s11 + $0x2d0] sm:$0xff]
  %v243 = vld [vmem:[%s11 + $0x2d8] sm:$0xff]
  %v244 = vld [vmem:[%s11 + $0x2e0] sm:$0xff]
  %v245 = vld [vmem:[%s11 + $0x2e8] sm:$0xff]
  %v246 = vld [vmem:[%s11 + $0x2f0] sm:$0xff]
  %v247 = vld [vmem:[%s11 + $0x2f8] sm:$0xff]
  %v248 = vld [vmem:[%s11 + $0x300] sm:$0xff]
  %v249 = vld [vmem:[%s11 + $0x308] sm:$0xff]
  %v250 = vld [vmem:[%s11 + $0x310] sm:$0xff]
  %v251 = vld [vmem:[%s11 + $0x318] sm:$0xff]
  %v252 = vld [vmem:[%s11 + $0x320] sm:$0xff]
  %v253 = vld [vmem:[%s11 + $0x328] sm:$0xff]
  %v254 = vld [vmem:[%s11 + $0x330] sm:$0xff]
  %v255 = vld [vmem:[%s11 + $0x338] sm:$0xff]
  %v256 = vld [vmem:[%s11 + $0x340] sm:$0xff]
  %v257 = vld [vmem:[%s11 + $0x348] sm:$0xff]
  %v258 = vld [vmem:[%s11 + $0x350] sm:$0xff]
  %v259 = vld [vmem:[%s11 + $0x358] sm:$0xff]
  %v260 = vld [vmem:[%s11 + $0x360] sm:$0xff]
  %v261 = vld [vmem:[%s11 + $0x368] sm:$0xff]
  %v262 = vld [vmem:[%s11 + $0x370] sm:$0xff]
  %v263 = vld [vmem:[%s11 + $0x378] sm:$0xff]
  %v264 = vld [vmem:[%s11 + $0x380] sm:$0xff]
  %v265 = vld [vmem:[%s11 + $0x388] sm:$0xff]
  %v266 = vld [vmem:[%s11 + $0x390] sm:$0xff]
  %v267 = vld [vmem:[%s11 + $0x398] sm:$0xff]
  %v268 = vld [vmem:[%s11 + $0x3a0] sm:$0xff]
  %v269 = vld [vmem:[%s11 + $0x3a8] sm:$0xff]
  %v270 = vld [vmem:[%s11 + $0x3b0] sm:$0xff]
  %v271 = vld [vmem:[%s11 + $0x3b8] sm:$0xff]
  %v272 = vld [vmem:[%s11 + $0x3c0] sm:$0xff]
  %v273 = vld [vmem:[%s11 + $0x3c8] sm:$0xff]
  %v274 = vld [vmem:[%s11 + $0x3d0] sm:$0xff]
  %v275 = vld [vmem:[%s11 + $0x3d8] sm:$0xff]
  %v276 = vld [vmem:[%s11 + $0x3e0] sm:$0xff]
  %v277 = vld [vmem:[%s11 + $0x3e8] sm:$0xff]
  %v278 = vld [vmem:[%s11 + $0x3f0] sm:$0xff]
  %v279 = vld [vmem:[%s11 + $0x3f8] sm:$0xff]
  %v280 = vld [vmem:[%s11 + $0x400] sm:$0xff]
  %v281 = vld [vmem:[%s11 + $0x408] sm:$0xff]
  %v282 = vld [vmem:[%s11 + $0x410] sm:$0xff]
  %v283 = vld [vmem:[%s11 + $0x418] sm:$0xff]
  %v284 = vld [vmem:[%s11 + $0x420] sm:$0xff]
  %v285 = vld [vmem:[%s11 + $0x428] sm:$0xff]
  %v286 = vld [vmem:[%s11 + $0x430] sm:$0xff]
  %v287 = vld [vmem:[%s11 + $0x438] sm:$0xff]
  %v288 = vld [vmem:[%s11 + $0x440] sm:$0xff]
  %v289 = vld [vmem:[%s11 + $0x448] sm:$0xff]
  %v290 = vld [vmem:[%s11 + $0x450] sm:$0xff]
  %v291 = vld [vmem:[%s11 + $0x458] sm:$0xff]
  %v292 = vld [vmem:[%s11 + $0x460] sm:$0xff]
  %v293 = vld [vmem:[%s11 + $0x468] sm:$0xff]
  %v294 = vld [vmem:[%s11 + $0x470] sm:$0xff]
  %v295 = vld [vmem:[%s11 + $0x478] sm:$0xff]
  %v296 = vld [vmem:[%s11 + $0x480] sm:$0xff]
  %v297 = vld [vmem:[%s11 + $0x488] sm:$0xff]
  %v298 = vld [vmem:[%s11 + $0x490] sm:$0xff]
  %v299 = vld [vmem:[%s11 + $0x498] sm:$0xff]
  %v300 = vld [vmem:[%s11 + $0x4a0] sm:$0xff]
  %v301 = vld [vmem:[%s11 + $0x4a8] sm:$0xff]
  %v302 = vld [vmem:[%s11 + $0x4b0] sm:$0xff]
  %v303 = vld [vmem:[%s11 + $0x4b8] sm:$0xff]
  %v304 = vld [vmem:[%s11 + $0x4c0] sm:$0xff]
  %v305 = vld [vmem:[%s11 + $0x4c8] sm:$0xff]
  %v306 = vld [vmem:[%s11 + $0x4d0] sm:$0xff]
  %v307 = vld [vmem:[%s11 + $0x4d8] sm:$0xff]
  %v308 = vld [vmem:[%s11 + $0x4e0] sm:$0xff]
  %v309 = vld [vmem:[%s11 + $0x4e8] sm:$0xff]
  %v310 = vld [vmem:[%s11 + $0x4f0] sm:$0xff]
  %v311 = vld [vmem:[%s11 + $0x4f8] sm:$0xff]
  %v312 = vld [vmem:[%s11 + $0x500] sm:$0xff]
  %v313 = vld [vmem:[%s11 + $0x508] sm:$0xff]
  %v314 = vld [vmem:[%s11 + $0x510] sm:$0xff]
  %v315 = vld [vmem:[%s11 + $0x518] sm:$0xff]
  %v316 = vld [vmem:[%s11 + $0x520] sm:$0xff]
  %v317 = vld [vmem:[%s11 + $0x528] sm:$0xff]
  %v318 = vld [vmem:[%s11 + $0x530] sm:$0xff]
  %v319 = vld [vmem:[%s11 + $0x538] sm:$0xff]
  %v320 = vld [vmem:[%s11 + $0x540] sm:$0xff]
  %v321 = vld [vmem:[%s11 + $0x548] sm:$0xff]
  %v322 = vld [vmem:[%s11 + $0x550] sm:$0xff]
  %v323 = vld [vmem:[%s11 + $0x558] sm:$0xff]
  %v324 = vld [vmem:[%s11 + $0x560] sm:$0xff]
  %v325 = vld [vmem:[%s11 + $0x568] sm:$0xff]
  %v326 = vld [vmem:[%s11 + $0x570] sm:$0xff]
  %v327 = vld [vmem:[%s11 + $0x578] sm:$0xff]
  %v328 = vld [vmem:[%s11 + $0x580] sm:$0xff]
  %v329 = vld [vmem:[%s11 + $0x588] sm:$0xff]
  %v330 = vld [vmem:[%s11 + $0x590] sm:$0xff]
  %v331 = vld [vmem:[%s11 + $0x598] sm:$0xff]
  %v332 = vld [vmem:[%s11 + $0x5a0] sm:$0xff]
  %v333 = vld [vmem:[%s11 + $0x5a8] sm:$0xff]
  %v334 = vld [vmem:[%s11 + $0x5b0] sm:$0xff]
  %v335 = vld [vmem:[%s11 + $0x5b8] sm:$0xff]
  %v336 = vld [vmem:[%s11 + $0x5c0] sm:$0xff]
  %v337 = vld [vmem:[%s11 + $0x5c8] sm:$0xff]
  %v338 = vld [vmem:[%s11 + $0x5d0] sm:$0xff]
  %v339 = vld [vmem:[%s11 + $0x5d8] sm:$0xff]
  %v340 = vld [vmem:[%s11 + $0x5e0] sm:$0xff]
  %v341 = vld [vmem:[%s11 + $0x5e8] sm:$0xff]
  %v342 = vld [vmem:[%s11 + $0x5f0] sm:$0xff]
  %v343 = vld [vmem:[%s11 + $0x5f8] sm:$0xff]
  %v344 = vld [vmem:[%s11 + $0x600] sm:$0xff]
  %v345 = vld [vmem:[%s11 + $0x608] sm:$0xff]
  %v346 = vld [vmem:[%s11 + $0x610] sm:$0xff]
  %v347 = vld [vmem:[%s11 + $0x618] sm:$0xff]
  %v348 = vld [vmem:[%s11 + $0x620] sm:$0xff]
  %v349 = vld [vmem:[%s11 + $0x628] sm:$0xff]
  %v350 = vld [vmem:[%s11 + $0x630] sm:$0xff]
  %v351 = vld [vmem:[%s11 + $0x638] sm:$0xff]
  %v352 = vld [vmem:[%s11 + $0x640] sm:$0xff]
  %v353 = vld [vmem:[%s11 + $0x648] sm:$0xff]
  %v354 = vld [vmem:[%s11 + $0x650] sm:$0xff]
  %v355 = vld [vmem:[%s11 + $0x658] sm:$0xff]
  %v356 = vld [vmem:[%s11 + $0x660] sm:$0xff]
  %v357 = vld [vmem:[%s11 + $0x668] sm:$0xff]
  %v358 = vld [vmem:[%s11 + $0x670] sm:$0xff]
  %v359 = vld [vmem:[%s11 + $0x678] sm:$0xff]
  %v360 = vld [vmem:[%s11 + $0x680] sm:$0xff]
  %v361 = vld [vmem:[%s11 + $0x688] sm:$0xff]
  %v362 = vld [vmem:[%s11 + $0x690] sm:$0xff]
  %v363 = vld [vmem:[%s11 + $0x698] sm:$0xff]
  %v364 = vld [vmem:[%s11 + $0x6a0] sm:$0xff]
  %v365 = vld [vmem:[%s11 + $0x6a8] sm:$0xff]
  %v366 = vld [vmem:[%s11 + $0x6b0] sm:$0xff]
  %v367 = vld [vmem:[%s11 + $0x6b8] sm:$0xff]
  %v368 = vld [vmem:[%s11 + $0x6c0] sm:$0xff]
  %v369 = vld [vmem:[%s11 + $0x6c8] sm:$0xff]
  %v370 = vld [vmem:[%s11 + $0x6d0] sm:$0xff]
  %v371 = vld [vmem:[%s11 + $0x6d8] sm:$0xff]
  %v372 = vld [vmem:[%s11 + $0x6e0] sm:$0xff]
  %v373 = vld [vmem:[%s11 + $0x6e8] sm:$0xff]
  %v374 = vld [vmem:[%s11 + $0x6f0] sm:$0xff]
  %v375 = vld [vmem:[%s11 + $0x6f8] sm:$0xff]
  %v376 = vld [vmem:[%s11 + $0x700] sm:$0xff]
  %v377 = vld [vmem:[%s11 + $0x708] sm:$0xff]
  %v378 = vld [vmem:[%s11 + $0x710] sm:$0xff]
  %v379 = vld [vmem:[%s11 + $0x718] sm:$0xff]
  %v380 = vld [vmem:[%s11 + $0x720] sm:$0xff]
  %v381 = vld [vmem:[%s11 + $0x728] sm:$0xff]
  %v382 = vld [vmem:[%s11 + $0x730] sm:$0xff]
  %v383 = vld [vmem:[%s11 + $0x738] sm:$0xff]
  %v384 = vld [vmem:[%s11 + $0x740] sm:$0xff]
  %v385 = vld [vmem:[%s11 + $0x748] sm:$0xff]
  %v386 = vld [vmem:[%s11 + $0x750] sm:$0xff]
  %v387 = vld [vmem:[%s11 + $0x758] sm:$0xff]
  %v388 = vld [vmem:[%s11 + $0x760] sm:$0xff]
  %v389 = vld [vmem:[%s11 + $0x768] sm:$0xff]
  %v390 = vld [vmem:[%s11 + $0x770] sm:$0xff]
  %v391 = vld [vmem:[%s11 + $0x778] sm:$0xff]
  %v392 = vld [vmem:[%s11 + $0x780] sm:$0xff]
  %v393 = vld [vmem:[%s11 + $0x788] sm:$0xff]
  %v394 = vld [vmem:[%s11 + $0x790] sm:$0xff]
  %v395 = vld [vmem:[%s11 + $0x798] sm:$0xff]
  %v396 = vld [vmem:[%s11 + $0x7a0] sm:$0xff]
  %v397 = vld [vmem:[%s11 + $0x7a8] sm:$0xff]
  %v398 = vld [vmem:[%s11 + $0x7b0] sm:$0xff]
  %v399 = vld [vmem:[%s11 + $0x7b8] sm:$0xff]
  %v400 = vld [vmem:[%s11 + $0x7c0] sm:$0xff]
  %v401 = vld [vmem:[%s11 + $0x7c8] sm:$0xff]
  %v402 = vld [vmem:[%s11 + $0x7d0] sm:$0xff]
  %v403 = vld [vmem:[%s11 + $0x7d8] sm:$0xff]
  %v404 = vld [vmem:[%s11 + $0x7e0] sm:$0xff]
  %v405 = vld [vmem:[%s11 + $0x7e8] sm:$0xff]
  %v406 = vld [vmem:[%s11 + $0x7f0] sm:$0xff]
  %v407 = vld [vmem:[%s11 + $0x7f8] sm:$0xff]
  %v408 = vld [vmem:[%s12] sm:$0xff]
  %v409 = vld [vmem:[%s13] sm:$0xff]
  %v410 = vld [vmem:[%s14] sm:$0xff]
  %v411 = vpack.c.bf16 %v58, %v57
  %v412 = vpack.c.bf16 %v60, %v59
  %v414 = vlaneseq
  %v415 = vshrl.u32 %v414, 7
  %v416 = vsub.s32 0, %v415
  %v417 = vrot.slane %v65, %v416
  %v423 = vunpack.c.l.b16 %v61
  %v424 = vunpack.c.l.b16 %v62
  %v425 = vunpack.c.l.b16 %v63
  %v426 = vunpack.c.l.b16 %v64
  %v427 = vpack.c.b16 %v424, %v423
  %v428 = vpack.c.b16 %v426, %v425
  %vm431 = vcmask 261120
  %v433 = vsel %vm431, %v411, 0
  %v436 = vsel %vm431, %v412, 0
  %438 = vmatprep.subr.bf16.mxu0 0
  %439 = vmatpush1.bf16.msra.mxu0 0
  %440 = vmatprep.subr.bf16.mxu0 0
  %441 = vmatpush1.bf16.msra.mxu0 0
  %442 = vmatprep.subr.bf16.mxu0 0
  %443 = vmatpush1.bf16.msra.mxu0 0
  %444 = vmatprep.subr.bf16.mxu0 0
  %445 = vmatpush1.bf16.msra.mxu0 0
  %446 = vmatprep.subr.bf16.mxu0 0
  %447 = vmatpush1.bf16.msra.mxu0 0
  %448 = vmatprep.subr.bf16.mxu0 0
  %449 = vmatpush1.bf16.msra.mxu0 0
  %450 = vmatprep.subr.bf16.mxu0 0
  %451 = vmatpush1.bf16.msra.mxu0 %v428
  %452 = vmatprep.subr.bf16.mxu0 0
  %453 = vmatpush1.bf16.msra.mxu0 %v427
  %454 = vmatprep.subr.bf16.mxu0 0
  %455 = vmatpush2.bf16.msra.mxu0 0
  %456 = vmatprep.subr.bf16.mxu0 0
  %457 = vmatpush2.bf16.msra.mxu0 0
  %458 = vmatprep.subr.bf16.mxu0 0
  %459 = vmatpush2.bf16.msra.mxu0 0
  %460 = vmatprep.subr.bf16.mxu0 0
  %461 = vmatpush2.bf16.msra.mxu0 0
  %462 = vmatprep.subr.bf16.mxu0 0
  %463 = vmatpush2.bf16.msra.mxu0 0
  %464 = vmatprep.subr.bf16.mxu0 0
  %465 = vmatpush2.bf16.msra.mxu0 0
  %466 = vmatprep.subr.bf16.mxu0 0
  %467 = vmatpush2.bf16.msra.mxu0 0
  %468 = vmatprep.subr.bf16.mxu0 0
  %469 = vmatpush2.bf16.msra.mxu0 0
  %470 = vmatprep.mubr.bf16.mxu0 0
  %471 = vmatmul.mubr.bf16.gmra.mxu0 %v433
  %v472 = vpop.f32.mrf.mxu0
  %v473 = vadd.f32 %v417, %v472
  %v474 = vpop.f32.mrf.mxu0
  %v475 = vpop.f32.mrf.mxu0
  %v476 = vadd.f32 %v417, %v475
  %v477 = vpop.f32.mrf.mxu0
  %478 = vmatprep.mubr.bf16.mxu0 0
  %479 = vmatmul.mubr.bf16.gmra.mxu0 %v436
  %v480 = vpop.f32.mrf.mxu0
  %v481 = vadd.f32 %v417, %v480
  %v482 = vpop.f32.mrf.mxu0
  %v483 = vpop.f32.mrf.mxu0
  %v484 = vadd.f32 %v417, %v483
  %v485 = vpop.f32.mrf.mxu0
  %486 = vdwg.mxu0
  %vm487 = vcmp.gt.f32.partialorder %v473, 0.0
  %vm488 = vcmp.gt.f32.partialorder %v476, 0.0
  %vm489 = vcmp.gt.f32.partialorder %v481, 0.0
  %vm490 = vcmp.gt.f32.partialorder %v484, 0.0
  %v491 = vmul.f32 %v473, 0.2
  %v492 = vmul.f32 %v476, 0.2
  %v493 = vmul.f32 %v481, 0.2
  %v494 = vmul.f32 %v484, 0.2
  %v495 = vsel %vm487, %v473, %v491
  %v496 = vsel %vm488, %v476, %v492
  %v497 = vsel %vm489, %v481, %v493
  %v498 = vsel %vm490, %v484, %v494
  %v499 = vpack.c.bf16 %v496, %v495
  %v500 = vpack.c.bf16 %v498, %v497
  %v502 = vlaneseq
  %v503 = vshrl.u32 %v502, 7
  %v504 = vsub.s32 0, %v503
  %v505 = vrot.slane %v82, %v504
  %v506 = vlaneseq
  %v507 = vshrl.u32 %v506, 7
  %v508 = vsub.s32 1, %v507
  %v509 = vrot.slane %v82, %v508
  %v528 = vunpack.c.l.b16 %v66
  %v529 = vunpack.c.h.b16 %v66
  %v530 = vunpack.c.l.b16 %v67
  %v531 = vunpack.c.h.b16 %v67
  %v532 = vunpack.c.l.b16 %v68
  %v533 = vunpack.c.h.b16 %v68
  %v534 = vunpack.c.l.b16 %v69
  %v535 = vunpack.c.h.b16 %v69
  %v536 = vunpack.c.l.b16 %v70
  %v537 = vunpack.c.h.b16 %v70
  %v538 = vunpack.c.l.b16 %v71
  %v539 = vunpack.c.h.b16 %v71
  %v540 = vunpack.c.l.b16 %v72
  %v541 = vunpack.c.h.b16 %v72
  %v542 = vunpack.c.l.b16 %v73
  %v543 = vunpack.c.h.b16 %v73
  %v544 = vunpack.c.l.b16 %v74
  %v545 = vunpack.c.h.b16 %v74
  %v546 = vunpack.c.l.b16 %v75
  %v547 = vunpack.c.h.b16 %v75
  %v548 = vunpack.c.l.b16 %v76
  %v549 = vunpack.c.h.b16 %v76
  %v550 = vunpack.c.l.b16 %v77
  %v551 = vunpack.c.h.b16 %v77
  %v552 = vunpack.c.l.b16 %v78
  %v553 = vunpack.c.h.b16 %v78
  %v554 = vunpack.c.l.b16 %v79
  %v555 = vunpack.c.h.b16 %v79
  %v556 = vunpack.c.l.b16 %v80
  %v557 = vunpack.c.h.b16 %v80
  %v558 = vunpack.c.l.b16 %v81
  %v559 = vunpack.c.h.b16 %v81
  %v560 = vpack.c.b16 %v530, %v528
  %v561 = vpack.c.b16 %v531, %v529
  %v562 = vpack.c.b16 %v534, %v532
  %v563 = vpack.c.b16 %v535, %v533
  %v564 = vpack.c.b16 %v538, %v536
  %v565 = vpack.c.b16 %v539, %v537
  %v566 = vpack.c.b16 %v542, %v540
  %v567 = vpack.c.b16 %v543, %v541
  %v568 = vpack.c.b16 %v546, %v544
  %v569 = vpack.c.b16 %v547, %v545
  %v570 = vpack.c.b16 %v550, %v548
  %v571 = vpack.c.b16 %v551, %v549
  %v572 = vpack.c.b16 %v554, %v552
  %v573 = vpack.c.b16 %v555, %v553
  %v574 = vpack.c.b16 %v558, %v556
  %v575 = vpack.c.b16 %v559, %v557
  %592 = vmatprep.subr.bf16.mxu0 %v575
  %593 = vmatpush1.bf16.msra.mxu0 %v574
  %594 = vmatprep.subr.bf16.mxu0 %v573
  %595 = vmatpush1.bf16.msra.mxu0 %v572
  %596 = vmatprep.subr.bf16.mxu0 %v571
  %597 = vmatpush1.bf16.msra.mxu0 %v570
  %598 = vmatprep.subr.bf16.mxu0 %v569
  %599 = vmatpush1.bf16.msra.mxu0 %v568
  %600 = vmatprep.subr.bf16.mxu0 %v567
  %601 = vmatpush1.bf16.msra.mxu0 %v566
  %602 = vmatprep.subr.bf16.mxu0 %v565
  %603 = vmatpush1.bf16.msra.mxu0 %v564
  %604 = vmatprep.subr.bf16.mxu0 %v563
  %605 = vmatpush1.bf16.msra.mxu0 %v562
  %606 = vmatprep.subr.bf16.mxu0 %v561
  %607 = vmatpush1.bf16.msra.mxu0 %v560
  %608 = vmatprep.subr.bf16.mxu0 0
  %609 = vmatpush2.bf16.msra.mxu0 0
  %610 = vmatprep.subr.bf16.mxu0 0
  %611 = vmatpush2.bf16.msra.mxu0 0
  %612 = vmatprep.subr.bf16.mxu0 0
  %613 = vmatpush2.bf16.msra.mxu0 0
  %614 = vmatprep.subr.bf16.mxu0 0
  %615 = vmatpush2.bf16.msra.mxu0 0
  %616 = vmatprep.subr.bf16.mxu0 0
  %617 = vmatpush2.bf16.msra.mxu0 0
  %618 = vmatprep.subr.bf16.mxu0 0
  %619 = vmatpush2.bf16.msra.mxu0 0
  %620 = vmatprep.subr.bf16.mxu0 0
  %621 = vmatpush2.bf16.msra.mxu0 0
  %622 = vmatprep.subr.bf16.mxu0 0
  %623 = vmatpush2.bf16.msra.mxu0 0
  %624 = vmatprep.mubr.bf16.mxu0 0
  %625 = vmatmul.mubr.bf16.gmra.mxu0 %v499
  %v626 = vpop.f32.mrf.mxu0
  %v627 = vadd.f32 %v505, %v626
  %v628 = vpop.f32.mrf.mxu0
  %v629 = vadd.f32 %v509, %v628
  %v630 = vpop.f32.mrf.mxu0
  %v631 = vadd.f32 %v505, %v630
  %v632 = vpop.f32.mrf.mxu0
  %v633 = vadd.f32 %v509, %v632
  %634 = vmatprep.mubr.bf16.mxu0 0
  %635 = vmatmul.mubr.bf16.gmra.mxu0 %v500
  %v636 = vpop.f32.mrf.mxu0
  %v637 = vadd.f32 %v505, %v636
  %v638 = vpop.f32.mrf.mxu0
  %v639 = vadd.f32 %v509, %v638
  %v640 = vpop.f32.mrf.mxu0
  %v641 = vadd.f32 %v505, %v640
  %v642 = vpop.f32.mrf.mxu0
  %v643 = vadd.f32 %v509, %v642
  %644 = vdwg.mxu0
  %v645 = vadd.f32 %v627, %v631
  %v646 = vadd.f32 %v645, %v637
  %v647 = vadd.f32 %v646, %v641
  %v648 = vrot.slane %v647, 4
  %v649 = vadd.f32 %v647, %v648
  %v650 = vrot.slane %v649, 2
  %v651 = vadd.f32 %v649, %v650
  %v652 = vrot.slane %v651, 1
  %v653 = vadd.f32 %v651, %v652
  %v654 = vadd.f32 %v629, %v633
  %v655 = vadd.f32 %v654, %v639
  %v656 = vadd.f32 %v655, %v643
  %v657 = vrot.slane %v656, 4
  %v658 = vadd.f32 %v656, %v657
  %v659 = vrot.slane %v658, 2
  %v660 = vadd.f32 %v658, %v659
  %v661 = vrot.slane %v660, 1
  %v662 = vadd.f32 %v660, %v661
  %v663 = vrcp.pop 32.0
  %v664 = vmul.f32 %v653, %v663
  %v665 = vmul.f32 %v662, %v663
  %v666 = vsub.f32 %v627, %v664
  %v667 = vsub.f32 %v629, %v665
  %v668 = vsub.f32 %v631, %v664
  %v669 = vsub.f32 %v633, %v665
  %v670 = vsub.f32 %v637, %v664
  %v671 = vsub.f32 %v639, %v665
  %v672 = vsub.f32 %v641, %v664
  %v673 = vsub.f32 %v643, %v665
  %v674 = vmul.f32 %v666, %v666
  %v675 = vmul.f32 %v667, %v667
  %v676 = vmul.f32 %v668, %v668
  %v677 = vmul.f32 %v669, %v669
  %v678 = vmul.f32 %v670, %v670
  %v679 = vmul.f32 %v671, %v671
  %v680 = vmul.f32 %v672, %v672
  %v681 = vmul.f32 %v673, %v673
  %v682 = vadd.f32 %v674, %v676
  %v683 = vadd.f32 %v682, %v678
  %v684 = vadd.f32 %v683, %v680
  %v685 = vrot.slane %v684, 4
  %v686 = vadd.f32 %v684, %v685
  %v687 = vrot.slane %v686, 2
  %v688 = vadd.f32 %v686, %v687
  %v689 = vrot.slane %v688, 1
  %v690 = vadd.f32 %v688, %v689
  %v691 = vadd.f32 %v675, %v677
  %v692 = vadd.f32 %v691, %v679
  %v693 = vadd.f32 %v692, %v681
  %v694 = vrot.slane %v693, 4
  %v695 = vadd.f32 %v693, %v694
  %v696 = vrot.slane %v695, 2
  %v697 = vadd.f32 %v695, %v696
  %v698 = vrot.slane %v697, 1
  %v699 = vadd.f32 %v697, %v698
  %v700 = vmul.f32 %v690, %v663
  %v701 = vmul.f32 %v699, %v663
  %v702 = vadd.f32 %v700, 0.8
  %v703 = vadd.f32 %v701, 0.8
  %v704 = vrsqrt.pop %v702
  %v705 = vrsqrt.pop %v703
  %v706 = vmul.f32 %v666, %v704
  %v707 = vmul.f32 %v667, %v705
  %v708 = vmul.f32 %v668, %v704
  %v709 = vmul.f32 %v669, %v705
  %v710 = vmul.f32 %v670, %v704
  %v711 = vmul.f32 %v671, %v705
  %v712 = vmul.f32 %v672, %v704
  %v713 = vmul.f32 %v673, %v705
  %v715 = vlaneseq
  %v716 = vshrl.u32 %v715, 7
  %v717 = vsub.s32 0, %v716
  %v718 = vrot.slane %v83, %v717
  %v719 = vlaneseq
  %v720 = vshrl.u32 %v719, 7
  %v721 = vsub.s32 1, %v720
  %v722 = vrot.slane %v83, %v721
  %v725 = vmul.f32 %v706, %v718
  %v726 = vmul.f32 %v707, %v722
  %v727 = vmul.f32 %v708, %v718
  %v728 = vmul.f32 %v709, %v722
  %v729 = vmul.f32 %v710, %v718
  %v730 = vmul.f32 %v711, %v722
  %v731 = vmul.f32 %v712, %v718
  %v732 = vmul.f32 %v713, %v722
  %v734 = vlaneseq
  %v735 = vshrl.u32 %v734, 7
  %v736 = vsub.s32 0, %v735
  %v737 = vrot.slane %v84, %v736
  %v738 = vlaneseq
  %v739 = vshrl.u32 %v738, 7
  %v740 = vsub.s32 1, %v739
  %v741 = vrot.slane %v84, %v740
  %v744 = vadd.f32 %v725, %v737
  %v745 = vadd.f32 %v726, %v741
  %v746 = vadd.f32 %v727, %v737
  %v747 = vadd.f32 %v728, %v741
  %v748 = vadd.f32 %v729, %v737
  %v749 = vadd.f32 %v730, %v741
  %v750 = vadd.f32 %v731, %v737
  %v751 = vadd.f32 %v732, %v741
  %vm752 = vcmp.gt.f32.partialorder %v744, 0.0
  %vm753 = vcmp.gt.f32.partialorder %v745, 0.0
  %vm754 = vcmp.gt.f32.partialorder %v746, 0.0
  %vm755 = vcmp.gt.f32.partialorder %v747, 0.0
  %vm756 = vcmp.gt.f32.partialorder %v748, 0.0
  %vm757 = vcmp.gt.f32.partialorder %v749, 0.0
  %vm758 = vcmp.gt.f32.partialorder %v750, 0.0
  %vm759 = vcmp.gt.f32.partialorder %v751, 0.0
  %v760 = vmul.f32 %v744, 0.2
  %v761 = vmul.f32 %v745, 0.2
  %v762 = vmul.f32 %v746, 0.2
  %v763 = vmul.f32 %v747, 0.2
  %v764 = vmul.f32 %v748, 0.2
  %v765 = vmul.f32 %v749, 0.2
  %v766 = vmul.f32 %v750, 0.2
  %v767 = vmul.f32 %v751, 0.2
  %v768 = vsel %vm752, %v744, %v760
  %v769 = vsel %vm753, %v745, %v761
  %v770 = vsel %vm754, %v746, %v762
  %v771 = vsel %vm755, %v747, %v763
  %v772 = vsel %vm756, %v748, %v764
  %v773 = vsel %vm757, %v749, %v765
  %v774 = vsel %vm758, %v750, %v766
  %v775 = vsel %vm759, %v751, %v767
  %v776 = vpack.c.bf16 %v770, %v768
  %v777 = vpack.c.bf16 %v771, %v769
  %v778 = vpack.c.bf16 %v774, %v772
  %v779 = vpack.c.bf16 %v775, %v773
  %v781 = vlaneseq
  %v782 = vshrl.u32 %v781, 7
  %v783 = vsub.s32 0, %v782
  %v784 = vrot.slane %v149, %v783
  %v785 = vlaneseq
  %v786 = vshrl.u32 %v785, 7
  %v787 = vsub.s32 1, %v786
  %v788 = vrot.slane %v149, %v787
  %v789 = vlaneseq
  %v790 = vshrl.u32 %v789, 7
  %v791 = vsub.s32 2, %v790
  %v792 = vrot.slane %v149, %v791
  %v793 = vlaneseq
  %v794 = vshrl.u32 %v793, 7
  %v795 = vsub.s32 3, %v794
  %v796 = vrot.slane %v149, %v795
  %v865 = vunpack.c.l.b16 %v85
  %v866 = vunpack.c.h.b16 %v85
  %v867 = vunpack.c.l.b16 %v86
  %v868 = vunpack.c.h.b16 %v86
  %v869 = vunpack.c.l.b16 %v87
  %v870 = vunpack.c.h.b16 %v87
  %v871 = vunpack.c.l.b16 %v88
  %v872 = vunpack.c.h.b16 %v88
  %v873 = vunpack.c.l.b16 %v89
  %v874 = vunpack.c.h.b16 %v89
  %v875 = vunpack.c.l.b16 %v90
  %v876 = vunpack.c.h.b16 %v90
  %v877 = vunpack.c.l.b16 %v91
  %v878 = vunpack.c.h.b16 %v91
  %v879 = vunpack.c.l.b16 %v92
  %v880 = vunpack.c.h.b16 %v92
  %v881 = vunpack.c.l.b16 %v93
  %v882 = vunpack.c.h.b16 %v93
  %v883 = vunpack.c.l.b16 %v94
  %v884 = vunpack.c.h.b16 %v94
  %v885 = vunpack.c.l.b16 %v95
  %v886 = vunpack.c.h.b16 %v95
  %v887 = vunpack.c.l.b16 %v96
  %v888 = vunpack.c.h.b16 %v96
  %v889 = vunpack.c.l.b16 %v97
  %v890 = vunpack.c.h.b16 %v97
  %v891 = vunpack.c.l.b16 %v98
  %v892 = vunpack.c.h.b16 %v98
  %v893 = vunpack.c.l.b16 %v99
  %v894 = vunpack.c.h.b16 %v99
  %v895 = vunpack.c.l.b16 %v100
  %v896 = vunpack.c.h.b16 %v100
  %v897 = vunpack.c.l.b16 %v101
  %v898 = vunpack.c.h.b16 %v101
  %v899 = vunpack.c.l.b16 %v102
  %v900 = vunpack.c.h.b16 %v102
  %v901 = vunpack.c.l.b16 %v103
  %v902 = vunpack.c.h.b16 %v103
  %v903 = vunpack.c.l.b16 %v104
  %v904 = vunpack.c.h.b16 %v104
  %v905 = vunpack.c.l.b16 %v105
  %v906 = vunpack.c.h.b16 %v105
  %v907 = vunpack.c.l.b16 %v106
  %v908 = vunpack.c.h.b16 %v106
  %v909 = vunpack.c.l.b16 %v107
  %v910 = vunpack.c.h.b16 %v107
  %v911 = vunpack.c.l.b16 %v108
  %v912 = vunpack.c.h.b16 %v108
  %v913 = vunpack.c.l.b16 %v109
  %v914 = vunpack.c.h.b16 %v109
  %v915 = vunpack.c.l.b16 %v110
  %v916 = vunpack.c.h.b16 %v110
  %v917 = vunpack.c.l.b16 %v111
  %v918 = vunpack.c.h.b16 %v111
  %v919 = vunpack.c.l.b16 %v112
  %v920 = vunpack.c.h.b16 %v112
  %v921 = vunpack.c.l.b16 %v113
  %v922 = vunpack.c.h.b16 %v113
  %v923 = vunpack.c.l.b16 %v114
  %v924 = vunpack.c.h.b16 %v114
  %v925 = vunpack.c.l.b16 %v115
  %v926 = vunpack.c.h.b16 %v115
  %v927 = vunpack.c.l.b16 %v116
  %v928 = vunpack.c.h.b16 %v116
  %v929 = vunpack.c.l.b16 %v117
  %v930 = vunpack.c.h.b16 %v117
  %v931 = vunpack.c.l.b16 %v118
  %v932 = vunpack.c.h.b16 %v118
  %v933 = vunpack.c.l.b16 %v119
  %v934 = vunpack.c.h.b16 %v119
  %v935 = vunpack.c.l.b16 %v120
  %v936 = vunpack.c.h.b16 %v120
  %v937 = vunpack.c.l.b16 %v121
  %v938 = vunpack.c.h.b16 %v121
  %v939 = vunpack.c.l.b16 %v122
  %v940 = vunpack.c.h.b16 %v122
  %v941 = vunpack.c.l.b16 %v123
  %v942 = vunpack.c.h.b16 %v123
  %v943 = vunpack.c.l.b16 %v124
  %v944 = vunpack.c.h.b16 %v124
  %v945 = vunpack.c.l.b16 %v125
  %v946 = vunpack.c.h.b16 %v125
  %v947 = vunpack.c.l.b16 %v126
  %v948 = vunpack.c.h.b16 %v126
  %v949 = vunpack.c.l.b16 %v127
  %v950 = vunpack.c.h.b16 %v127
  %v951 = vunpack.c.l.b16 %v128
  %v952 = vunpack.c.h.b16 %v128
  %v953 = vunpack.c.l.b16 %v129
  %v954 = vunpack.c.h.b16 %v129
  %v955 = vunpack.c.l.b16 %v130
  %v956 = vunpack.c.h.b16 %v130
  %v957 = vunpack.c.l.b16 %v131
  %v958 = vunpack.c.h.b16 %v131
  %v959 = vunpack.c.l.b16 %v132
  %v960 = vunpack.c.h.b16 %v132
  %v961 = vunpack.c.l.b16 %v133
  %v962 = vunpack.c.h.b16 %v133
  %v963 = vunpack.c.l.b16 %v134
  %v964 = vunpack.c.h.b16 %v134
  %v965 = vunpack.c.l.b16 %v135
  %v966 = vunpack.c.h.b16 %v135
  %v967 = vunpack.c.l.b16 %v136
  %v968 = vunpack.c.h.b16 %v136
  %v969 = vunpack.c.l.b16 %v137
  %v970 = vunpack.c.h.b16 %v137
  %v971 = vunpack.c.l.b16 %v138
  %v972 = vunpack.c.h.b16 %v138
  %v973 = vunpack.c.l.b16 %v139
  %v974 = vunpack.c.h.b16 %v139
  %v975 = vunpack.c.l.b16 %v140
  %v976 = vunpack.c.h.b16 %v140
  %v977 = vunpack.c.l.b16 %v141
  %v978 = vunpack.c.h.b16 %v141
  %v979 = vunpack.c.l.b16 %v142
  %v980 = vunpack.c.h.b16 %v142
  %v981 = vunpack.c.l.b16 %v143
  %v982 = vunpack.c.h.b16 %v143
  %v983 = vunpack.c.l.b16 %v144
  %v984 = vunpack.c.h.b16 %v144
  %v985 = vunpack.c.l.b16 %v145
  %v986 = vunpack.c.h.b16 %v145
  %v987 = vunpack.c.l.b16 %v146
  %v988 = vunpack.c.h.b16 %v146
  %v989 = vunpack.c.l.b16 %v147
  %v990 = vunpack.c.h.b16 %v147
  %v991 = vunpack.c.l.b16 %v148
  %v992 = vunpack.c.h.b16 %v148
  %v993 = vpack.c.b16 %v869, %v865
  %v994 = vpack.c.b16 %v870, %v866
  %v995 = vpack.c.b16 %v871, %v867
  %v996 = vpack.c.b16 %v872, %v868
  %v997 = vpack.c.b16 %v877, %v873
  %v998 = vpack.c.b16 %v878, %v874
  %v999 = vpack.c.b16 %v879, %v875
  %v1000 = vpack.c.b16 %v880, %v876
  %v1001 = vpack.c.b16 %v885, %v881
  %v1002 = vpack.c.b16 %v886, %v882
  %v1003 = vpack.c.b16 %v887, %v883
  %v1004 = vpack.c.b16 %v888, %v884
  %v1005 = vpack.c.b16 %v893, %v889
  %v1006 = vpack.c.b16 %v894, %v890
  %v1007 = vpack.c.b16 %v895, %v891
  %v1008 = vpack.c.b16 %v896, %v892
  %v1009 = vpack.c.b16 %v901, %v897
  %v1010 = vpack.c.b16 %v902, %v898
  %v1011 = vpack.c.b16 %v903, %v899
  %v1012 = vpack.c.b16 %v904, %v900
  %v1013 = vpack.c.b16 %v909, %v905
  %v1014 = vpack.c.b16 %v910, %v906
  %v1015 = vpack.c.b16 %v911, %v907
  %v1016 = vpack.c.b16 %v912, %v908
  %v1017 = vpack.c.b16 %v917, %v913
  %v1018 = vpack.c.b16 %v918, %v914
  %v1019 = vpack.c.b16 %v919, %v915
  %v1020 = vpack.c.b16 %v920, %v916
  %v1021 = vpack.c.b16 %v925, %v921
  %v1022 = vpack.c.b16 %v926, %v922
  %v1023 = vpack.c.b16 %v927, %v923
  %v1024 = vpack.c.b16 %v928, %v924
  %v1025 = vpack.c.b16 %v933, %v929
  %v1026 = vpack.c.b16 %v934, %v930
  %v1027 = vpack.c.b16 %v935, %v931
  %v1028 = vpack.c.b16 %v936, %v932
  %v1029 = vpack.c.b16 %v941, %v937
  %v1030 = vpack.c.b16 %v942, %v938
  %v1031 = vpack.c.b16 %v943, %v939
  %v1032 = vpack.c.b16 %v944, %v940
  %v1033 = vpack.c.b16 %v949, %v945
  %v1034 = vpack.c.b16 %v950, %v946
  %v1035 = vpack.c.b16 %v951, %v947
  %v1036 = vpack.c.b16 %v952, %v948
  %v1037 = vpack.c.b16 %v957, %v953
  %v1038 = vpack.c.b16 %v958, %v954
  %v1039 = vpack.c.b16 %v959, %v955
  %v1040 = vpack.c.b16 %v960, %v956
  %v1041 = vpack.c.b16 %v965, %v961
  %v1042 = vpack.c.b16 %v966, %v962
  %v1043 = vpack.c.b16 %v967, %v963
  %v1044 = vpack.c.b16 %v968, %v964
  %v1045 = vpack.c.b16 %v973, %v969
  %v1046 = vpack.c.b16 %v974, %v970
  %v1047 = vpack.c.b16 %v975, %v971
  %v1048 = vpack.c.b16 %v976, %v972
  %v1049 = vpack.c.b16 %v981, %v977
  %v1050 = vpack.c.b16 %v982, %v978
  %v1051 = vpack.c.b16 %v983, %v979
  %v1052 = vpack.c.b16 %v984, %v980
  %v1053 = vpack.c.b16 %v989, %v985
  %v1054 = vpack.c.b16 %v990, %v986
  %v1055 = vpack.c.b16 %v991, %v987
  %v1056 = vpack.c.b16 %v992, %v988
  %1121 = vmatprep.subr.bf16.mxu0 %v1022
  %1122 = vmatpush1.bf16.msra.mxu0 %v1021
  %1123 = vmatprep.subr.bf16.mxu0 %v1018
  %1124 = vmatpush1.bf16.msra.mxu0 %v1017
  %1125 = vmatprep.subr.bf16.mxu0 %v1014
  %1126 = vmatpush1.bf16.msra.mxu0 %v1013
  %1127 = vmatprep.subr.bf16.mxu0 %v1010
  %1128 = vmatpush1.bf16.msra.mxu0 %v1009
  %1129 = vmatprep.subr.bf16.mxu0 %v1006
  %1130 = vmatpush1.bf16.msra.mxu0 %v1005
  %1131 = vmatprep.subr.bf16.mxu0 %v1002
  %1132 = vmatpush1.bf16.msra.mxu0 %v1001
  %1133 = vmatprep.subr.bf16.mxu0 %v998
  %1134 = vmatpush1.bf16.msra.mxu0 %v997
  %1135 = vmatprep.subr.bf16.mxu0 %v994
  %1136 = vmatpush1.bf16.msra.mxu0 %v993
  %1137 = vmatprep.subr.bf16.mxu0 %v1054
  %1138 = vmatpush2.bf16.msra.mxu0 %v1053
  %1139 = vmatprep.subr.bf16.mxu0 %v1050
  %1140 = vmatpush2.bf16.msra.mxu0 %v1049
  %1141 = vmatprep.subr.bf16.mxu0 %v1046
  %1142 = vmatpush2.bf16.msra.mxu0 %v1045
  %1143 = vmatprep.subr.bf16.mxu0 %v1042
  %1144 = vmatpush2.bf16.msra.mxu0 %v1041
  %1145 = vmatprep.subr.bf16.mxu0 %v1038
  %1146 = vmatpush2.bf16.msra.mxu0 %v1037
  %1147 = vmatprep.subr.bf16.mxu0 %v1034
  %1148 = vmatpush2.bf16.msra.mxu0 %v1033
  %1149 = vmatprep.subr.bf16.mxu0 %v1030
  %1150 = vmatpush2.bf16.msra.mxu0 %v1029
  %1151 = vmatprep.subr.bf16.mxu0 %v1026
  %1152 = vmatpush2.bf16.msra.mxu0 %v1025
  %1153 = vmatprep.mubr.bf16.mxu0 %v777
  %1154 = vmatmul.mubr.bf16.gmra.mxu0 %v776
  %v1155 = vpop.f32.mrf.mxu0
  %v1156 = vadd.f32 %v784, %v1155
  %v1157 = vpop.f32.mrf.mxu0
  %v1158 = vadd.f32 %v788, %v1157
  %v1159 = vpop.f32.mrf.mxu0
  %v1160 = vadd.f32 %v784, %v1159
  %v1161 = vpop.f32.mrf.mxu0
  %v1162 = vadd.f32 %v788, %v1161
  %1163 = vmatprep.mubr.bf16.mxu0 %v779
  %1164 = vmatmul.mubr.bf16.gmra.mxu0 %v778
  %v1165 = vpop.f32.mrf.mxu0
  %v1166 = vadd.f32 %v784, %v1165
  %v1167 = vpop.f32.mrf.mxu0
  %v1168 = vadd.f32 %v788, %v1167
  %v1169 = vpop.f32.mrf.mxu0
  %v1170 = vadd.f32 %v784, %v1169
  %v1171 = vpop.f32.mrf.mxu0
  %v1172 = vadd.f32 %v788, %v1171
  %1173 = vdwg.mxu0
  %1174 = vmatprep.subr.bf16.mxu0 %v1024
  %1175 = vmatpush1.bf16.msra.mxu0 %v1023
  %1176 = vmatprep.subr.bf16.mxu0 %v1020
  %1177 = vmatpush1.bf16.msra.mxu0 %v1019
  %1178 = vmatprep.subr.bf16.mxu0 %v1016
  %1179 = vmatpush1.bf16.msra.mxu0 %v1015
  %1180 = vmatprep.subr.bf16.mxu0 %v1012
  %1181 = vmatpush1.bf16.msra.mxu0 %v1011
  %1182 = vmatprep.subr.bf16.mxu0 %v1008
  %1183 = vmatpush1.bf16.msra.mxu0 %v1007
  %1184 = vmatprep.subr.bf16.mxu0 %v1004
  %1185 = vmatpush1.bf16.msra.mxu0 %v1003
  %1186 = vmatprep.subr.bf16.mxu0 %v1000
  %1187 = vmatpush1.bf16.msra.mxu0 %v999
  %1188 = vmatprep.subr.bf16.mxu0 %v996
  %1189 = vmatpush1.bf16.msra.mxu0 %v995
  %1190 = vmatprep.subr.bf16.mxu0 %v1056
  %1191 = vmatpush2.bf16.msra.mxu0 %v1055
  %1192 = vmatprep.subr.bf16.mxu0 %v1052
  %1193 = vmatpush2.bf16.msra.mxu0 %v1051
  %1194 = vmatprep.subr.bf16.mxu0 %v1048
  %1195 = vmatpush2.bf16.msra.mxu0 %v1047
  %1196 = vmatprep.subr.bf16.mxu0 %v1044
  %1197 = vmatpush2.bf16.msra.mxu0 %v1043
  %1198 = vmatprep.subr.bf16.mxu0 %v1040
  %1199 = vmatpush2.bf16.msra.mxu0 %v1039
  %1200 = vmatprep.subr.bf16.mxu0 %v1036
  %1201 = vmatpush2.bf16.msra.mxu0 %v1035
  %1202 = vmatprep.subr.bf16.mxu0 %v1032
  %1203 = vmatpush2.bf16.msra.mxu0 %v1031
  %1204 = vmatprep.subr.bf16.mxu0 %v1028
  %1205 = vmatpush2.bf16.msra.mxu0 %v1027
  %1206 = vmatprep.mubr.bf16.mxu0 %v777
  %1207 = vmatmul.mubr.bf16.gmra.mxu0 %v776
  %v1208 = vpop.f32.mrf.mxu0
  %v1209 = vadd.f32 %v792, %v1208
  %v1210 = vpop.f32.mrf.mxu0
  %v1211 = vadd.f32 %v796, %v1210
  %v1212 = vpop.f32.mrf.mxu0
  %v1213 = vadd.f32 %v792, %v1212
  %v1214 = vpop.f32.mrf.mxu0
  %v1215 = vadd.f32 %v796, %v1214
  %1216 = vmatprep.mubr.bf16.mxu0 %v779
  %1217 = vmatmul.mubr.bf16.gmra.mxu0 %v778
  %v1218 = vpop.f32.mrf.mxu0
  %v1219 = vadd.f32 %v792, %v1218
  %v1220 = vpop.f32.mrf.mxu0
  %v1221 = vadd.f32 %v796, %v1220
  %v1222 = vpop.f32.mrf.mxu0
  %v1223 = vadd.f32 %v792, %v1222
  %v1224 = vpop.f32.mrf.mxu0
  %v1225 = vadd.f32 %v796, %v1224
  %1226 = vdwg.mxu0
  %v1227 = vadd.f32 %v1156, %v1160
  %v1228 = vadd.f32 %v1227, %v1166
  %v1229 = vadd.f32 %v1228, %v1170
  %v1230 = vrot.slane %v1229, 4
  %v1231 = vadd.f32 %v1229, %v1230
  %v1232 = vrot.slane %v1231, 2
  %v1233 = vadd.f32 %v1231, %v1232
  %v1234 = vrot.slane %v1233, 1
  %v1235 = vadd.f32 %v1233, %v1234
  %v1236 = vadd.f32 %v1158, %v1162
  %v1237 = vadd.f32 %v1236, %v1168
  %v1238 = vadd.f32 %v1237, %v1172
  %v1239 = vrot.slane %v1238, 4
  %v1240 = vadd.f32 %v1238, %v1239
  %v1241 = vrot.slane %v1240, 2
  %v1242 = vadd.f32 %v1240, %v1241
  %v1243 = vrot.slane %v1242, 1
  %v1244 = vadd.f32 %v1242, %v1243
  %v1245 = vadd.f32 %v1209, %v1213
  %v1246 = vadd.f32 %v1245, %v1219
  %v1247 = vadd.f32 %v1246, %v1223
  %v1248 = vrot.slane %v1247, 4
  %v1249 = vadd.f32 %v1247, %v1248
  %v1250 = vrot.slane %v1249, 2
  %v1251 = vadd.f32 %v1249, %v1250
  %v1252 = vrot.slane %v1251, 1
  %v1253 = vadd.f32 %v1251, %v1252
  %v1254 = vadd.f32 %v1211, %v1215
  %v1255 = vadd.f32 %v1254, %v1221
  %v1256 = vadd.f32 %v1255, %v1225
  %v1257 = vrot.slane %v1256, 4
  %v1258 = vadd.f32 %v1256, %v1257
  %v1259 = vrot.slane %v1258, 2
  %v1260 = vadd.f32 %v1258, %v1259
  %v1261 = vrot.slane %v1260, 1
  %v1262 = vadd.f32 %v1260, %v1261
  %v1263 = vmul.f32 %v1235, %v663
  %v1264 = vmul.f32 %v1244, %v663
  %v1265 = vmul.f32 %v1253, %v663
  %v1266 = vmul.f32 %v1262, %v663
  %v1267 = vsub.f32 %v1156, %v1263
  %v1268 = vsub.f32 %v1158, %v1264
  %v1269 = vsub.f32 %v1209, %v1265
  %v1270 = vsub.f32 %v1211, %v1266
  %v1271 = vsub.f32 %v1160, %v1263
  %v1272 = vsub.f32 %v1162, %v1264
  %v1273 = vsub.f32 %v1213, %v1265
  %v1274 = vsub.f32 %v1215, %v1266
  %v1275 = vsub.f32 %v1166, %v1263
  %v1276 = vsub.f32 %v1168, %v1264
  %v1277 = vsub.f32 %v1219, %v1265
  %v1278 = vsub.f32 %v1221, %v1266
  %v1279 = vsub.f32 %v1170, %v1263
  %v1280 = vsub.f32 %v1172, %v1264
  %v1281 = vsub.f32 %v1223, %v1265
  %v1282 = vsub.f32 %v1225, %v1266
  %v1283 = vmul.f32 %v1267, %v1267
  %v1284 = vmul.f32 %v1268, %v1268
  %v1285 = vmul.f32 %v1269, %v1269
  %v1286 = vmul.f32 %v1270, %v1270
  %v1287 = vmul.f32 %v1271, %v1271
  %v1288 = vmul.f32 %v1272, %v1272
  %v1289 = vmul.f32 %v1273, %v1273
  %v1290 = vmul.f32 %v1274, %v1274
  %v1291 = vmul.f32 %v1275, %v1275
  %v1292 = vmul.f32 %v1276, %v1276
  %v1293 = vmul.f32 %v1277, %v1277
  %v1294 = vmul.f32 %v1278, %v1278
  %v1295 = vmul.f32 %v1279, %v1279
  %v1296 = vmul.f32 %v1280, %v1280
  %v1297 = vmul.f32 %v1281, %v1281
  %v1298 = vmul.f32 %v1282, %v1282
  %v1299 = vadd.f32 %v1283, %v1287
  %v1300 = vadd.f32 %v1299, %v1291
  %v1301 = vadd.f32 %v1300, %v1295
  %v1302 = vrot.slane %v1301, 4
  %v1303 = vadd.f32 %v1301, %v1302
  %v1304 = vrot.slane %v1303, 2
  %v1305 = vadd.f32 %v1303, %v1304
  %v1306 = vrot.slane %v1305, 1
  %v1307 = vadd.f32 %v1305, %v1306
  %v1308 = vadd.f32 %v1284, %v1288
  %v1309 = vadd.f32 %v1308, %v1292
  %v1310 = vadd.f32 %v1309, %v1296
  %v1311 = vrot.slane %v1310, 4
  %v1312 = vadd.f32 %v1310, %v1311
  %v1313 = vrot.slane %v1312, 2
  %v1314 = vadd.f32 %v1312, %v1313
  %v1315 = vrot.slane %v1314, 1
  %v1316 = vadd.f32 %v1314, %v1315
  %v1317 = vadd.f32 %v1285, %v1289
  %v1318 = vadd.f32 %v1317, %v1293
  %v1319 = vadd.f32 %v1318, %v1297
  %v1320 = vrot.slane %v1319, 4
  %v1321 = vadd.f32 %v1319, %v1320
  %v1322 = vrot.slane %v1321, 2
  %v1323 = vadd.f32 %v1321, %v1322
  %v1324 = vrot.slane %v1323, 1
  %v1325 = vadd.f32 %v1323, %v1324
  %v1326 = vadd.f32 %v1286, %v1290
  %v1327 = vadd.f32 %v1326, %v1294
  %v1328 = vadd.f32 %v1327, %v1298
  %v1329 = vrot.slane %v1328, 4
  %v1330 = vadd.f32 %v1328, %v1329
  %v1331 = vrot.slane %v1330, 2
  %v1332 = vadd.f32 %v1330, %v1331
  %v1333 = vrot.slane %v1332, 1
  %v1334 = vadd.f32 %v1332, %v1333
  %v1335 = vmul.f32 %v1307, %v663
  %v1336 = vmul.f32 %v1316, %v663
  %v1337 = vmul.f32 %v1325, %v663
  %v1338 = vmul.f32 %v1334, %v663
  %v1339 = vadd.f32 %v1335, 0.8
  %v1340 = vadd.f32 %v1336, 0.8
  %v1341 = vadd.f32 %v1337, 0.8
  %v1342 = vadd.f32 %v1338, 0.8
  %v1343 = vrsqrt.pop %v1339
  %v1344 = vrsqrt.pop %v1340
  %v1345 = vrsqrt.pop %v1341
  %v1346 = vrsqrt.pop %v1342
  %v1347 = vmul.f32 %v1267, %v1343
  %v1348 = vmul.f32 %v1268, %v1344
  %v1349 = vmul.f32 %v1269, %v1345
  %v1350 = vmul.f32 %v1270, %v1346
  %v1351 = vmul.f32 %v1271, %v1343
  %v1352 = vmul.f32 %v1272, %v1344
  %v1353 = vmul.f32 %v1273, %v1345
  %v1354 = vmul.f32 %v1274, %v1346
  %v1355 = vmul.f32 %v1275, %v1343
  %v1356 = vmul.f32 %v1276, %v1344
  %v1357 = vmul.f32 %v1277, %v1345
  %v1358 = vmul.f32 %v1278, %v1346
  %v1359 = vmul.f32 %v1279, %v1343
  %v1360 = vmul.f32 %v1280, %v1344
  %v1361 = vmul.f32 %v1281, %v1345
  %v1362 = vmul.f32 %v1282, %v1346
  %v1364 = vlaneseq
  %v1365 = vshrl.u32 %v1364, 7
  %v1366 = vsub.s32 0, %v1365
  %v1367 = vrot.slane %v150, %v1366
  %v1368 = vlaneseq
  %v1369 = vshrl.u32 %v1368, 7
  %v1370 = vsub.s32 1, %v1369
  %v1371 = vrot.slane %v150, %v1370
  %v1372 = vlaneseq
  %v1373 = vshrl.u32 %v1372, 7
  %v1374 = vsub.s32 2, %v1373
  %v1375 = vrot.slane %v150, %v1374
  %v1376 = vlaneseq
  %v1377 = vshrl.u32 %v1376, 7
  %v1378 = vsub.s32 3, %v1377
  %v1379 = vrot.slane %v150, %v1378
  %v1384 = vmul.f32 %v1347, %v1367
  %v1385 = vmul.f32 %v1348, %v1371
  %v1386 = vmul.f32 %v1349, %v1375
  %v1387 = vmul.f32 %v1350, %v1379
  %v1388 = vmul.f32 %v1351, %v1367
  %v1389 = vmul.f32 %v1352, %v1371
  %v1390 = vmul.f32 %v1353, %v1375
  %v1391 = vmul.f32 %v1354, %v1379
  %v1392 = vmul.f32 %v1355, %v1367
  %v1393 = vmul.f32 %v1356, %v1371
  %v1394 = vmul.f32 %v1357, %v1375
  %v1395 = vmul.f32 %v1358, %v1379
  %v1396 = vmul.f32 %v1359, %v1367
  %v1397 = vmul.f32 %v1360, %v1371
  %v1398 = vmul.f32 %v1361, %v1375
  %v1399 = vmul.f32 %v1362, %v1379
  %v1401 = vlaneseq
  %v1402 = vshrl.u32 %v1401, 7
  %v1403 = vsub.s32 0, %v1402
  %v1404 = vrot.slane %v151, %v1403
  %v1405 = vlaneseq
  %v1406 = vshrl.u32 %v1405, 7
  %v1407 = vsub.s32 1, %v1406
  %v1408 = vrot.slane %v151, %v1407
  %v1409 = vlaneseq
  %v1410 = vshrl.u32 %v1409, 7
  %v1411 = vsub.s32 2, %v1410
  %v1412 = vrot.slane %v151, %v1411
  %v1413 = vlaneseq
  %v1414 = vshrl.u32 %v1413, 7
  %v1415 = vsub.s32 3, %v1414
  %v1416 = vrot.slane %v151, %v1415
  %v1421 = vadd.f32 %v1384, %v1404
  %v1422 = vadd.f32 %v1385, %v1408
  %v1423 = vadd.f32 %v1386, %v1412
  %v1424 = vadd.f32 %v1387, %v1416
  %v1425 = vadd.f32 %v1388, %v1404
  %v1426 = vadd.f32 %v1389, %v1408
  %v1427 = vadd.f32 %v1390, %v1412
  %v1428 = vadd.f32 %v1391, %v1416
  %v1429 = vadd.f32 %v1392, %v1404
  %v1430 = vadd.f32 %v1393, %v1408
  %v1431 = vadd.f32 %v1394, %v1412
  %v1432 = vadd.f32 %v1395, %v1416
  %v1433 = vadd.f32 %v1396, %v1404
  %v1434 = vadd.f32 %v1397, %v1408
  %v1435 = vadd.f32 %v1398, %v1412
  %v1436 = vadd.f32 %v1399, %v1416
  %vm1437 = vcmp.gt.f32.partialorder %v1421, 0.0
  %vm1438 = vcmp.gt.f32.partialorder %v1422, 0.0
  %vm1439 = vcmp.gt.f32.partialorder %v1423, 0.0
  %vm1440 = vcmp.gt.f32.partialorder %v1424, 0.0
  %vm1441 = vcmp.gt.f32.partialorder %v1425, 0.0
  %vm1442 = vcmp.gt.f32.partialorder %v1426, 0.0
  %vm1443 = vcmp.gt.f32.partialorder %v1427, 0.0
  %vm1444 = vcmp.gt.f32.partialorder %v1428, 0.0
  %vm1445 = vcmp.gt.f32.partialorder %v1429, 0.0
  %vm1446 = vcmp.gt.f32.partialorder %v1430, 0.0
  %vm1447 = vcmp.gt.f32.partialorder %v1431, 0.0
  %vm1448 = vcmp.gt.f32.partialorder %v1432, 0.0
  %vm1449 = vcmp.gt.f32.partialorder %v1433, 0.0
  %vm1450 = vcmp.gt.f32.partialorder %v1434, 0.0
  %vm1451 = vcmp.gt.f32.partialorder %v1435, 0.0
  %vm1452 = vcmp.gt.f32.partialorder %v1436, 0.0
  %v1453 = vmul.f32 %v1421, 0.2
  %v1454 = vmul.f32 %v1422, 0.2
  %v1455 = vmul.f32 %v1423, 0.2
  %v1456 = vmul.f32 %v1424, 0.2
  %v1457 = vmul.f32 %v1425, 0.2
  %v1458 = vmul.f32 %v1426, 0.2
  %v1459 = vmul.f32 %v1427, 0.2
  %v1460 = vmul.f32 %v1428, 0.2
  %v1461 = vmul.f32 %v1429, 0.2
  %v1462 = vmul.f32 %v1430, 0.2
  %v1463 = vmul.f32 %v1431, 0.2
  %v1464 = vmul.f32 %v1432, 0.2
  %v1465 = vmul.f32 %v1433, 0.2
  %v1466 = vmul.f32 %v1434, 0.2
  %v1467 = vmul.f32 %v1435, 0.2
  %v1468 = vmul.f32 %v1436, 0.2
  %v1469 = vsel %vm1437, %v1421, %v1453
  %v1470 = vsel %vm1438, %v1422, %v1454
  %v1471 = vsel %vm1439, %v1423, %v1455
  %v1472 = vsel %vm1440, %v1424, %v1456
  %v1473 = vsel %vm1441, %v1425, %v1457
  %v1474 = vsel %vm1442, %v1426, %v1458
  %v1475 = vsel %vm1443, %v1427, %v1459
  %v1476 = vsel %vm1444, %v1428, %v1460
  %v1477 = vsel %vm1445, %v1429, %v1461
  %v1478 = vsel %vm1446, %v1430, %v1462
  %v1479 = vsel %vm1447, %v1431, %v1463
  %v1480 = vsel %vm1448, %v1432, %v1464
  %v1481 = vsel %vm1449, %v1433, %v1465
  %v1482 = vsel %vm1450, %v1434, %v1466
  %v1483 = vsel %vm1451, %v1435, %v1467
  %v1484 = vsel %vm1452, %v1436, %v1468
  %v1485 = vpack.c.bf16 %v1473, %v1469
  %v1486 = vpack.c.bf16 %v1474, %v1470
  %v1487 = vpack.c.bf16 %v1475, %v1471
  %v1488 = vpack.c.bf16 %v1476, %v1472
  %v1489 = vpack.c.bf16 %v1481, %v1477
  %v1490 = vpack.c.bf16 %v1482, %v1478
  %v1491 = vpack.c.bf16 %v1483, %v1479
  %v1492 = vpack.c.bf16 %v1484, %v1480
  %v1494 = vlaneseq
  %v1495 = vshrl.u32 %v1494, 7
  %v1496 = vsub.s32 0, %v1495
  %v1497 = vrot.slane %v408, %v1496
  %v1498 = vlaneseq
  %v1499 = vshrl.u32 %v1498, 7
  %v1500 = vsub.s32 1, %v1499
  %v1501 = vrot.slane %v408, %v1500
  %v1502 = vlaneseq
  %v1503 = vshrl.u32 %v1502, 7
  %v1504 = vsub.s32 2, %v1503
  %v1505 = vrot.slane %v408, %v1504
  %v1506 = vlaneseq
  %v1507 = vshrl.u32 %v1506, 7
  %v1508 = vsub.s32 3, %v1507
  %v1509 = vrot.slane %v408, %v1508
  %v1510 = vlaneseq
  %v1511 = vshrl.u32 %v1510, 7
  %v1512 = vsub.s32 4, %v1511
  %v1513 = vrot.slane %v408, %v1512
  %v1514 = vlaneseq
  %v1515 = vshrl.u32 %v1514, 7
  %v1516 = vsub.s32 5, %v1515
  %v1517 = vrot.slane %v408, %v1516
  %v1518 = vlaneseq
  %v1519 = vshrl.u32 %v1518, 7
  %v1520 = vsub.s32 6, %v1519
  %v1521 = vrot.slane %v408, %v1520
  %v1522 = vlaneseq
  %v1523 = vshrl.u32 %v1522, 7
  %v1524 = vsub.s32 7, %v1523
  %v1525 = vrot.slane %v408, %v1524
  %v1790 = vunpack.c.l.b16 %v152
  %v1791 = vunpack.c.h.b16 %v152
  %v1792 = vunpack.c.l.b16 %v153
  %v1793 = vunpack.c.h.b16 %v153
  %v1794 = vunpack.c.l.b16 %v154
  %v1795 = vunpack.c.h.b16 %v154
  %v1796 = vunpack.c.l.b16 %v155
  %v1797 = vunpack.c.h.b16 %v155
  %v1798 = vunpack.c.l.b16 %v156
  %v1799 = vunpack.c.h.b16 %v156
  %v1800 = vunpack.c.l.b16 %v157
  %v1801 = vunpack.c.h.b16 %v157
  %v1802 = vunpack.c.l.b16 %v158
  %v1803 = vunpack.c.h.b16 %v158
  %v1804 = vunpack.c.l.b16 %v159
  %v1805 = vunpack.c.h.b16 %v159
  %v1806 = vunpack.c.l.b16 %v160
  %v1807 = vunpack.c.h.b16 %v160
  %v1808 = vunpack.c.l.b16 %v161
  %v1809 = vunpack.c.h.b16 %v161
  %v1810 = vunpack.c.l.b16 %v162
  %v1811 = vunpack.c.h.b16 %v162
  %v1812 = vunpack.c.l.b16 %v163
  %v1813 = vunpack.c.h.b16 %v163
  %v1814 = vunpack.c.l.b16 %v164
  %v1815 = vunpack.c.h.b16 %v164
  %v1816 = vunpack.c.l.b16 %v165
  %v1817 = vunpack.c.h.b16 %v165
  %v1818 = vunpack.c.l.b16 %v166
  %v1819 = vunpack.c.h.b16 %v166
  %v1820 = vunpack.c.l.b16 %v167
  %v1821 = vunpack.c.h.b16 %v167
  %v1822 = vunpack.c.l.b16 %v168
  %v1823 = vunpack.c.h.b16 %v168
  %v1824 = vunpack.c.l.b16 %v169
  %v1825 = vunpack.c.h.b16 %v169
  %v1826 = vunpack.c.l.b16 %v170
  %v1827 = vunpack.c.h.b16 %v170
  %v1828 = vunpack.c.l.b16 %v171
  %v1829 = vunpack.c.h.b16 %v171
  %v1830 = vunpack.c.l.b16 %v172
  %v1831 = vunpack.c.h.b16 %v172
  %v1832 = vunpack.c.l.b16 %v173
  %v1833 = vunpack.c.h.b16 %v173
  %v1834 = vunpack.c.l.b16 %v174
  %v1835 = vunpack.c.h.b16 %v174
  %v1836 = vunpack.c.l.b16 %v175
  %v1837 = vunpack.c.h.b16 %v175
  %v1838 = vunpack.c.l.b16 %v176
  %v1839 = vunpack.c.h.b16 %v176
  %v1840 = vunpack.c.l.b16 %v177
  %v1841 = vunpack.c.h.b16 %v177
  %v1842 = vunpack.c.l.b16 %v178
  %v1843 = vunpack.c.h.b16 %v178
  %v1844 = vunpack.c.l.b16 %v179
  %v1845 = vunpack.c.h.b16 %v179
  %v1846 = vunpack.c.l.b16 %v180
  %v1847 = vunpack.c.h.b16 %v180
  %v1848 = vunpack.c.l.b16 %v181
  %v1849 = vunpack.c.h.b16 %v181
  %v1850 = vunpack.c.l.b16 %v182
  %v1851 = vunpack.c.h.b16 %v182
  %v1852 = vunpack.c.l.b16 %v183
  %v1853 = vunpack.c.h.b16 %v183
  %v1854 = vunpack.c.l.b16 %v184
  %v1855 = vunpack.c.h.b16 %v184
  %v1856 = vunpack.c.l.b16 %v185
  %v1857 = vunpack.c.h.b16 %v185
  %v1858 = vunpack.c.l.b16 %v186
  %v1859 = vunpack.c.h.b16 %v186
  %v1860 = vunpack.c.l.b16 %v187
  %v1861 = vunpack.c.h.b16 %v187
  %v1862 = vunpack.c.l.b16 %v188
  %v1863 = vunpack.c.h.b16 %v188
  %v1864 = vunpack.c.l.b16 %v189
  %v1865 = vunpack.c.h.b16 %v189
  %v1866 = vunpack.c.l.b16 %v190
  %v1867 = vunpack.c.h.b16 %v190
  %v1868 = vunpack.c.l.b16 %v191
  %v1869 = vunpack.c.h.b16 %v191
  %v1870 = vunpack.c.l.b16 %v192
  %v1871 = vunpack.c.h.b16 %v192
  %v1872 = vunpack.c.l.b16 %v193
  %v1873 = vunpack.c.h.b16 %v193
  %v1874 = vunpack.c.l.b16 %v194
  %v1875 = vunpack.c.h.b16 %v194
  %v1876 = vunpack.c.l.b16 %v195
  %v1877 = vunpack.c.h.b16 %v195
  %v1878 = vunpack.c.l.b16 %v196
  %v1879 = vunpack.c.h.b16 %v196
  %v1880 = vunpack.c.l.b16 %v197
  %v1881 = vunpack.c.h.b16 %v197
  %v1882 = vunpack.c.l.b16 %v198
  %v1883 = vunpack.c.h.b16 %v198
  %v1884 = vunpack.c.l.b16 %v199
  %v1885 = vunpack.c.h.b16 %v199
  %v1886 = vunpack.c.l.b16 %v200
  %v1887 = vunpack.c.h.b16 %v200
  %v1888 = vunpack.c.l.b16 %v201
  %v1889 = vunpack.c.h.b16 %v201
  %v1890 = vunpack.c.l.b16 %v202
  %v1891 = vunpack.c.h.b16 %v202
  %v1892 = vunpack.c.l.b16 %v203
  %v1893 = vunpack.c.h.b16 %v203
  %v1894 = vunpack.c.l.b16 %v204
  %v1895 = vunpack.c.h.b16 %v204
  %v1896 = vunpack.c.l.b16 %v205
  %v1897 = vunpack.c.h.b16 %v205
  %v1898 = vunpack.c.l.b16 %v206
  %v1899 = vunpack.c.h.b16 %v206
  %v1900 = vunpack.c.l.b16 %v207
  %v1901 = vunpack.c.h.b16 %v207
  %v1902 = vunpack.c.l.b16 %v208
  %v1903 = vunpack.c.h.b16 %v208
  %v1904 = vunpack.c.l.b16 %v209
  %v1905 = vunpack.c.h.b16 %v209
  %v1906 = vunpack.c.l.b16 %v210
  %v1907 = vunpack.c.h.b16 %v210
  %v1908 = vunpack.c.l.b16 %v211
  %v1909 = vunpack.c.h.b16 %v211
  %v1910 = vunpack.c.l.b16 %v212
  %v1911 = vunpack.c.h.b16 %v212
  %v1912 = vunpack.c.l.b16 %v213
  %v1913 = vunpack.c.h.b16 %v213
  %v1914 = vunpack.c.l.b16 %v214
  %v1915 = vunpack.c.h.b16 %v214
  %v1916 = vunpack.c.l.b16 %v215
  %v1917 = vunpack.c.h.b16 %v215
  %v1918 = vunpack.c.l.b16 %v216
  %v1919 = vunpack.c.h.b16 %v216
  %v1920 = vunpack.c.l.b16 %v217
  %v1921 = vunpack.c.h.b16 %v217
  %v1922 = vunpack.c.l.b16 %v218
  %v1923 = vunpack.c.h.b16 %v218
  %v1924 = vunpack.c.l.b16 %v219
  %v1925 = vunpack.c.h.b16 %v219
  %v1926 = vunpack.c.l.b16 %v220
  %v1927 = vunpack.c.h.b16 %v220
  %v1928 = vunpack.c.l.b16 %v221
  %v1929 = vunpack.c.h.b16 %v221
  %v1930 = vunpack.c.l.b16 %v222
  %v1931 = vunpack.c.h.b16 %v222
  %v1932 = vunpack.c.l.b16 %v223
  %v1933 = vunpack.c.h.b16 %v223
  %v1934 = vunpack.c.l.b16 %v224
  %v1935 = vunpack.c.h.b16 %v224
  %v1936 = vunpack.c.l.b16 %v225
  %v1937 = vunpack.c.h.b16 %v225
  %v1938 = vunpack.c.l.b16 %v226
  %v1939 = vunpack.c.h.b16 %v226
  %v1940 = vunpack.c.l.b16 %v227
  %v1941 = vunpack.c.h.b16 %v227
  %v1942 = vunpack.c.l.b16 %v228
  %v1943 = vunpack.c.h.b16 %v228
  %v1944 = vunpack.c.l.b16 %v229
  %v1945 = vunpack.c.h.b16 %v229
  %v1946 = vunpack.c.l.b16 %v230
  %v1947 = vunpack.c.h.b16 %v230
  %v1948 = vunpack.c.l.b16 %v231
  %v1949 = vunpack.c.h.b16 %v231
  %v1950 = vunpack.c.l.b16 %v232
  %v1951 = vunpack.c.h.b16 %v232
  %v1952 = vunpack.c.l.b16 %v233
  %v1953 = vunpack.c.h.b16 %v233
  %v1954 = vunpack.c.l.b16 %v234
  %v1955 = vunpack.c.h.b16 %v234
  %v1956 = vunpack.c.l.b16 %v235
  %v1957 = vunpack.c.h.b16 %v235
  %v1958 = vunpack.c.l.b16 %v236
  %v1959 = vunpack.c.h.b16 %v236
  %v1960 = vunpack.c.l.b16 %v237
  %v1961 = vunpack.c.h.b16 %v237
  %v1962 = vunpack.c.l.b16 %v238
  %v1963 = vunpack.c.h.b16 %v238
  %v1964 = vunpack.c.l.b16 %v239
  %v1965 = vunpack.c.h.b16 %v239
  %v1966 = vunpack.c.l.b16 %v240
  %v1967 = vunpack.c.h.b16 %v240
  %v1968 = vunpack.c.l.b16 %v241
  %v1969 = vunpack.c.h.b16 %v241
  %v1970 = vunpack.c.l.b16 %v242
  %v1971 = vunpack.c.h.b16 %v242
  %v1972 = vunpack.c.l.b16 %v243
  %v1973 = vunpack.c.h.b16 %v243
  %v1974 = vunpack.c.l.b16 %v244
  %v1975 = vunpack.c.h.b16 %v244
  %v1976 = vunpack.c.l.b16 %v245
  %v1977 = vunpack.c.h.b16 %v245
  %v1978 = vunpack.c.l.b16 %v246
  %v1979 = vunpack.c.h.b16 %v246
  %v1980 = vunpack.c.l.b16 %v247
  %v1981 = vunpack.c.h.b16 %v247
  %v1982 = vunpack.c.l.b16 %v248
  %v1983 = vunpack.c.h.b16 %v248
  %v1984 = vunpack.c.l.b16 %v249
  %v1985 = vunpack.c.h.b16 %v249
  %v1986 = vunpack.c.l.b16 %v250
  %v1987 = vunpack.c.h.b16 %v250
  %v1988 = vunpack.c.l.b16 %v251
  %v1989 = vunpack.c.h.b16 %v251
  %v1990 = vunpack.c.l.b16 %v252
  %v1991 = vunpack.c.h.b16 %v252
  %v1992 = vunpack.c.l.b16 %v253
  %v1993 = vunpack.c.h.b16 %v253
  %v1994 = vunpack.c.l.b16 %v254
  %v1995 = vunpack.c.h.b16 %v254
  %v1996 = vunpack.c.l.b16 %v255
  %v1997 = vunpack.c.h.b16 %v255
  %v1998 = vunpack.c.l.b16 %v256
  %v1999 = vunpack.c.h.b16 %v256
  %v2000 = vunpack.c.l.b16 %v257
  %v2001 = vunpack.c.h.b16 %v257
  %v2002 = vunpack.c.l.b16 %v258
  %v2003 = vunpack.c.h.b16 %v258
  %v2004 = vunpack.c.l.b16 %v259
  %v2005 = vunpack.c.h.b16 %v259
  %v2006 = vunpack.c.l.b16 %v260
  %v2007 = vunpack.c.h.b16 %v260
  %v2008 = vunpack.c.l.b16 %v261
  %v2009 = vunpack.c.h.b16 %v261
  %v2010 = vunpack.c.l.b16 %v262
  %v2011 = vunpack.c.h.b16 %v262
  %v2012 = vunpack.c.l.b16 %v263
  %v2013 = vunpack.c.h.b16 %v263
  %v2014 = vunpack.c.l.b16 %v264
  %v2015 = vunpack.c.h.b16 %v264
  %v2016 = vunpack.c.l.b16 %v265
  %v2017 = vunpack.c.h.b16 %v265
  %v2018 = vunpack.c.l.b16 %v266
  %v2019 = vunpack.c.h.b16 %v266
  %v2020 = vunpack.c.l.b16 %v267
  %v2021 = vunpack.c.h.b16 %v267
  %v2022 = vunpack.c.l.b16 %v268
  %v2023 = vunpack.c.h.b16 %v268
  %v2024 = vunpack.c.l.b16 %v269
  %v2025 = vunpack.c.h.b16 %v269
  %v2026 = vunpack.c.l.b16 %v270
  %v2027 = vunpack.c.h.b16 %v270
  %v2028 = vunpack.c.l.b16 %v271
  %v2029 = vunpack.c.h.b16 %v271
  %v2030 = vunpack.c.l.b16 %v272
  %v2031 = vunpack.c.h.b16 %v272
  %v2032 = vunpack.c.l.b16 %v273
  %v2033 = vunpack.c.h.b16 %v273
  %v2034 = vunpack.c.l.b16 %v274
  %v2035 = vunpack.c.h.b16 %v274
  %v2036 = vunpack.c.l.b16 %v275
  %v2037 = vunpack.c.h.b16 %v275
  %v2038 = vunpack.c.l.b16 %v276
  %v2039 = vunpack.c.h.b16 %v276
  %v2040 = vunpack.c.l.b16 %v277
  %v2041 = vunpack.c.h.b16 %v277
  %v2042 = vunpack.c.l.b16 %v278
  %v2043 = vunpack.c.h.b16 %v278
  %v2044 = vunpack.c.l.b16 %v279
  %v2045 = vunpack.c.h.b16 %v279
  %v2046 = vunpack.c.l.b16 %v280
  %v2047 = vunpack.c.h.b16 %v280
  %v2048 = vunpack.c.l.b16 %v281
  %v2049 = vunpack.c.h.b16 %v281
  %v2050 = vunpack.c.l.b16 %v282
  %v2051 = vunpack.c.h.b16 %v282
  %v2052 = vunpack.c.l.b16 %v283
  %v2053 = vunpack.c.h.b16 %v283
  %v2054 = vunpack.c.l.b16 %v284
  %v2055 = vunpack.c.h.b16 %v284
  %v2056 = vunpack.c.l.b16 %v285
  %v2057 = vunpack.c.h.b16 %v285
  %v2058 = vunpack.c.l.b16 %v286
  %v2059 = vunpack.c.h.b16 %v286
  %v2060 = vunpack.c.l.b16 %v287
  %v2061 = vunpack.c.h.b16 %v287
  %v2062 = vunpack.c.l.b16 %v288
  %v2063 = vunpack.c.h.b16 %v288
  %v2064 = vunpack.c.l.b16 %v289
  %v2065 = vunpack.c.h.b16 %v289
  %v2066 = vunpack.c.l.b16 %v290
  %v2067 = vunpack.c.h.b16 %v290
  %v2068 = vunpack.c.l.b16 %v291
  %v2069 = vunpack.c.h.b16 %v291
  %v2070 = vunpack.c.l.b16 %v292
  %v2071 = vunpack.c.h.b16 %v292
  %v2072 = vunpack.c.l.b16 %v293
  %v2073 = vunpack.c.h.b16 %v293
  %v2074 = vunpack.c.l.b16 %v294
  %v2075 = vunpack.c.h.b16 %v294
  %v2076 = vunpack.c.l.b16 %v295
  %v2077 = vunpack.c.h.b16 %v295
  %v2078 = vunpack.c.l.b16 %v296
  %v2079 = vunpack.c.h.b16 %v296
  %v2080 = vunpack.c.l.b16 %v297
  %v2081 = vunpack.c.h.b16 %v297
  %v2082 = vunpack.c.l.b16 %v298
  %v2083 = vunpack.c.h.b16 %v298
  %v2084 = vunpack.c.l.b16 %v299
  %v2085 = vunpack.c.h.b16 %v299
  %v2086 = vunpack.c.l.b16 %v300
  %v2087 = vunpack.c.h.b16 %v300
  %v2088 = vunpack.c.l.b16 %v301
  %v2089 = vunpack.c.h.b16 %v301
  %v2090 = vunpack.c.l.b16 %v302
  %v2091 = vunpack.c.h.b16 %v302
  %v2092 = vunpack.c.l.b16 %v303
  %v2093 = vunpack.c.h.b16 %v303
  %v2094 = vunpack.c.l.b16 %v304
  %v2095 = vunpack.c.h.b16 %v304
  %v2096 = vunpack.c.l.b16 %v305
  %v2097 = vunpack.c.h.b16 %v305
  %v2098 = vunpack.c.l.b16 %v306
  %v2099 = vunpack.c.h.b16 %v306
  %v2100 = vunpack.c.l.b16 %v307
  %v2101 = vunpack.c.h.b16 %v307
  %v2102 = vunpack.c.l.b16 %v308
  %v2103 = vunpack.c.h.b16 %v308
  %v2104 = vunpack.c.l.b16 %v309
  %v2105 = vunpack.c.h.b16 %v309
  %v2106 = vunpack.c.l.b16 %v310
  %v2107 = vunpack.c.h.b16 %v310
  %v2108 = vunpack.c.l.b16 %v311
  %v2109 = vunpack.c.h.b16 %v311
  %v2110 = vunpack.c.l.b16 %v312
  %v2111 = vunpack.c.h.b16 %v312
  %v2112 = vunpack.c.l.b16 %v313
  %v2113 = vunpack.c.h.b16 %v313
  %v2114 = vunpack.c.l.b16 %v314
  %v2115 = vunpack.c.h.b16 %v314
  %v2116 = vunpack.c.l.b16 %v315
  %v2117 = vunpack.c.h.b16 %v315
  %v2118 = vunpack.c.l.b16 %v316
  %v2119 = vunpack.c.h.b16 %v316
  %v2120 = vunpack.c.l.b16 %v317
  %v2121 = vunpack.c.h.b16 %v317
  %v2122 = vunpack.c.l.b16 %v318
  %v2123 = vunpack.c.h.b16 %v318
  %v2124 = vunpack.c.l.b16 %v319
  %v2125 = vunpack.c.h.b16 %v319
  %v2126 = vunpack.c.l.b16 %v320
  %v2127 = vunpack.c.h.b16 %v320
  %v2128 = vunpack.c.l.b16 %v321
  %v2129 = vunpack.c.h.b16 %v321
  %v2130 = vunpack.c.l.b16 %v322
  %v2131 = vunpack.c.h.b16 %v322
  %v2132 = vunpack.c.l.b16 %v323
  %v2133 = vunpack.c.h.b16 %v323
  %v2134 = vunpack.c.l.b16 %v324
  %v2135 = vunpack.c.h.b16 %v324
  %v2136 = vunpack.c.l.b16 %v325
  %v2137 = vunpack.c.h.b16 %v325
  %v2138 = vunpack.c.l.b16 %v326
  %v2139 = vunpack.c.h.b16 %v326
  %v2140 = vunpack.c.l.b16 %v327
  %v2141 = vunpack.c.h.b16 %v327
  %v2142 = vunpack.c.l.b16 %v328
  %v2143 = vunpack.c.h.b16 %v328
  %v2144 = vunpack.c.l.b16 %v329
  %v2145 = vunpack.c.h.b16 %v329
  %v2146 = vunpack.c.l.b16 %v330
  %v2147 = vunpack.c.h.b16 %v330
  %v2148 = vunpack.c.l.b16 %v331
  %v2149 = vunpack.c.h.b16 %v331
  %v2150 = vunpack.c.l.b16 %v332
  %v2151 = vunpack.c.h.b16 %v332
  %v2152 = vunpack.c.l.b16 %v333
  %v2153 = vunpack.c.h.b16 %v333
  %v2154 = vunpack.c.l.b16 %v334
  %v2155 = vunpack.c.h.b16 %v334
  %v2156 = vunpack.c.l.b16 %v335
  %v2157 = vunpack.c.h.b16 %v335
  %v2158 = vunpack.c.l.b16 %v336
  %v2159 = vunpack.c.h.b16 %v336
  %v2160 = vunpack.c.l.b16 %v337
  %v2161 = vunpack.c.h.b16 %v337
  %v2162 = vunpack.c.l.b16 %v338
  %v2163 = vunpack.c.h.b16 %v338
  %v2164 = vunpack.c.l.b16 %v339
  %v2165 = vunpack.c.h.b16 %v339
  %v2166 = vunpack.c.l.b16 %v340
  %v2167 = vunpack.c.h.b16 %v340
  %v2168 = vunpack.c.l.b16 %v341
  %v2169 = vunpack.c.h.b16 %v341
  %v2170 = vunpack.c.l.b16 %v342
  %v2171 = vunpack.c.h.b16 %v342
  %v2172 = vunpack.c.l.b16 %v343
  %v2173 = vunpack.c.h.b16 %v343
  %v2174 = vunpack.c.l.b16 %v344
  %v2175 = vunpack.c.h.b16 %v344
  %v2176 = vunpack.c.l.b16 %v345
  %v2177 = vunpack.c.h.b16 %v345
  %v2178 = vunpack.c.l.b16 %v346
  %v2179 = vunpack.c.h.b16 %v346
  %v2180 = vunpack.c.l.b16 %v347
  %v2181 = vunpack.c.h.b16 %v347
  %v2182 = vunpack.c.l.b16 %v348
  %v2183 = vunpack.c.h.b16 %v348
  %v2184 = vunpack.c.l.b16 %v349
  %v2185 = vunpack.c.h.b16 %v349
  %v2186 = vunpack.c.l.b16 %v350
  %v2187 = vunpack.c.h.b16 %v350
  %v2188 = vunpack.c.l.b16 %v351
  %v2189 = vunpack.c.h.b16 %v351
  %v2190 = vunpack.c.l.b16 %v352
  %v2191 = vunpack.c.h.b16 %v352
  %v2192 = vunpack.c.l.b16 %v353
  %v2193 = vunpack.c.h.b16 %v353
  %v2194 = vunpack.c.l.b16 %v354
  %v2195 = vunpack.c.h.b16 %v354
  %v2196 = vunpack.c.l.b16 %v355
  %v2197 = vunpack.c.h.b16 %v355
  %v2198 = vunpack.c.l.b16 %v356
  %v2199 = vunpack.c.h.b16 %v356
  %v2200 = vunpack.c.l.b16 %v357
  %v2201 = vunpack.c.h.b16 %v357
  %v2202 = vunpack.c.l.b16 %v358
  %v2203 = vunpack.c.h.b16 %v358
  %v2204 = vunpack.c.l.b16 %v359
  %v2205 = vunpack.c.h.b16 %v359
  %v2206 = vunpack.c.l.b16 %v360
  %v2207 = vunpack.c.h.b16 %v360
  %v2208 = vunpack.c.l.b16 %v361
  %v2209 = vunpack.c.h.b16 %v361
  %v2210 = vunpack.c.l.b16 %v362
  %v2211 = vunpack.c.h.b16 %v362
  %v2212 = vunpack.c.l.b16 %v363
  %v2213 = vunpack.c.h.b16 %v363
  %v2214 = vunpack.c.l.b16 %v364
  %v2215 = vunpack.c.h.b16 %v364
  %v2216 = vunpack.c.l.b16 %v365
  %v2217 = vunpack.c.h.b16 %v365
  %v2218 = vunpack.c.l.b16 %v366
  %v2219 = vunpack.c.h.b16 %v366
  %v2220 = vunpack.c.l.b16 %v367
  %v2221 = vunpack.c.h.b16 %v367
  %v2222 = vunpack.c.l.b16 %v368
  %v2223 = vunpack.c.h.b16 %v368
  %v2224 = vunpack.c.l.b16 %v369
  %v2225 = vunpack.c.h.b16 %v369
  %v2226 = vunpack.c.l.b16 %v370
  %v2227 = vunpack.c.h.b16 %v370
  %v2228 = vunpack.c.l.b16 %v371
  %v2229 = vunpack.c.h.b16 %v371
  %v2230 = vunpack.c.l.b16 %v372
  %v2231 = vunpack.c.h.b16 %v372
  %v2232 = vunpack.c.l.b16 %v373
  %v2233 = vunpack.c.h.b16 %v373
  %v2234 = vunpack.c.l.b16 %v374
  %v2235 = vunpack.c.h.b16 %v374
  %v2236 = vunpack.c.l.b16 %v375
  %v2237 = vunpack.c.h.b16 %v375
  %v2238 = vunpack.c.l.b16 %v376
  %v2239 = vunpack.c.h.b16 %v376
  %v2240 = vunpack.c.l.b16 %v377
  %v2241 = vunpack.c.h.b16 %v377
  %v2242 = vunpack.c.l.b16 %v378
  %v2243 = vunpack.c.h.b16 %v378
  %v2244 = vunpack.c.l.b16 %v379
  %v2245 = vunpack.c.h.b16 %v379
  %v2246 = vunpack.c.l.b16 %v380
  %v2247 = vunpack.c.h.b16 %v380
  %v2248 = vunpack.c.l.b16 %v381
  %v2249 = vunpack.c.h.b16 %v381
  %v2250 = vunpack.c.l.b16 %v382
  %v2251 = vunpack.c.h.b16 %v382
  %v2252 = vunpack.c.l.b16 %v383
  %v2253 = vunpack.c.h.b16 %v383
  %v2254 = vunpack.c.l.b16 %v384
  %v2255 = vunpack.c.h.b16 %v384
  %v2256 = vunpack.c.l.b16 %v385
  %v2257 = vunpack.c.h.b16 %v385
  %v2258 = vunpack.c.l.b16 %v386
  %v2259 = vunpack.c.h.b16 %v386
  %v2260 = vunpack.c.l.b16 %v387
  %v2261 = vunpack.c.h.b16 %v387
  %v2262 = vunpack.c.l.b16 %v388
  %v2263 = vunpack.c.h.b16 %v388
  %v2264 = vunpack.c.l.b16 %v389
  %v2265 = vunpack.c.h.b16 %v389
  %v2266 = vunpack.c.l.b16 %v390
  %v2267 = vunpack.c.h.b16 %v390
  %v2268 = vunpack.c.l.b16 %v391
  %v2269 = vunpack.c.h.b16 %v391
  %v2270 = vunpack.c.l.b16 %v392
  %v2271 = vunpack.c.h.b16 %v392
  %v2272 = vunpack.c.l.b16 %v393
  %v2273 = vunpack.c.h.b16 %v393
  %v2274 = vunpack.c.l.b16 %v394
  %v2275 = vunpack.c.h.b16 %v394
  %v2276 = vunpack.c.l.b16 %v395
  %v2277 = vunpack.c.h.b16 %v395
  %v2278 = vunpack.c.l.b16 %v396
  %v2279 = vunpack.c.h.b16 %v396
  %v2280 = vunpack.c.l.b16 %v397
  %v2281 = vunpack.c.h.b16 %v397
  %v2282 = vunpack.c.l.b16 %v398
  %v2283 = vunpack.c.h.b16 %v398
  %v2284 = vunpack.c.l.b16 %v399
  %v2285 = vunpack.c.h.b16 %v399
  %v2286 = vunpack.c.l.b16 %v400
  %v2287 = vunpack.c.h.b16 %v400
  %v2288 = vunpack.c.l.b16 %v401
  %v2289 = vunpack.c.h.b16 %v401
  %v2290 = vunpack.c.l.b16 %v402
  %v2291 = vunpack.c.h.b16 %v402
  %v2292 = vunpack.c.l.b16 %v403
  %v2293 = vunpack.c.h.b16 %v403
  %v2294 = vunpack.c.l.b16 %v404
  %v2295 = vunpack.c.h.b16 %v404
  %v2296 = vunpack.c.l.b16 %v405
  %v2297 = vunpack.c.h.b16 %v405
  %v2298 = vunpack.c.l.b16 %v406
  %v2299 = vunpack.c.h.b16 %v406
  %v2300 = vunpack.c.l.b16 %v407
  %v2301 = vunpack.c.h.b16 %v407
  %v2302 = vpack.c.b16 %v1798, %v1790
  %v2303 = vpack.c.b16 %v1799, %v1791
  %v2304 = vpack.c.b16 %v1800, %v1792
  %v2305 = vpack.c.b16 %v1801, %v1793
  %v2306 = vpack.c.b16 %v1802, %v1794
  %v2307 = vpack.c.b16 %v1803, %v1795
  %v2308 = vpack.c.b16 %v1804, %v1796
  %v2309 = vpack.c.b16 %v1805, %v1797
  %v2310 = vpack.c.b16 %v1814, %v1806
  %v2311 = vpack.c.b16 %v1815, %v1807
  %v2312 = vpack.c.b16 %v1816, %v1808
  %v2313 = vpack.c.b16 %v1817, %v1809
  %v2314 = vpack.c.b16 %v1818, %v1810
  %v2315 = vpack.c.b16 %v1819, %v1811
  %v2316 = vpack.c.b16 %v1820, %v1812
  %v2317 = vpack.c.b16 %v1821, %v1813
  %v2318 = vpack.c.b16 %v1830, %v1822
  %v2319 = vpack.c.b16 %v1831, %v1823
  %v2320 = vpack.c.b16 %v1832, %v1824
  %v2321 = vpack.c.b16 %v1833, %v1825
  %v2322 = vpack.c.b16 %v1834, %v1826
  %v2323 = vpack.c.b16 %v1835, %v1827
  %v2324 = vpack.c.b16 %v1836, %v1828
  %v2325 = vpack.c.b16 %v1837, %v1829
  %v2326 = vpack.c.b16 %v1846, %v1838
  %v2327 = vpack.c.b16 %v1847, %v1839
  %v2328 = vpack.c.b16 %v1848, %v1840
  %v2329 = vpack.c.b16 %v1849, %v1841
  %v2330 = vpack.c.b16 %v1850, %v1842
  %v2331 = vpack.c.b16 %v1851, %v1843
  %v2332 = vpack.c.b16 %v1852, %v1844
  %v2333 = vpack.c.b16 %v1853, %v1845
  %v2334 = vpack.c.b16 %v1862, %v1854
  %v2335 = vpack.c.b16 %v1863, %v1855
  %v2336 = vpack.c.b16 %v1864, %v1856
  %v2337 = vpack.c.b16 %v1865, %v1857
  %v2338 = vpack.c.b16 %v1866, %v1858
  %v2339 = vpack.c.b16 %v1867, %v1859
  %v2340 = vpack.c.b16 %v1868, %v1860
  %v2341 = vpack.c.b16 %v1869, %v1861
  %v2342 = vpack.c.b16 %v1878, %v1870
  %v2343 = vpack.c.b16 %v1879, %v1871
  %v2344 = vpack.c.b16 %v1880, %v1872
  %v2345 = vpack.c.b16 %v1881, %v1873
  %v2346 = vpack.c.b16 %v1882, %v1874
  %v2347 = vpack.c.b16 %v1883, %v1875
  %v2348 = vpack.c.b16 %v1884, %v1876
  %v2349 = vpack.c.b16 %v1885, %v1877
  %v2350 = vpack.c.b16 %v1894, %v1886
  %v2351 = vpack.c.b16 %v1895, %v1887
  %v2352 = vpack.c.b16 %v1896, %v1888
  %v2353 = vpack.c.b16 %v1897, %v1889
  %v2354 = vpack.c.b16 %v1898, %v1890
  %v2355 = vpack.c.b16 %v1899, %v1891
  %v2356 = vpack.c.b16 %v1900, %v1892
  %v2357 = vpack.c.b16 %v1901, %v1893
  %v2358 = vpack.c.b16 %v1910, %v1902
  %v2359 = vpack.c.b16 %v1911, %v1903
  %v2360 = vpack.c.b16 %v1912, %v1904
  %v2361 = vpack.c.b16 %v1913, %v1905
  %v2362 = vpack.c.b16 %v1914, %v1906
  %v2363 = vpack.c.b16 %v1915, %v1907
  %v2364 = vpack.c.b16 %v1916, %v1908
  %v2365 = vpack.c.b16 %v1917, %v1909
  %v2366 = vpack.c.b16 %v1926, %v1918
  %v2367 = vpack.c.b16 %v1927, %v1919
  %v2368 = vpack.c.b16 %v1928, %v1920
  %v2369 = vpack.c.b16 %v1929, %v1921
  %v2370 = vpack.c.b16 %v1930, %v1922
  %v2371 = vpack.c.b16 %v1931, %v1923
  %v2372 = vpack.c.b16 %v1932, %v1924
  %v2373 = vpack.c.b16 %v1933, %v1925
  %v2374 = vpack.c.b16 %v1942, %v1934
  %v2375 = vpack.c.b16 %v1943, %v1935
  %v2376 = vpack.c.b16 %v1944, %v1936
  %v2377 = vpack.c.b16 %v1945, %v1937
  %v2378 = vpack.c.b16 %v1946, %v1938
  %v2379 = vpack.c.b16 %v1947, %v1939
  %v2380 = vpack.c.b16 %v1948, %v1940
  %v2381 = vpack.c.b16 %v1949, %v1941
  %v2382 = vpack.c.b16 %v1958, %v1950
  %v2383 = vpack.c.b16 %v1959, %v1951
  %v2384 = vpack.c.b16 %v1960, %v1952
  %v2385 = vpack.c.b16 %v1961, %v1953
  %v2386 = vpack.c.b16 %v1962, %v1954
  %v2387 = vpack.c.b16 %v1963, %v1955
  %v2388 = vpack.c.b16 %v1964, %v1956
  %v2389 = vpack.c.b16 %v1965, %v1957
  %v2390 = vpack.c.b16 %v1974, %v1966
  %v2391 = vpack.c.b16 %v1975, %v1967
  %v2392 = vpack.c.b16 %v1976, %v1968
  %v2393 = vpack.c.b16 %v1977, %v1969
  %v2394 = vpack.c.b16 %v1978, %v1970
  %v2395 = vpack.c.b16 %v1979, %v1971
  %v2396 = vpack.c.b16 %v1980, %v1972
  %v2397 = vpack.c.b16 %v1981, %v1973
  %v2398 = vpack.c.b16 %v1990, %v1982
  %v2399 = vpack.c.b16 %v1991, %v1983
  %v2400 = vpack.c.b16 %v1992, %v1984
  %v2401 = vpack.c.b16 %v1993, %v1985
  %v2402 = vpack.c.b16 %v1994, %v1986
  %v2403 = vpack.c.b16 %v1995, %v1987
  %v2404 = vpack.c.b16 %v1996, %v1988
  %v2405 = vpack.c.b16 %v1997, %v1989
  %v2406 = vpack.c.b16 %v2006, %v1998
  %v2407 = vpack.c.b16 %v2007, %v1999
  %v2408 = vpack.c.b16 %v2008, %v2000
  %v2409 = vpack.c.b16 %v2009, %v2001
  %v2410 = vpack.c.b16 %v2010, %v2002
  %v2411 = vpack.c.b16 %v2011, %v2003
  %v2412 = vpack.c.b16 %v2012, %v2004
  %v2413 = vpack.c.b16 %v2013, %v2005
  %v2414 = vpack.c.b16 %v2022, %v2014
  %v2415 = vpack.c.b16 %v2023, %v2015
  %v2416 = vpack.c.b16 %v2024, %v2016
  %v2417 = vpack.c.b16 %v2025, %v2017
  %v2418 = vpack.c.b16 %v2026, %v2018
  %v2419 = vpack.c.b16 %v2027, %v2019
  %v2420 = vpack.c.b16 %v2028, %v2020
  %v2421 = vpack.c.b16 %v2029, %v2021
  %v2422 = vpack.c.b16 %v2038, %v2030
  %v2423 = vpack.c.b16 %v2039, %v2031
  %v2424 = vpack.c.b16 %v2040, %v2032
  %v2425 = vpack.c.b16 %v2041, %v2033
  %v2426 = vpack.c.b16 %v2042, %v2034
  %v2427 = vpack.c.b16 %v2043, %v2035
  %v2428 = vpack.c.b16 %v2044, %v2036
  %v2429 = vpack.c.b16 %v2045, %v2037
  %v2430 = vpack.c.b16 %v2054, %v2046
  %v2431 = vpack.c.b16 %v2055, %v2047
  %v2432 = vpack.c.b16 %v2056, %v2048
  %v2433 = vpack.c.b16 %v2057, %v2049
  %v2434 = vpack.c.b16 %v2058, %v2050
  %v2435 = vpack.c.b16 %v2059, %v2051
  %v2436 = vpack.c.b16 %v2060, %v2052
  %v2437 = vpack.c.b16 %v2061, %v2053
  %v2438 = vpack.c.b16 %v2070, %v2062
  %v2439 = vpack.c.b16 %v2071, %v2063
  %v2440 = vpack.c.b16 %v2072, %v2064
  %v2441 = vpack.c.b16 %v2073, %v2065
  %v2442 = vpack.c.b16 %v2074, %v2066
  %v2443 = vpack.c.b16 %v2075, %v2067
  %v2444 = vpack.c.b16 %v2076, %v2068
  %v2445 = vpack.c.b16 %v2077, %v2069
  %v2446 = vpack.c.b16 %v2086, %v2078
  %v2447 = vpack.c.b16 %v2087, %v2079
  %v2448 = vpack.c.b16 %v2088, %v2080
  %v2449 = vpack.c.b16 %v2089, %v2081
  %v2450 = vpack.c.b16 %v2090, %v2082
  %v2451 = vpack.c.b16 %v2091, %v2083
  %v2452 = vpack.c.b16 %v2092, %v2084
  %v2453 = vpack.c.b16 %v2093, %v2085
  %v2454 = vpack.c.b16 %v2102, %v2094
  %v2455 = vpack.c.b16 %v2103, %v2095
  %v2456 = vpack.c.b16 %v2104, %v2096
  %v2457 = vpack.c.b16 %v2105, %v2097
  %v2458 = vpack.c.b16 %v2106, %v2098
  %v2459 = vpack.c.b16 %v2107, %v2099
  %v2460 = vpack.c.b16 %v2108, %v2100
  %v2461 = vpack.c.b16 %v2109, %v2101
  %v2462 = vpack.c.b16 %v2118, %v2110
  %v2463 = vpack.c.b16 %v2119, %v2111
  %v2464 = vpack.c.b16 %v2120, %v2112
  %v2465 = vpack.c.b16 %v2121, %v2113
  %v2466 = vpack.c.b16 %v2122, %v2114
  %v2467 = vpack.c.b16 %v2123, %v2115
  %v2468 = vpack.c.b16 %v2124, %v2116
  %v2469 = vpack.c.b16 %v2125, %v2117
  %v2470 = vpack.c.b16 %v2134, %v2126
  %v2471 = vpack.c.b16 %v2135, %v2127
  %v2472 = vpack.c.b16 %v2136, %v2128
  %v2473 = vpack.c.b16 %v2137, %v2129
  %v2474 = vpack.c.b16 %v2138, %v2130
  %v2475 = vpack.c.b16 %v2139, %v2131
  %v2476 = vpack.c.b16 %v2140, %v2132
  %v2477 = vpack.c.b16 %v2141, %v2133
  %v2478 = vpack.c.b16 %v2150, %v2142
  %v2479 = vpack.c.b16 %v2151, %v2143
  %v2480 = vpack.c.b16 %v2152, %v2144
  %v2481 = vpack.c.b16 %v2153, %v2145
  %v2482 = vpack.c.b16 %v2154, %v2146
  %v2483 = vpack.c.b16 %v2155, %v2147
  %v2484 = vpack.c.b16 %v2156, %v2148
  %v2485 = vpack.c.b16 %v2157, %v2149
  %v2486 = vpack.c.b16 %v2166, %v2158
  %v2487 = vpack.c.b16 %v2167, %v2159
  %v2488 = vpack.c.b16 %v2168, %v2160
  %v2489 = vpack.c.b16 %v2169, %v2161
  %v2490 = vpack.c.b16 %v2170, %v2162
  %v2491 = vpack.c.b16 %v2171, %v2163
  %v2492 = vpack.c.b16 %v2172, %v2164
  %v2493 = vpack.c.b16 %v2173, %v2165
  %v2494 = vpack.c.b16 %v2182, %v2174
  %v2495 = vpack.c.b16 %v2183, %v2175
  %v2496 = vpack.c.b16 %v2184, %v2176
  %v2497 = vpack.c.b16 %v2185, %v2177
  %v2498 = vpack.c.b16 %v2186, %v2178
  %v2499 = vpack.c.b16 %v2187, %v2179
  %v2500 = vpack.c.b16 %v2188, %v2180
  %v2501 = vpack.c.b16 %v2189, %v2181
  %v2502 = vpack.c.b16 %v2198, %v2190
  %v2503 = vpack.c.b16 %v2199, %v2191
  %v2504 = vpack.c.b16 %v2200, %v2192
  %v2505 = vpack.c.b16 %v2201, %v2193
  %v2506 = vpack.c.b16 %v2202, %v2194
  %v2507 = vpack.c.b16 %v2203, %v2195
  %v2508 = vpack.c.b16 %v2204, %v2196
  %v2509 = vpack.c.b16 %v2205, %v2197
  %v2510 = vpack.c.b16 %v2214, %v2206
  %v2511 = vpack.c.b16 %v2215, %v2207
  %v2512 = vpack.c.b16 %v2216, %v2208
  %v2513 = vpack.c.b16 %v2217, %v2209
  %v2514 = vpack.c.b16 %v2218, %v2210
  %v2515 = vpack.c.b16 %v2219, %v2211
  %v2516 = vpack.c.b16 %v2220, %v2212
  %v2517 = vpack.c.b16 %v2221, %v2213
  %v2518 = vpack.c.b16 %v2230, %v2222
  %v2519 = vpack.c.b16 %v2231, %v2223
  %v2520 = vpack.c.b16 %v2232, %v2224
  %v2521 = vpack.c.b16 %v2233, %v2225
  %v2522 = vpack.c.b16 %v2234, %v2226
  %v2523 = vpack.c.b16 %v2235, %v2227
  %v2524 = vpack.c.b16 %v2236, %v2228
  %v2525 = vpack.c.b16 %v2237, %v2229
  %v2526 = vpack.c.b16 %v2246, %v2238
  %v2527 = vpack.c.b16 %v2247, %v2239
  %v2528 = vpack.c.b16 %v2248, %v2240
  %v2529 = vpack.c.b16 %v2249, %v2241
  %v2530 = vpack.c.b16 %v2250, %v2242
  %v2531 = vpack.c.b16 %v2251, %v2243
  %v2532 = vpack.c.b16 %v2252, %v2244
  %v2533 = vpack.c.b16 %v2253, %v2245
  %v2534 = vpack.c.b16 %v2262, %v2254
  %v2535 = vpack.c.b16 %v2263, %v2255
  %v2536 = vpack.c.b16 %v2264, %v2256
  %v2537 = vpack.c.b16 %v2265, %v2257
  %v2538 = vpack.c.b16 %v2266, %v2258
  %v2539 = vpack.c.b16 %v2267, %v2259
  %v2540 = vpack.c.b16 %v2268, %v2260
  %v2541 = vpack.c.b16 %v2269, %v2261
  %v2542 = vpack.c.b16 %v2278, %v2270
  %v2543 = vpack.c.b16 %v2279, %v2271
  %v2544 = vpack.c.b16 %v2280, %v2272
  %v2545 = vpack.c.b16 %v2281, %v2273
  %v2546 = vpack.c.b16 %v2282, %v2274
  %v2547 = vpack.c.b16 %v2283, %v2275
  %v2548 = vpack.c.b16 %v2284, %v2276
  %v2549 = vpack.c.b16 %v2285, %v2277
  %v2550 = vpack.c.b16 %v2294, %v2286
  %v2551 = vpack.c.b16 %v2295, %v2287
  %v2552 = vpack.c.b16 %v2296, %v2288
  %v2553 = vpack.c.b16 %v2297, %v2289
  %v2554 = vpack.c.b16 %v2298, %v2290
  %v2555 = vpack.c.b16 %v2299, %v2291
  %v2556 = vpack.c.b16 %v2300, %v2292
  %v2557 = vpack.c.b16 %v2301, %v2293
  %2814 = vmatprep.subr.bf16.mxu0 %v2359
  %2815 = vmatpush1.bf16.msra.mxu0 %v2358
  %2816 = vmatprep.subr.bf16.mxu0 %v2351
  %2817 = vmatpush1.bf16.msra.mxu0 %v2350
  %2818 = vmatprep.subr.bf16.mxu0 %v2343
  %2819 = vmatpush1.bf16.msra.mxu0 %v2342
  %2820 = vmatprep.subr.bf16.mxu0 %v2335
  %2821 = vmatpush1.bf16.msra.mxu0 %v2334
  %2822 = vmatprep.subr.bf16.mxu0 %v2327
  %2823 = vmatpush1.bf16.msra.mxu0 %v2326
  %2824 = vmatprep.subr.bf16.mxu0 %v2319
  %2825 = vmatpush1.bf16.msra.mxu0 %v2318
  %2826 = vmatprep.subr.bf16.mxu0 %v2311
  %2827 = vmatpush1.bf16.msra.mxu0 %v2310
  %2828 = vmatprep.subr.bf16.mxu0 %v2303
  %2829 = vmatpush1.bf16.msra.mxu0 %v2302
  %2830 = vmatprep.subr.bf16.mxu0 %v2423
  %2831 = vmatpush2.bf16.msra.mxu0 %v2422
  %2832 = vmatprep.subr.bf16.mxu0 %v2415
  %2833 = vmatpush2.bf16.msra.mxu0 %v2414
  %2834 = vmatprep.subr.bf16.mxu0 %v2407
  %2835 = vmatpush2.bf16.msra.mxu0 %v2406
  %2836 = vmatprep.subr.bf16.mxu0 %v2399
  %2837 = vmatpush2.bf16.msra.mxu0 %v2398
  %2838 = vmatprep.subr.bf16.mxu0 %v2391
  %2839 = vmatpush2.bf16.msra.mxu0 %v2390
  %2840 = vmatprep.subr.bf16.mxu0 %v2383
  %2841 = vmatpush2.bf16.msra.mxu0 %v2382
  %2842 = vmatprep.subr.bf16.mxu0 %v2375
  %2843 = vmatpush2.bf16.msra.mxu0 %v2374
  %2844 = vmatprep.subr.bf16.mxu0 %v2367
  %2845 = vmatpush2.bf16.msra.mxu0 %v2366
  %2846 = vmatprep.mubr.bf16.mxu0 %v1486
  %2847 = vmatmul.mubr.bf16.gmra.mxu0 %v1485
  %v2848 = vpop.f32.mrf.mxu0
  %v2849 = vadd.f32 %v1497, %v2848
  %v2850 = vpop.f32.mrf.mxu0
  %v2851 = vadd.f32 %v1501, %v2850
  %v2852 = vpop.f32.mrf.mxu0
  %v2853 = vadd.f32 %v1497, %v2852
  %v2854 = vpop.f32.mrf.mxu0
  %v2855 = vadd.f32 %v1501, %v2854
  %2856 = vmatprep.mubr.bf16.mxu0 %v1490
  %2857 = vmatmul.mubr.bf16.gmra.mxu0 %v1489
  %v2858 = vpop.f32.mrf.mxu0
  %v2859 = vadd.f32 %v1497, %v2858
  %v2860 = vpop.f32.mrf.mxu0
  %v2861 = vadd.f32 %v1501, %v2860
  %v2862 = vpop.f32.mrf.mxu0
  %v2863 = vadd.f32 %v1497, %v2862
  %v2864 = vpop.f32.mrf.mxu0
  %v2865 = vadd.f32 %v1501, %v2864
  %2866 = vdwg.mxu0
  %2867 = vmatprep.subr.bf16.mxu0 %v2487
  %2868 = vmatpush1.bf16.msra.mxu0 %v2486
  %2869 = vmatprep.subr.bf16.mxu0 %v2479
  %2870 = vmatpush1.bf16.msra.mxu0 %v2478
  %2871 = vmatprep.subr.bf16.mxu0 %v2471
  %2872 = vmatpush1.bf16.msra.mxu0 %v2470
  %2873 = vmatprep.subr.bf16.mxu0 %v2463
  %2874 = vmatpush1.bf16.msra.mxu0 %v2462
  %2875 = vmatprep.subr.bf16.mxu0 %v2455
  %2876 = vmatpush1.bf16.msra.mxu0 %v2454
  %2877 = vmatprep.subr.bf16.mxu0 %v2447
  %2878 = vmatpush1.bf16.msra.mxu0 %v2446
  %2879 = vmatprep.subr.bf16.mxu0 %v2439
  %2880 = vmatpush1.bf16.msra.mxu0 %v2438
  %2881 = vmatprep.subr.bf16.mxu0 %v2431
  %2882 = vmatpush1.bf16.msra.mxu0 %v2430
  %2883 = vmatprep.subr.bf16.mxu0 %v2551
  %2884 = vmatpush2.bf16.msra.mxu0 %v2550
  %2885 = vmatprep.subr.bf16.mxu0 %v2543
  %2886 = vmatpush2.bf16.msra.mxu0 %v2542
  %2887 = vmatprep.subr.bf16.mxu0 %v2535
  %2888 = vmatpush2.bf16.msra.mxu0 %v2534
  %2889 = vmatprep.subr.bf16.mxu0 %v2527
  %2890 = vmatpush2.bf16.msra.mxu0 %v2526
  %2891 = vmatprep.subr.bf16.mxu0 %v2519
  %2892 = vmatpush2.bf16.msra.mxu0 %v2518
  %2893 = vmatprep.subr.bf16.mxu0 %v2511
  %2894 = vmatpush2.bf16.msra.mxu0 %v2510
  %2895 = vmatprep.subr.bf16.mxu0 %v2503
  %2896 = vmatpush2.bf16.msra.mxu0 %v2502
  %2897 = vmatprep.subr.bf16.mxu0 %v2495
  %2898 = vmatpush2.bf16.msra.mxu0 %v2494
  %2899 = vmatprep.mubr.bf16.mxu0 %v1488
  %2900 = vmatmul.mubr.bf16.gmra.mxu0 %v1487
  %v2901 = vpop.f32.mrf.mxu0
  %v2902 = vadd.f32 %v2849, %v2901
  %v2903 = vpop.f32.mrf.mxu0
  %v2904 = vadd.f32 %v2851, %v2903
  %v2905 = vpop.f32.mrf.mxu0
  %v2906 = vadd.f32 %v2853, %v2905
  %v2907 = vpop.f32.mrf.mxu0
  %v2908 = vadd.f32 %v2855, %v2907
  %2909 = vmatprep.mubr.bf16.mxu0 %v1492
  %2910 = vmatmul.mubr.bf16.gmra.mxu0 %v1491
  %v2911 = vpop.f32.mrf.mxu0
  %v2912 = vadd.f32 %v2859, %v2911
  %v2913 = vpop.f32.mrf.mxu0
  %v2914 = vadd.f32 %v2861, %v2913
  %v2915 = vpop.f32.mrf.mxu0
  %v2916 = vadd.f32 %v2863, %v2915
  %v2917 = vpop.f32.mrf.mxu0
  %v2918 = vadd.f32 %v2865, %v2917
  %2919 = vdwg.mxu0
  %2920 = vmatprep.subr.bf16.mxu0 %v2361
  %2921 = vmatpush1.bf16.msra.mxu0 %v2360
  %2922 = vmatprep.subr.bf16.mxu0 %v2353
  %2923 = vmatpush1.bf16.msra.mxu0 %v2352
  %2924 = vmatprep.subr.bf16.mxu0 %v2345
  %2925 = vmatpush1.bf16.msra.mxu0 %v2344
  %2926 = vmatprep.subr.bf16.mxu0 %v2337
  %2927 = vmatpush1.bf16.msra.mxu0 %v2336
  %2928 = vmatprep.subr.bf16.mxu0 %v2329
  %2929 = vmatpush1.bf16.msra.mxu0 %v2328
  %2930 = vmatprep.subr.bf16.mxu0 %v2321
  %2931 = vmatpush1.bf16.msra.mxu0 %v2320
  %2932 = vmatprep.subr.bf16.mxu0 %v2313
  %2933 = vmatpush1.bf16.msra.mxu0 %v2312
  %2934 = vmatprep.subr.bf16.mxu0 %v2305
  %2935 = vmatpush1.bf16.msra.mxu0 %v2304
  %2936 = vmatprep.subr.bf16.mxu0 %v2425
  %2937 = vmatpush2.bf16.msra.mxu0 %v2424
  %2938 = vmatprep.subr.bf16.mxu0 %v2417
  %2939 = vmatpush2.bf16.msra.mxu0 %v2416
  %2940 = vmatprep.subr.bf16.mxu0 %v2409
  %2941 = vmatpush2.bf16.msra.mxu0 %v2408
  %2942 = vmatprep.subr.bf16.mxu0 %v2401
  %2943 = vmatpush2.bf16.msra.mxu0 %v2400
  %2944 = vmatprep.subr.bf16.mxu0 %v2393
  %2945 = vmatpush2.bf16.msra.mxu0 %v2392
  %2946 = vmatprep.subr.bf16.mxu0 %v2385
  %2947 = vmatpush2.bf16.msra.mxu0 %v2384
  %2948 = vmatprep.subr.bf16.mxu0 %v2377
  %2949 = vmatpush2.bf16.msra.mxu0 %v2376
  %2950 = vmatprep.subr.bf16.mxu0 %v2369
  %2951 = vmatpush2.bf16.msra.mxu0 %v2368
  %2952 = vmatprep.mubr.bf16.mxu0 %v1486
  %2953 = vmatmul.mubr.bf16.gmra.mxu0 %v1485
  %v2954 = vpop.f32.mrf.mxu0
  %v2955 = vadd.f32 %v1505, %v2954
  %v2956 = vpop.f32.mrf.mxu0
  %v2957 = vadd.f32 %v1509, %v2956
  %v2958 = vpop.f32.mrf.mxu0
  %v2959 = vadd.f32 %v1505, %v2958
  %v2960 = vpop.f32.mrf.mxu0
  %v2961 = vadd.f32 %v1509, %v2960
  %2962 = vmatprep.mubr.bf16.mxu0 %v1490
  %2963 = vmatmul.mubr.bf16.gmra.mxu0 %v1489
  %v2964 = vpop.f32.mrf.mxu0
  %v2965 = vadd.f32 %v1505, %v2964
  %v2966 = vpop.f32.mrf.mxu0
  %v2967 = vadd.f32 %v1509, %v2966
  %v2968 = vpop.f32.mrf.mxu0
  %v2969 = vadd.f32 %v1505, %v2968
  %v2970 = vpop.f32.mrf.mxu0
  %v2971 = vadd.f32 %v1509, %v2970
  %2972 = vdwg.mxu0
  %2973 = vmatprep.subr.bf16.mxu0 %v2489
  %2974 = vmatpush1.bf16.msra.mxu0 %v2488
  %2975 = vmatprep.subr.bf16.mxu0 %v2481
  %2976 = vmatpush1.bf16.msra.mxu0 %v2480
  %2977 = vmatprep.subr.bf16.mxu0 %v2473
  %2978 = vmatpush1.bf16.msra.mxu0 %v2472
  %2979 = vmatprep.subr.bf16.mxu0 %v2465
  %2980 = vmatpush1.bf16.msra.mxu0 %v2464
  %2981 = vmatprep.subr.bf16.mxu0 %v2457
  %2982 = vmatpush1.bf16.msra.mxu0 %v2456
  %2983 = vmatprep.subr.bf16.mxu0 %v2449
  %2984 = vmatpush1.bf16.msra.mxu0 %v2448
  %2985 = vmatprep.subr.bf16.mxu0 %v2441
  %2986 = vmatpush1.bf16.msra.mxu0 %v2440
  %2987 = vmatprep.subr.bf16.mxu0 %v2433
  %2988 = vmatpush1.bf16.msra.mxu0 %v2432
  %2989 = vmatprep.subr.bf16.mxu0 %v2553
  %2990 = vmatpush2.bf16.msra.mxu0 %v2552
  %2991 = vmatprep.subr.bf16.mxu0 %v2545
  %2992 = vmatpush2.bf16.msra.mxu0 %v2544
  %2993 = vmatprep.subr.bf16.mxu0 %v2537
  %2994 = vmatpush2.bf16.msra.mxu0 %v2536
  %2995 = vmatprep.subr.bf16.mxu0 %v2529
  %2996 = vmatpush2.bf16.msra.mxu0 %v2528
  %2997 = vmatprep.subr.bf16.mxu0 %v2521
  %2998 = vmatpush2.bf16.msra.mxu0 %v2520
  %2999 = vmatprep.subr.bf16.mxu0 %v2513
  %3000 = vmatpush2.bf16.msra.mxu0 %v2512
  %3001 = vmatprep.subr.bf16.mxu0 %v2505
  %3002 = vmatpush2.bf16.msra.mxu0 %v2504
  %3003 = vmatprep.subr.bf16.mxu0 %v2497
  %3004 = vmatpush2.bf16.msra.mxu0 %v2496
  %3005 = vmatprep.mubr.bf16.mxu0 %v1488
  %3006 = vmatmul.mubr.bf16.gmra.mxu0 %v1487
  %v3007 = vpop.f32.mrf.mxu0
  %v3008 = vadd.f32 %v2955, %v3007
  %v3009 = vpop.f32.mrf.mxu0
  %v3010 = vadd.f32 %v2957, %v3009
  %v3011 = vpop.f32.mrf.mxu0
  %v3012 = vadd.f32 %v2959, %v3011
  %v3013 = vpop.f32.mrf.mxu0
  %v3014 = vadd.f32 %v2961, %v3013
  %3015 = vmatprep.mubr.bf16.mxu0 %v1492
  %3016 = vmatmul.mubr.bf16.gmra.mxu0 %v1491
  %v3017 = vpop.f32.mrf.mxu0
  %v3018 = vadd.f32 %v2965, %v3017
  %v3019 = vpop.f32.mrf.mxu0
  %v3020 = vadd.f32 %v2967, %v3019
  %v3021 = vpop.f32.mrf.mxu0
  %v3022 = vadd.f32 %v2969, %v3021
  %v3023 = vpop.f32.mrf.mxu0
  %v3024 = vadd.f32 %v2971, %v3023
  %3025 = vdwg.mxu0
  %3026 = vmatprep.subr.bf16.mxu0 %v2363
  %3027 = vmatpush1.bf16.msra.mxu0 %v2362
  %3028 = vmatprep.subr.bf16.mxu0 %v2355
  %3029 = vmatpush1.bf16.msra.mxu0 %v2354
  %3030 = vmatprep.subr.bf16.mxu0 %v2347
  %3031 = vmatpush1.bf16.msra.mxu0 %v2346
  %3032 = vmatprep.subr.bf16.mxu0 %v2339
  %3033 = vmatpush1.bf16.msra.mxu0 %v2338
  %3034 = vmatprep.subr.bf16.mxu0 %v2331
  %3035 = vmatpush1.bf16.msra.mxu0 %v2330
  %3036 = vmatprep.subr.bf16.mxu0 %v2323
  %3037 = vmatpush1.bf16.msra.mxu0 %v2322
  %3038 = vmatprep.subr.bf16.mxu0 %v2315
  %3039 = vmatpush1.bf16.msra.mxu0 %v2314
  %3040 = vmatprep.subr.bf16.mxu0 %v2307
  %3041 = vmatpush1.bf16.msra.mxu0 %v2306
  %3042 = vmatprep.subr.bf16.mxu0 %v2427
  %3043 = vmatpush2.bf16.msra.mxu0 %v2426
  %3044 = vmatprep.subr.bf16.mxu0 %v2419
  %3045 = vmatpush2.bf16.msra.mxu0 %v2418
  %3046 = vmatprep.subr.bf16.mxu0 %v2411
  %3047 = vmatpush2.bf16.msra.mxu0 %v2410
  %3048 = vmatprep.subr.bf16.mxu0 %v2403
  %3049 = vmatpush2.bf16.msra.mxu0 %v2402
  %3050 = vmatprep.subr.bf16.mxu0 %v2395
  %3051 = vmatpush2.bf16.msra.mxu0 %v2394
  %3052 = vmatprep.subr.bf16.mxu0 %v2387
  %3053 = vmatpush2.bf16.msra.mxu0 %v2386
  %3054 = vmatprep.subr.bf16.mxu0 %v2379
  %3055 = vmatpush2.bf16.msra.mxu0 %v2378
  %3056 = vmatprep.subr.bf16.mxu0 %v2371
  %3057 = vmatpush2.bf16.msra.mxu0 %v2370
  %3058 = vmatprep.mubr.bf16.mxu0 %v1486
  %3059 = vmatmul.mubr.bf16.gmra.mxu0 %v1485
  %v3060 = vpop.f32.mrf.mxu0
  %v3061 = vadd.f32 %v1513, %v3060
  %v3062 = vpop.f32.mrf.mxu0
  %v3063 = vadd.f32 %v1517, %v3062
  %v3064 = vpop.f32.mrf.mxu0
  %v3065 = vadd.f32 %v1513, %v3064
  %v3066 = vpop.f32.mrf.mxu0
  %v3067 = vadd.f32 %v1517, %v3066
  %3068 = vmatprep.mubr.bf16.mxu0 %v1490
  %3069 = vmatmul.mubr.bf16.gmra.mxu0 %v1489
  %v3070 = vpop.f32.mrf.mxu0
  %v3071 = vadd.f32 %v1513, %v3070
  %v3072 = vpop.f32.mrf.mxu0
  %v3073 = vadd.f32 %v1517, %v3072
  %v3074 = vpop.f32.mrf.mxu0
  %v3075 = vadd.f32 %v1513, %v3074
  %v3076 = vpop.f32.mrf.mxu0
  %v3077 = vadd.f32 %v1517, %v3076
  %3078 = vdwg.mxu0
  %3079 = vmatprep.subr.bf16.mxu0 %v2491
  %3080 = vmatpush1.bf16.msra.mxu0 %v2490
  %3081 = vmatprep.subr.bf16.mxu0 %v2483
  %3082 = vmatpush1.bf16.msra.mxu0 %v2482
  %3083 = vmatprep.subr.bf16.mxu0 %v2475
  %3084 = vmatpush1.bf16.msra.mxu0 %v2474
  %3085 = vmatprep.subr.bf16.mxu0 %v2467
  %3086 = vmatpush1.bf16.msra.mxu0 %v2466
  %3087 = vmatprep.subr.bf16.mxu0 %v2459
  %3088 = vmatpush1.bf16.msra.mxu0 %v2458
  %3089 = vmatprep.subr.bf16.mxu0 %v2451
  %3090 = vmatpush1.bf16.msra.mxu0 %v2450
  %3091 = vmatprep.subr.bf16.mxu0 %v2443
  %3092 = vmatpush1.bf16.msra.mxu0 %v2442
  %3093 = vmatprep.subr.bf16.mxu0 %v2435
  %3094 = vmatpush1.bf16.msra.mxu0 %v2434
  %3095 = vmatprep.subr.bf16.mxu0 %v2555
  %3096 = vmatpush2.bf16.msra.mxu0 %v2554
  %3097 = vmatprep.subr.bf16.mxu0 %v2547
  %3098 = vmatpush2.bf16.msra.mxu0 %v2546
  %3099 = vmatprep.subr.bf16.mxu0 %v2539
  %3100 = vmatpush2.bf16.msra.mxu0 %v2538
  %3101 = vmatprep.subr.bf16.mxu0 %v2531
  %3102 = vmatpush2.bf16.msra.mxu0 %v2530
  %3103 = vmatprep.subr.bf16.mxu0 %v2523
  %3104 = vmatpush2.bf16.msra.mxu0 %v2522
  %3105 = vmatprep.subr.bf16.mxu0 %v2515
  %3106 = vmatpush2.bf16.msra.mxu0 %v2514
  %3107 = vmatprep.subr.bf16.mxu0 %v2507
  %3108 = vmatpush2.bf16.msra.mxu0 %v2506
  %3109 = vmatprep.subr.bf16.mxu0 %v2499
  %3110 = vmatpush2.bf16.msra.mxu0 %v2498
  %3111 = vmatprep.mubr.bf16.mxu0 %v1488
  %3112 = vmatmul.mubr.bf16.gmra.mxu0 %v1487
  %v3113 = vpop.f32.mrf.mxu0
  %v3114 = vadd.f32 %v3061, %v3113
  %v3115 = vpop.f32.mrf.mxu0
  %v3116 = vadd.f32 %v3063, %v3115
  %v3117 = vpop.f32.mrf.mxu0
  %v3118 = vadd.f32 %v3065, %v3117
  %v3119 = vpop.f32.mrf.mxu0
  %v3120 = vadd.f32 %v3067, %v3119
  %3121 = vmatprep.mubr.bf16.mxu0 %v1492
  %3122 = vmatmul.mubr.bf16.gmra.mxu0 %v1491
  %v3123 = vpop.f32.mrf.mxu0
  %v3124 = vadd.f32 %v3071, %v3123
  %v3125 = vpop.f32.mrf.mxu0
  %v3126 = vadd.f32 %v3073, %v3125
  %v3127 = vpop.f32.mrf.mxu0
  %v3128 = vadd.f32 %v3075, %v3127
  %v3129 = vpop.f32.mrf.mxu0
  %v3130 = vadd.f32 %v3077, %v3129
  %3131 = vdwg.mxu0
  %3132 = vmatprep.subr.bf16.mxu0 %v2365
  %3133 = vmatpush1.bf16.msra.mxu0 %v2364
  %3134 = vmatprep.subr.bf16.mxu0 %v2357
  %3135 = vmatpush1.bf16.msra.mxu0 %v2356
  %3136 = vmatprep.subr.bf16.mxu0 %v2349
  %3137 = vmatpush1.bf16.msra.mxu0 %v2348
  %3138 = vmatprep.subr.bf16.mxu0 %v2341
  %3139 = vmatpush1.bf16.msra.mxu0 %v2340
  %3140 = vmatprep.subr.bf16.mxu0 %v2333
  %3141 = vmatpush1.bf16.msra.mxu0 %v2332
  %3142 = vmatprep.subr.bf16.mxu0 %v2325
  %3143 = vmatpush1.bf16.msra.mxu0 %v2324
  %3144 = vmatprep.subr.bf16.mxu0 %v2317
  %3145 = vmatpush1.bf16.msra.mxu0 %v2316
  %3146 = vmatprep.subr.bf16.mxu0 %v2309
  %3147 = vmatpush1.bf16.msra.mxu0 %v2308
  %3148 = vmatprep.subr.bf16.mxu0 %v2429
  %3149 = vmatpush2.bf16.msra.mxu0 %v2428
  %3150 = vmatprep.subr.bf16.mxu0 %v2421
  %3151 = vmatpush2.bf16.msra.mxu0 %v2420
  %3152 = vmatprep.subr.bf16.mxu0 %v2413
  %3153 = vmatpush2.bf16.msra.mxu0 %v2412
  %3154 = vmatprep.subr.bf16.mxu0 %v2405
  %3155 = vmatpush2.bf16.msra.mxu0 %v2404
  %3156 = vmatprep.subr.bf16.mxu0 %v2397
  %3157 = vmatpush2.bf16.msra.mxu0 %v2396
  %3158 = vmatprep.subr.bf16.mxu0 %v2389
  %3159 = vmatpush2.bf16.msra.mxu0 %v2388
  %3160 = vmatprep.subr.bf16.mxu0 %v2381
  %3161 = vmatpush2.bf16.msra.mxu0 %v2380
  %3162 = vmatprep.subr.bf16.mxu0 %v2373
  %3163 = vmatpush2.bf16.msra.mxu0 %v2372
  %3164 = vmatprep.mubr.bf16.mxu0 %v1486
  %3165 = vmatmul.mubr.bf16.gmra.mxu0 %v1485
  %v3166 = vpop.f32.mrf.mxu0
  %v3167 = vadd.f32 %v1521, %v3166
  %v3168 = vpop.f32.mrf.mxu0
  %v3169 = vadd.f32 %v1525, %v3168
  %v3170 = vpop.f32.mrf.mxu0
  %v3171 = vadd.f32 %v1521, %v3170
  %v3172 = vpop.f32.mrf.mxu0
  %v3173 = vadd.f32 %v1525, %v3172
  %3174 = vmatprep.mubr.bf16.mxu0 %v1490
  %3175 = vmatmul.mubr.bf16.gmra.mxu0 %v1489
  %v3176 = vpop.f32.mrf.mxu0
  %v3177 = vadd.f32 %v1521, %v3176
  %v3178 = vpop.f32.mrf.mxu0
  %v3179 = vadd.f32 %v1525, %v3178
  %v3180 = vpop.f32.mrf.mxu0
  %v3181 = vadd.f32 %v1521, %v3180
  %v3182 = vpop.f32.mrf.mxu0
  %v3183 = vadd.f32 %v1525, %v3182
  %3184 = vdwg.mxu0
  %3185 = vmatprep.subr.bf16.mxu0 %v2493
  %3186 = vmatpush1.bf16.msra.mxu0 %v2492
  %3187 = vmatprep.subr.bf16.mxu0 %v2485
  %3188 = vmatpush1.bf16.msra.mxu0 %v2484
  %3189 = vmatprep.subr.bf16.mxu0 %v2477
  %3190 = vmatpush1.bf16.msra.mxu0 %v2476
  %3191 = vmatprep.subr.bf16.mxu0 %v2469
  %3192 = vmatpush1.bf16.msra.mxu0 %v2468
  %3193 = vmatprep.subr.bf16.mxu0 %v2461
  %3194 = vmatpush1.bf16.msra.mxu0 %v2460
  %3195 = vmatprep.subr.bf16.mxu0 %v2453
  %3196 = vmatpush1.bf16.msra.mxu0 %v2452
  %3197 = vmatprep.subr.bf16.mxu0 %v2445
  %3198 = vmatpush1.bf16.msra.mxu0 %v2444
  %3199 = vmatprep.subr.bf16.mxu0 %v2437
  %3200 = vmatpush1.bf16.msra.mxu0 %v2436
  %3201 = vmatprep.subr.bf16.mxu0 %v2557
  %3202 = vmatpush2.bf16.msra.mxu0 %v2556
  %3203 = vmatprep.subr.bf16.mxu0 %v2549
  %3204 = vmatpush2.bf16.msra.mxu0 %v2548
  %3205 = vmatprep.subr.bf16.mxu0 %v2541
  %3206 = vmatpush2.bf16.msra.mxu0 %v2540
  %3207 = vmatprep.subr.bf16.mxu0 %v2533
  %3208 = vmatpush2.bf16.msra.mxu0 %v2532
  %3209 = vmatprep.subr.bf16.mxu0 %v2525
  %3210 = vmatpush2.bf16.msra.mxu0 %v2524
  %3211 = vmatprep.subr.bf16.mxu0 %v2517
  %3212 = vmatpush2.bf16.msra.mxu0 %v2516
  %3213 = vmatprep.subr.bf16.mxu0 %v2509
  %3214 = vmatpush2.bf16.msra.mxu0 %v2508
  %3215 = vmatprep.subr.bf16.mxu0 %v2501
  %3216 = vmatpush2.bf16.msra.mxu0 %v2500
  %3217 = vmatprep.mubr.bf16.mxu0 %v1488
  %3218 = vmatmul.mubr.bf16.gmra.mxu0 %v1487
  %v3219 = vpop.f32.mrf.mxu0
  %v3220 = vadd.f32 %v3167, %v3219
  %v3221 = vpop.f32.mrf.mxu0
  %v3222 = vadd.f32 %v3169, %v3221
  %v3223 = vpop.f32.mrf.mxu0
  %v3224 = vadd.f32 %v3171, %v3223
  %v3225 = vpop.f32.mrf.mxu0
  %v3226 = vadd.f32 %v3173, %v3225
  %3227 = vmatprep.mubr.bf16.mxu0 %v1492
  %3228 = vmatmul.mubr.bf16.gmra.mxu0 %v1491
  %v3229 = vpop.f32.mrf.mxu0
  %v3230 = vadd.f32 %v3177, %v3229
  %v3231 = vpop.f32.mrf.mxu0
  %v3232 = vadd.f32 %v3179, %v3231
  %v3233 = vpop.f32.mrf.mxu0
  %v3234 = vadd.f32 %v3181, %v3233
  %v3235 = vpop.f32.mrf.mxu0
  %v3236 = vadd.f32 %v3183, %v3235
  %3237 = vdwg.mxu0
  %v3238 = vadd.f32 %v2902, %v2906
  %v3239 = vadd.f32 %v3238, %v2912
  %v3240 = vadd.f32 %v3239, %v2916
  %v3241 = vrot.slane %v3240, 4
  %v3242 = vadd.f32 %v3240, %v3241
  %v3243 = vrot.slane %v3242, 2
  %v3244 = vadd.f32 %v3242, %v3243
  %v3245 = vrot.slane %v3244, 1
  %v3246 = vadd.f32 %v3244, %v3245
  %v3247 = vadd.f32 %v2904, %v2908
  %v3248 = vadd.f32 %v3247, %v2914
  %v3249 = vadd.f32 %v3248, %v2918
  %v3250 = vrot.slane %v3249, 4
  %v3251 = vadd.f32 %v3249, %v3250
  %v3252 = vrot.slane %v3251, 2
  %v3253 = vadd.f32 %v3251, %v3252
  %v3254 = vrot.slane %v3253, 1
  %v3255 = vadd.f32 %v3253, %v3254
  %v3256 = vadd.f32 %v3008, %v3012
  %v3257 = vadd.f32 %v3256, %v3018
  %v3258 = vadd.f32 %v3257, %v3022
  %v3259 = vrot.slane %v3258, 4
  %v3260 = vadd.f32 %v3258, %v3259
  %v3261 = vrot.slane %v3260, 2
  %v3262 = vadd.f32 %v3260, %v3261
  %v3263 = vrot.slane %v3262, 1
  %v3264 = vadd.f32 %v3262, %v3263
  %v3265 = vadd.f32 %v3010, %v3014
  %v3266 = vadd.f32 %v3265, %v3020
  %v3267 = vadd.f32 %v3266, %v3024
  %v3268 = vrot.slane %v3267, 4
  %v3269 = vadd.f32 %v3267, %v3268
  %v3270 = vrot.slane %v3269, 2
  %v3271 = vadd.f32 %v3269, %v3270
  %v3272 = vrot.slane %v3271, 1
  %v3273 = vadd.f32 %v3271, %v3272
  %v3274 = vadd.f32 %v3114, %v3118
  %v3275 = vadd.f32 %v3274, %v3124
  %v3276 = vadd.f32 %v3275, %v3128
  %v3277 = vrot.slane %v3276, 4
  %v3278 = vadd.f32 %v3276, %v3277
  %v3279 = vrot.slane %v3278, 2
  %v3280 = vadd.f32 %v3278, %v3279
  %v3281 = vrot.slane %v3280, 1
  %v3282 = vadd.f32 %v3280, %v3281
  %v3283 = vadd.f32 %v3116, %v3120
  %v3284 = vadd.f32 %v3283, %v3126
  %v3285 = vadd.f32 %v3284, %v3130
  %v3286 = vrot.slane %v3285, 4
  %v3287 = vadd.f32 %v3285, %v3286
  %v3288 = vrot.slane %v3287, 2
  %v3289 = vadd.f32 %v3287, %v3288
  %v3290 = vrot.slane %v3289, 1
  %v3291 = vadd.f32 %v3289, %v3290
  %v3292 = vadd.f32 %v3220, %v3224
  %v3293 = vadd.f32 %v3292, %v3230
  %v3294 = vadd.f32 %v3293, %v3234
  %v3295 = vrot.slane %v3294, 4
  %v3296 = vadd.f32 %v3294, %v3295
  %v3297 = vrot.slane %v3296, 2
  %v3298 = vadd.f32 %v3296, %v3297
  %v3299 = vrot.slane %v3298, 1
  %v3300 = vadd.f32 %v3298, %v3299
  %v3301 = vadd.f32 %v3222, %v3226
  %v3302 = vadd.f32 %v3301, %v3232
  %v3303 = vadd.f32 %v3302, %v3236
  %v3304 = vrot.slane %v3303, 4
  %v3305 = vadd.f32 %v3303, %v3304
  %v3306 = vrot.slane %v3305, 2
  %v3307 = vadd.f32 %v3305, %v3306
  %v3308 = vrot.slane %v3307, 1
  %v3309 = vadd.f32 %v3307, %v3308
  %v3310 = vmul.f32 %v3246, %v663
  %v3311 = vmul.f32 %v3255, %v663
  %v3312 = vmul.f32 %v3264, %v663
  %v3313 = vmul.f32 %v3273, %v663
  %v3314 = vmul.f32 %v3282, %v663
  %v3315 = vmul.f32 %v3291, %v663
  %v3316 = vmul.f32 %v3300, %v663
  %v3317 = vmul.f32 %v3309, %v663
  %v3318 = vsub.f32 %v2902, %v3310
  %v3319 = vsub.f32 %v2904, %v3311
  %v3320 = vsub.f32 %v3008, %v3312
  %v3321 = vsub.f32 %v3010, %v3313
  %v3322 = vsub.f32 %v3114, %v3314
  %v3323 = vsub.f32 %v3116, %v3315
  %v3324 = vsub.f32 %v3220, %v3316
  %v3325 = vsub.f32 %v3222, %v3317
  %v3326 = vsub.f32 %v2906, %v3310
  %v3327 = vsub.f32 %v2908, %v3311
  %v3328 = vsub.f32 %v3012, %v3312
  %v3329 = vsub.f32 %v3014, %v3313
  %v3330 = vsub.f32 %v3118, %v3314
  %v3331 = vsub.f32 %v3120, %v3315
  %v3332 = vsub.f32 %v3224, %v3316
  %v3333 = vsub.f32 %v3226, %v3317
  %v3334 = vsub.f32 %v2912, %v3310
  %v3335 = vsub.f32 %v2914, %v3311
  %v3336 = vsub.f32 %v3018, %v3312
  %v3337 = vsub.f32 %v3020, %v3313
  %v3338 = vsub.f32 %v3124, %v3314
  %v3339 = vsub.f32 %v3126, %v3315
  %v3340 = vsub.f32 %v3230, %v3316
  %v3341 = vsub.f32 %v3232, %v3317
  %v3342 = vsub.f32 %v2916, %v3310
  %v3343 = vsub.f32 %v2918, %v3311
  %v3344 = vsub.f32 %v3022, %v3312
  %v3345 = vsub.f32 %v3024, %v3313
  %v3346 = vsub.f32 %v3128, %v3314
  %v3347 = vsub.f32 %v3130, %v3315
  %v3348 = vsub.f32 %v3234, %v3316
  %v3349 = vsub.f32 %v3236, %v3317
  %v3350 = vmul.f32 %v3318, %v3318
  %v3351 = vmul.f32 %v3319, %v3319
  %v3352 = vmul.f32 %v3320, %v3320
  %v3353 = vmul.f32 %v3321, %v3321
  %v3354 = vmul.f32 %v3322, %v3322
  %v3355 = vmul.f32 %v3323, %v3323
  %v3356 = vmul.f32 %v3324, %v3324
  %v3357 = vmul.f32 %v3325, %v3325
  %v3358 = vmul.f32 %v3326, %v3326
  %v3359 = vmul.f32 %v3327, %v3327
  %v3360 = vmul.f32 %v3328, %v3328
  %v3361 = vmul.f32 %v3329, %v3329
  %v3362 = vmul.f32 %v3330, %v3330
  %v3363 = vmul.f32 %v3331, %v3331
  %v3364 = vmul.f32 %v3332, %v3332
  %v3365 = vmul.f32 %v3333, %v3333
  %v3366 = vmul.f32 %v3334, %v3334
  %v3367 = vmul.f32 %v3335, %v3335
  %v3368 = vmul.f32 %v3336, %v3336
  %v3369 = vmul.f32 %v3337, %v3337
  %v3370 = vmul.f32 %v3338, %v3338
  %v3371 = vmul.f32 %v3339, %v3339
  %v3372 = vmul.f32 %v3340, %v3340
  %v3373 = vmul.f32 %v3341, %v3341
  %v3374 = vmul.f32 %v3342, %v3342
  %v3375 = vmul.f32 %v3343, %v3343
  %v3376 = vmul.f32 %v3344, %v3344
  %v3377 = vmul.f32 %v3345, %v3345
  %v3378 = vmul.f32 %v3346, %v3346
  %v3379 = vmul.f32 %v3347, %v3347
  %v3380 = vmul.f32 %v3348, %v3348
  %v3381 = vmul.f32 %v3349, %v3349
  %v3382 = vadd.f32 %v3350, %v3358
  %v3383 = vadd.f32 %v3382, %v3366
  %v3384 = vadd.f32 %v3383, %v3374
  %v3385 = vrot.slane %v3384, 4
  %v3386 = vadd.f32 %v3384, %v3385
  %v3387 = vrot.slane %v3386, 2
  %v3388 = vadd.f32 %v3386, %v3387
  %v3389 = vrot.slane %v3388, 1
  %v3390 = vadd.f32 %v3388, %v3389
  %v3391 = vadd.f32 %v3351, %v3359
  %v3392 = vadd.f32 %v3391, %v3367
  %v3393 = vadd.f32 %v3392, %v3375
  %v3394 = vrot.slane %v3393, 4
  %v3395 = vadd.f32 %v3393, %v3394
  %v3396 = vrot.slane %v3395, 2
  %v3397 = vadd.f32 %v3395, %v3396
  %v3398 = vrot.slane %v3397, 1
  %v3399 = vadd.f32 %v3397, %v3398
  %v3400 = vadd.f32 %v3352, %v3360
  %v3401 = vadd.f32 %v3400, %v3368
  %v3402 = vadd.f32 %v3401, %v3376
  %v3403 = vrot.slane %v3402, 4
  %v3404 = vadd.f32 %v3402, %v3403
  %v3405 = vrot.slane %v3404, 2
  %v3406 = vadd.f32 %v3404, %v3405
  %v3407 = vrot.slane %v3406, 1
  %v3408 = vadd.f32 %v3406, %v3407
  %v3409 = vadd.f32 %v3353, %v3361
  %v3410 = vadd.f32 %v3409, %v3369
  %v3411 = vadd.f32 %v3410, %v3377
  %v3412 = vrot.slane %v3411, 4
  %v3413 = vadd.f32 %v3411, %v3412
  %v3414 = vrot.slane %v3413, 2
  %v3415 = vadd.f32 %v3413, %v3414
  %v3416 = vrot.slane %v3415, 1
  %v3417 = vadd.f32 %v3415, %v3416
  %v3418 = vadd.f32 %v3354, %v3362
  %v3419 = vadd.f32 %v3418, %v3370
  %v3420 = vadd.f32 %v3419, %v3378
  %v3421 = vrot.slane %v3420, 4
  %v3422 = vadd.f32 %v3420, %v3421
  %v3423 = vrot.slane %v3422, 2
  %v3424 = vadd.f32 %v3422, %v3423
  %v3425 = vrot.slane %v3424, 1
  %v3426 = vadd.f32 %v3424, %v3425
  %v3427 = vadd.f32 %v3355, %v3363
  %v3428 = vadd.f32 %v3427, %v3371
  %v3429 = vadd.f32 %v3428, %v3379
  %v3430 = vrot.slane %v3429, 4
  %v3431 = vadd.f32 %v3429, %v3430
  %v3432 = vrot.slane %v3431, 2
  %v3433 = vadd.f32 %v3431, %v3432
  %v3434 = vrot.slane %v3433, 1
  %v3435 = vadd.f32 %v3433, %v3434
  %v3436 = vadd.f32 %v3356, %v3364
  %v3437 = vadd.f32 %v3436, %v3372
  %v3438 = vadd.f32 %v3437, %v3380
  %v3439 = vrot.slane %v3438, 4
  %v3440 = vadd.f32 %v3438, %v3439
  %v3441 = vrot.slane %v3440, 2
  %v3442 = vadd.f32 %v3440, %v3441
  %v3443 = vrot.slane %v3442, 1
  %v3444 = vadd.f32 %v3442, %v3443
  %v3445 = vadd.f32 %v3357, %v3365
  %v3446 = vadd.f32 %v3445, %v3373
  %v3447 = vadd.f32 %v3446, %v3381
  %v3448 = vrot.slane %v3447, 4
  %v3449 = vadd.f32 %v3447, %v3448
  %v3450 = vrot.slane %v3449, 2
  %v3451 = vadd.f32 %v3449, %v3450
  %v3452 = vrot.slane %v3451, 1
  %v3453 = vadd.f32 %v3451, %v3452
  %v3454 = vmul.f32 %v3390, %v663
  %v3455 = vmul.f32 %v3399, %v663
  %v3456 = vmul.f32 %v3408, %v663
  %v3457 = vmul.f32 %v3417, %v663
  %v3458 = vmul.f32 %v3426, %v663
  %v3459 = vmul.f32 %v3435, %v663
  %v3460 = vmul.f32 %v3444, %v663
  %v3461 = vmul.f32 %v3453, %v663
  %v3462 = vadd.f32 %v3454, 0.8
  %v3463 = vadd.f32 %v3455, 0.8
  %v3464 = vadd.f32 %v3456, 0.8
  %v3465 = vadd.f32 %v3457, 0.8
  %v3466 = vadd.f32 %v3458, 0.8
  %v3467 = vadd.f32 %v3459, 0.8
  %v3468 = vadd.f32 %v3460, 0.8
  %v3469 = vadd.f32 %v3461, 0.8
  %v3470 = vrsqrt.pop %v3462
  %v3471 = vrsqrt.pop %v3463
  %v3472 = vrsqrt.pop %v3464
  %v3473 = vrsqrt.pop %v3465
  %v3474 = vrsqrt.pop %v3466
  %v3475 = vrsqrt.pop %v3467
  %v3476 = vrsqrt.pop %v3468
  %v3477 = vrsqrt.pop %v3469
  %v3478 = vmul.f32 %v3318, %v3470
  %v3479 = vmul.f32 %v3319, %v3471
  %v3480 = vmul.f32 %v3320, %v3472
  %v3481 = vmul.f32 %v3321, %v3473
  %v3482 = vmul.f32 %v3322, %v3474
  %v3483 = vmul.f32 %v3323, %v3475
  %v3484 = vmul.f32 %v3324, %v3476
  %v3485 = vmul.f32 %v3325, %v3477
  %v3486 = vmul.f32 %v3326, %v3470
  %v3487 = vmul.f32 %v3327, %v3471
  %v3488 = vmul.f32 %v3328, %v3472
  %v3489 = vmul.f32 %v3329, %v3473
  %v3490 = vmul.f32 %v3330, %v3474
  %v3491 = vmul.f32 %v3331, %v3475
  %v3492 = vmul.f32 %v3332, %v3476
  %v3493 = vmul.f32 %v3333, %v3477
  %v3494 = vmul.f32 %v3334, %v3470
  %v3495 = vmul.f32 %v3335, %v3471
  %v3496 = vmul.f32 %v3336, %v3472
  %v3497 = vmul.f32 %v3337, %v3473
  %v3498 = vmul.f32 %v3338, %v3474
  %v3499 = vmul.f32 %v3339, %v3475
  %v3500 = vmul.f32 %v3340, %v3476
  %v3501 = vmul.f32 %v3341, %v3477
  %v3502 = vmul.f32 %v3342, %v3470
  %v3503 = vmul.f32 %v3343, %v3471
  %v3504 = vmul.f32 %v3344, %v3472
  %v3505 = vmul.f32 %v3345, %v3473
  %v3506 = vmul.f32 %v3346, %v3474
  %v3507 = vmul.f32 %v3347, %v3475
  %v3508 = vmul.f32 %v3348, %v3476
  %v3509 = vmul.f32 %v3349, %v3477
  %v3511 = vlaneseq
  %v3512 = vshrl.u32 %v3511, 7
  %v3513 = vsub.s32 0, %v3512
  %v3514 = vrot.slane %v409, %v3513
  %v3515 = vlaneseq
  %v3516 = vshrl.u32 %v3515, 7
  %v3517 = vsub.s32 1, %v3516
  %v3518 = vrot.slane %v409, %v3517
  %v3519 = vlaneseq
  %v3520 = vshrl.u32 %v3519, 7
  %v3521 = vsub.s32 2, %v3520
  %v3522 = vrot.slane %v409, %v3521
  %v3523 = vlaneseq
  %v3524 = vshrl.u32 %v3523, 7
  %v3525 = vsub.s32 3, %v3524
  %v3526 = vrot.slane %v409, %v3525
  %v3527 = vlaneseq
  %v3528 = vshrl.u32 %v3527, 7
  %v3529 = vsub.s32 4, %v3528
  %v3530 = vrot.slane %v409, %v3529
  %v3531 = vlaneseq
  %v3532 = vshrl.u32 %v3531, 7
  %v3533 = vsub.s32 5, %v3532
  %v3534 = vrot.slane %v409, %v3533
  %v3535 = vlaneseq
  %v3536 = vshrl.u32 %v3535, 7
  %v3537 = vsub.s32 6, %v3536
  %v3538 = vrot.slane %v409, %v3537
  %v3539 = vlaneseq
  %v3540 = vshrl.u32 %v3539, 7
  %v3541 = vsub.s32 7, %v3540
  %v3542 = vrot.slane %v409, %v3541
  %v3551 = vmul.f32 %v3478, %v3514
  %v3552 = vmul.f32 %v3479, %v3518
  %v3553 = vmul.f32 %v3480, %v3522
  %v3554 = vmul.f32 %v3481, %v3526
  %v3555 = vmul.f32 %v3482, %v3530
  %v3556 = vmul.f32 %v3483, %v3534
  %v3557 = vmul.f32 %v3484, %v3538
  %v3558 = vmul.f32 %v3485, %v3542
  %v3559 = vmul.f32 %v3486, %v3514
  %v3560 = vmul.f32 %v3487, %v3518
  %v3561 = vmul.f32 %v3488, %v3522
  %v3562 = vmul.f32 %v3489, %v3526
  %v3563 = vmul.f32 %v3490, %v3530
  %v3564 = vmul.f32 %v3491, %v3534
  %v3565 = vmul.f32 %v3492, %v3538
  %v3566 = vmul.f32 %v3493, %v3542
  %v3567 = vmul.f32 %v3494, %v3514
  %v3568 = vmul.f32 %v3495, %v3518
  %v3569 = vmul.f32 %v3496, %v3522
  %v3570 = vmul.f32 %v3497, %v3526
  %v3571 = vmul.f32 %v3498, %v3530
  %v3572 = vmul.f32 %v3499, %v3534
  %v3573 = vmul.f32 %v3500, %v3538
  %v3574 = vmul.f32 %v3501, %v3542
  %v3575 = vmul.f32 %v3502, %v3514
  %v3576 = vmul.f32 %v3503, %v3518
  %v3577 = vmul.f32 %v3504, %v3522
  %v3578 = vmul.f32 %v3505, %v3526
  %v3579 = vmul.f32 %v3506, %v3530
  %v3580 = vmul.f32 %v3507, %v3534
  %v3581 = vmul.f32 %v3508, %v3538
  %v3582 = vmul.f32 %v3509, %v3542
  %v3584 = vlaneseq
  %v3585 = vshrl.u32 %v3584, 7
  %v3586 = vsub.s32 0, %v3585
  %v3587 = vrot.slane %v410, %v3586
  %v3588 = vlaneseq
  %v3589 = vshrl.u32 %v3588, 7
  %v3590 = vsub.s32 1, %v3589
  %v3591 = vrot.slane %v410, %v3590
  %v3592 = vlaneseq
  %v3593 = vshrl.u32 %v3592, 7
  %v3594 = vsub.s32 2, %v3593
  %v3595 = vrot.slane %v410, %v3594
  %v3596 = vlaneseq
  %v3597 = vshrl.u32 %v3596, 7
  %v3598 = vsub.s32 3, %v3597
  %v3599 = vrot.slane %v410, %v3598
  %v3600 = vlaneseq
  %v3601 = vshrl.u32 %v3600, 7
  %v3602 = vsub.s32 4, %v3601
  %v3603 = vrot.slane %v410, %v3602
  %v3604 = vlaneseq
  %v3605 = vshrl.u32 %v3604, 7
  %v3606 = vsub.s32 5, %v3605
  %v3607 = vrot.slane %v410, %v3606
  %v3608 = vlaneseq
  %v3609 = vshrl.u32 %v3608, 7
  %v3610 = vsub.s32 6, %v3609
  %v3611 = vrot.slane %v410, %v3610
  %v3612 = vlaneseq
  %v3613 = vshrl.u32 %v3612, 7
  %v3614 = vsub.s32 7, %v3613
  %v3615 = vrot.slane %v410, %v3614
  %v3624 = vadd.f32 %v3551, %v3587
  %v3625 = vadd.f32 %v3552, %v3591
  %v3626 = vadd.f32 %v3553, %v3595
  %v3627 = vadd.f32 %v3554, %v3599
  %v3628 = vadd.f32 %v3555, %v3603
  %v3629 = vadd.f32 %v3556, %v3607
  %v3630 = vadd.f32 %v3557, %v3611
  %v3631 = vadd.f32 %v3558, %v3615
  %v3632 = vadd.f32 %v3559, %v3587
  %v3633 = vadd.f32 %v3560, %v3591
  %v3634 = vadd.f32 %v3561, %v3595
  %v3635 = vadd.f32 %v3562, %v3599
  %v3636 = vadd.f32 %v3563, %v3603
  %v3637 = vadd.f32 %v3564, %v3607
  %v3638 = vadd.f32 %v3565, %v3611
  %v3639 = vadd.f32 %v3566, %v3615
  %v3640 = vadd.f32 %v3567, %v3587
  %v3641 = vadd.f32 %v3568, %v3591
  %v3642 = vadd.f32 %v3569, %v3595
  %v3643 = vadd.f32 %v3570, %v3599
  %v3644 = vadd.f32 %v3571, %v3603
  %v3645 = vadd.f32 %v3572, %v3607
  %v3646 = vadd.f32 %v3573, %v3611
  %v3647 = vadd.f32 %v3574, %v3615
  %v3648 = vadd.f32 %v3575, %v3587
  %v3649 = vadd.f32 %v3576, %v3591
  %v3650 = vadd.f32 %v3577, %v3595
  %v3651 = vadd.f32 %v3578, %v3599
  %v3652 = vadd.f32 %v3579, %v3603
  %v3653 = vadd.f32 %v3580, %v3607
  %v3654 = vadd.f32 %v3581, %v3611
  %v3655 = vadd.f32 %v3582, %v3615
  %vm3656 = vcmp.gt.f32.partialorder %v3624, 0.0
  %vm3657 = vcmp.gt.f32.partialorder %v3625, 0.0
  %vm3658 = vcmp.gt.f32.partialorder %v3626, 0.0
  %vm3659 = vcmp.gt.f32.partialorder %v3627, 0.0
  %vm3660 = vcmp.gt.f32.partialorder %v3628, 0.0
  %vm3661 = vcmp.gt.f32.partialorder %v3629, 0.0
  %vm3662 = vcmp.gt.f32.partialorder %v3630, 0.0
  %vm3663 = vcmp.gt.f32.partialorder %v3631, 0.0
  %vm3664 = vcmp.gt.f32.partialorder %v3632, 0.0
  %vm3665 = vcmp.gt.f32.partialorder %v3633, 0.0
  %vm3666 = vcmp.gt.f32.partialorder %v3634, 0.0
  %vm3667 = vcmp.gt.f32.partialorder %v3635, 0.0
  %vm3668 = vcmp.gt.f32.partialorder %v3636, 0.0
  %vm3669 = vcmp.gt.f32.partialorder %v3637, 0.0
  %vm3670 = vcmp.gt.f32.partialorder %v3638, 0.0
  %vm3671 = vcmp.gt.f32.partialorder %v3639, 0.0
  %vm3672 = vcmp.gt.f32.partialorder %v3640, 0.0
  %vm3673 = vcmp.gt.f32.partialorder %v3641, 0.0
  %vm3674 = vcmp.gt.f32.partialorder %v3642, 0.0
  %vm3675 = vcmp.gt.f32.partialorder %v3643, 0.0
  %vm3676 = vcmp.gt.f32.partialorder %v3644, 0.0
  %vm3677 = vcmp.gt.f32.partialorder %v3645, 0.0
  %vm3678 = vcmp.gt.f32.partialorder %v3646, 0.0
  %vm3679 = vcmp.gt.f32.partialorder %v3647, 0.0
  %vm3680 = vcmp.gt.f32.partialorder %v3648, 0.0
  %vm3681 = vcmp.gt.f32.partialorder %v3649, 0.0
  %vm3682 = vcmp.gt.f32.partialorder %v3650, 0.0
  %vm3683 = vcmp.gt.f32.partialorder %v3651, 0.0
  %vm3684 = vcmp.gt.f32.partialorder %v3652, 0.0
  %vm3685 = vcmp.gt.f32.partialorder %v3653, 0.0
  %vm3686 = vcmp.gt.f32.partialorder %v3654, 0.0
  %vm3687 = vcmp.gt.f32.partialorder %v3655, 0.0
  %v3688 = vmul.f32 %v3624, 0.2
  %v3689 = vmul.f32 %v3625, 0.2
  %v3690 = vmul.f32 %v3626, 0.2
  %v3691 = vmul.f32 %v3627, 0.2
  %v3692 = vmul.f32 %v3628, 0.2
  %v3693 = vmul.f32 %v3629, 0.2
  %v3694 = vmul.f32 %v3630, 0.2
  %v3695 = vmul.f32 %v3631, 0.2
  %v3696 = vmul.f32 %v3632, 0.2
  %v3697 = vmul.f32 %v3633, 0.2
  %v3698 = vmul.f32 %v3634, 0.2
  %v3699 = vmul.f32 %v3635, 0.2
  %v3700 = vmul.f32 %v3636, 0.2
  %v3701 = vmul.f32 %v3637, 0.2
  %v3702 = vmul.f32 %v3638, 0.2
  %v3703 = vmul.f32 %v3639, 0.2
  %v3704 = vmul.f32 %v3640, 0.2
  %v3705 = vmul.f32 %v3641, 0.2
  %v3706 = vmul.f32 %v3642, 0.2
  %v3707 = vmul.f32 %v3643, 0.2
  %v3708 = vmul.f32 %v3644, 0.2
  %v3709 = vmul.f32 %v3645, 0.2
  %v3710 = vmul.f32 %v3646, 0.2
  %v3711 = vmul.f32 %v3647, 0.2
  %v3712 = vmul.f32 %v3648, 0.2
  %v3713 = vmul.f32 %v3649, 0.2
  %v3714 = vmul.f32 %v3650, 0.2
  %v3715 = vmul.f32 %v3651, 0.2
  %v3716 = vmul.f32 %v3652, 0.2
  %v3717 = vmul.f32 %v3653, 0.2
  %v3718 = vmul.f32 %v3654, 0.2
  %v3719 = vmul.f32 %v3655, 0.2
  %v3720 = vsel %vm3656, %v3624, %v3688
  %v3721 = vsel %vm3657, %v3625, %v3689
  %v3722 = vsel %vm3658, %v3626, %v3690
  %v3723 = vsel %vm3659, %v3627, %v3691
  %v3724 = vsel %vm3660, %v3628, %v3692
  %v3725 = vsel %vm3661, %v3629, %v3693
  %v3726 = vsel %vm3662, %v3630, %v3694
  %v3727 = vsel %vm3663, %v3631, %v3695
  %v3728 = vsel %vm3664, %v3632, %v3696
  %v3729 = vsel %vm3665, %v3633, %v3697
  %v3730 = vsel %vm3666, %v3634, %v3698
  %v3731 = vsel %vm3667, %v3635, %v3699
  %v3732 = vsel %vm3668, %v3636, %v3700
  %v3733 = vsel %vm3669, %v3637, %v3701
  %v3734 = vsel %vm3670, %v3638, %v3702
  %v3735 = vsel %vm3671, %v3639, %v3703
  %v3736 = vsel %vm3672, %v3640, %v3704
  %v3737 = vsel %vm3673, %v3641, %v3705
  %v3738 = vsel %vm3674, %v3642, %v3706
  %v3739 = vsel %vm3675, %v3643, %v3707
  %v3740 = vsel %vm3676, %v3644, %v3708
  %v3741 = vsel %vm3677, %v3645, %v3709
  %v3742 = vsel %vm3678, %v3646, %v3710
  %v3743 = vsel %vm3679, %v3647, %v3711
  %v3744 = vsel %vm3680, %v3648, %v3712
  %v3745 = vsel %vm3681, %v3649, %v3713
  %v3746 = vsel %vm3682, %v3650, %v3714
  %v3747 = vsel %vm3683, %v3651, %v3715
  %v3748 = vsel %vm3684, %v3652, %v3716
  %v3749 = vsel %vm3685, %v3653, %v3717
  %v3750 = vsel %vm3686, %v3654, %v3718
  %v3751 = vsel %vm3687, %v3655, %v3719
  %v3752 = vpack.c.bf16 %v3728, %v3720
  %v3753 = vpack.c.bf16 %v3729, %v3721
  %v3754 = vpack.c.bf16 %v3730, %v3722
  %v3755 = vpack.c.bf16 %v3731, %v3723
  %v3756 = vpack.c.bf16 %v3732, %v3724
  %v3757 = vpack.c.bf16 %v3733, %v3725
  %v3758 = vpack.c.bf16 %v3734, %v3726
  %v3759 = vpack.c.bf16 %v3735, %v3727
  %v3760 = vpack.c.bf16 %v3744, %v3736
  %v3761 = vpack.c.bf16 %v3745, %v3737
  %v3762 = vpack.c.bf16 %v3746, %v3738
  %v3763 = vpack.c.bf16 %v3747, %v3739
  %v3764 = vpack.c.bf16 %v3748, %v3740
  %v3765 = vpack.c.bf16 %v3749, %v3741
  %v3766 = vpack.c.bf16 %v3750, %v3742
  %v3767 = vpack.c.bf16 %v3751, %v3743
  %v3768 = vld [vmem:[%s15] sm:$0xff]
  %v3769 = vld [vmem:[%s15 + $0x8] sm:$0xff]
  %v3770 = vld [vmem:[%s15 + $0x10] sm:$0xff]
  %v3771 = vld [vmem:[%s15 + $0x18] sm:$0xff]
  %v3772 = vld [vmem:[%s15 + $0x20] sm:$0xff]
  %v3773 = vld [vmem:[%s15 + $0x28] sm:$0xff]
  %v3774 = vld [vmem:[%s15 + $0x30] sm:$0xff]
  %v3775 = vld [vmem:[%s15 + $0x38] sm:$0xff]
  %v3776 = vld [vmem:[%s15 + $0x40] sm:$0xff]
  %v3777 = vld [vmem:[%s15 + $0x48] sm:$0xff]
  %v3778 = vld [vmem:[%s15 + $0x50] sm:$0xff]
  %v3779 = vld [vmem:[%s15 + $0x58] sm:$0xff]
  %v3780 = vld [vmem:[%s15 + $0x60] sm:$0xff]
  %v3781 = vld [vmem:[%s15 + $0x68] sm:$0xff]
  %v3782 = vld [vmem:[%s15 + $0x70] sm:$0xff]
  %v3783 = vld [vmem:[%s15 + $0x78] sm:$0xff]
  %v3784 = vld [vmem:[%s15 + $0x80] sm:$0xff]
  %v3785 = vld [vmem:[%s15 + $0x88] sm:$0xff]
  %v3786 = vld [vmem:[%s15 + $0x90] sm:$0xff]
  %v3787 = vld [vmem:[%s15 + $0x98] sm:$0xff]
  %v3788 = vld [vmem:[%s15 + $0xa0] sm:$0xff]
  %v3789 = vld [vmem:[%s15 + $0xa8] sm:$0xff]
  %v3790 = vld [vmem:[%s15 + $0xb0] sm:$0xff]
  %v3791 = vld [vmem:[%s15 + $0xb8] sm:$0xff]
  %v3792 = vld [vmem:[%s15 + $0xc0] sm:$0xff]
  %v3793 = vld [vmem:[%s15 + $0xc8] sm:$0xff]
  %v3794 = vld [vmem:[%s15 + $0xd0] sm:$0xff]
  %v3795 = vld [vmem:[%s15 + $0xd8] sm:$0xff]
  %v3796 = vld [vmem:[%s15 + $0xe0] sm:$0xff]
  %v3797 = vld [vmem:[%s15 + $0xe8] sm:$0xff]
  %v3798 = vld [vmem:[%s15 + $0xf0] sm:$0xff]
  %v3799 = vld [vmem:[%s15 + $0xf8] sm:$0xff]
  %v3800 = vld [vmem:[%s15 + $0x100] sm:$0xff]
  %v3801 = vld [vmem:[%s15 + $0x108] sm:$0xff]
  %v3802 = vld [vmem:[%s15 + $0x110] sm:$0xff]
  %v3803 = vld [vmem:[%s15 + $0x118] sm:$0xff]
  %v3804 = vld [vmem:[%s15 + $0x120] sm:$0xff]
  %v3805 = vld [vmem:[%s15 + $0x128] sm:$0xff]
  %v3806 = vld [vmem:[%s15 + $0x130] sm:$0xff]
  %v3807 = vld [vmem:[%s15 + $0x138] sm:$0xff]
  %v3808 = vld [vmem:[%s15 + $0x140] sm:$0xff]
  %v3809 = vld [vmem:[%s15 + $0x148] sm:$0xff]
  %v3810 = vld [vmem:[%s15 + $0x150] sm:$0xff]
  %v3811 = vld [vmem:[%s15 + $0x158] sm:$0xff]
  %v3812 = vld [vmem:[%s15 + $0x160] sm:$0xff]
  %v3813 = vld [vmem:[%s15 + $0x168] sm:$0xff]
  %v3814 = vld [vmem:[%s15 + $0x170] sm:$0xff]
  %v3815 = vld [vmem:[%s15 + $0x178] sm:$0xff]
  %v3816 = vld [vmem:[%s15 + $0x180] sm:$0xff]
  %v3817 = vld [vmem:[%s15 + $0x188] sm:$0xff]
  %v3818 = vld [vmem:[%s15 + $0x190] sm:$0xff]
  %v3819 = vld [vmem:[%s15 + $0x198] sm:$0xff]
  %v3820 = vld [vmem:[%s15 + $0x1a0] sm:$0xff]
  %v3821 = vld [vmem:[%s15 + $0x1a8] sm:$0xff]
  %v3822 = vld [vmem:[%s15 + $0x1b0] sm:$0xff]
  %v3823 = vld [vmem:[%s15 + $0x1b8] sm:$0xff]
  %v3824 = vld [vmem:[%s15 + $0x1c0] sm:$0xff]
  %v3825 = vld [vmem:[%s15 + $0x1c8] sm:$0xff]
  %v3826 = vld [vmem:[%s15 + $0x1d0] sm:$0xff]
  %v3827 = vld [vmem:[%s15 + $0x1d8] sm:$0xff]
  %v3828 = vld [vmem:[%s15 + $0x1e0] sm:$0xff]
  %v3829 = vld [vmem:[%s15 + $0x1e8] sm:$0xff]
  %v3830 = vld [vmem:[%s15 + $0x1f0] sm:$0xff]
  %v3831 = vld [vmem:[%s15 + $0x1f8] sm:$0xff]
  %v3832 = vld [vmem:[%s15 + $0x200] sm:$0xff]
  %v3833 = vld [vmem:[%s15 + $0x208] sm:$0xff]
  %v3834 = vld [vmem:[%s15 + $0x210] sm:$0xff]
  %v3835 = vld [vmem:[%s15 + $0x218] sm:$0xff]
  %v3836 = vld [vmem:[%s15 + $0x220] sm:$0xff]
  %v3837 = vld [vmem:[%s15 + $0x228] sm:$0xff]
  %v3838 = vld [vmem:[%s15 + $0x230] sm:$0xff]
  %v3839 = vld [vmem:[%s15 + $0x238] sm:$0xff]
  %v3840 = vld [vmem:[%s15 + $0x240] sm:$0xff]
  %v3841 = vld [vmem:[%s15 + $0x248] sm:$0xff]
  %v3842 = vld [vmem:[%s15 + $0x250] sm:$0xff]
  %v3843 = vld [vmem:[%s15 + $0x258] sm:$0xff]
  %v3844 = vld [vmem:[%s15 + $0x260] sm:$0xff]
  %v3845 = vld [vmem:[%s15 + $0x268] sm:$0xff]
  %v3846 = vld [vmem:[%s15 + $0x270] sm:$0xff]
  %v3847 = vld [vmem:[%s15 + $0x278] sm:$0xff]
  %v3848 = vld [vmem:[%s15 + $0x280] sm:$0xff]
  %v3849 = vld [vmem:[%s15 + $0x288] sm:$0xff]
  %v3850 = vld [vmem:[%s15 + $0x290] sm:$0xff]
  %v3851 = vld [vmem:[%s15 + $0x298] sm:$0xff]
  %v3852 = vld [vmem:[%s15 + $0x2a0] sm:$0xff]
  %v3853 = vld [vmem:[%s15 + $0x2a8] sm:$0xff]
  %v3854 = vld [vmem:[%s15 + $0x2b0] sm:$0xff]
  %v3855 = vld [vmem:[%s15 + $0x2b8] sm:$0xff]
  %v3856 = vld [vmem:[%s15 + $0x2c0] sm:$0xff]
  %v3857 = vld [vmem:[%s15 + $0x2c8] sm:$0xff]
  %v3858 = vld [vmem:[%s15 + $0x2d0] sm:$0xff]
  %v3859 = vld [vmem:[%s15 + $0x2d8] sm:$0xff]
  %v3860 = vld [vmem:[%s15 + $0x2e0] sm:$0xff]
  %v3861 = vld [vmem:[%s15 + $0x2e8] sm:$0xff]
  %v3862 = vld [vmem:[%s15 + $0x2f0] sm:$0xff]
  %v3863 = vld [vmem:[%s15 + $0x2f8] sm:$0xff]
  %v3864 = vld [vmem:[%s15 + $0x300] sm:$0xff]
  %v3865 = vld [vmem:[%s15 + $0x308] sm:$0xff]
  %v3866 = vld [vmem:[%s15 + $0x310] sm:$0xff]
  %v3867 = vld [vmem:[%s15 + $0x318] sm:$0xff]
  %v3868 = vld [vmem:[%s15 + $0x320] sm:$0xff]
  %v3869 = vld [vmem:[%s15 + $0x328] sm:$0xff]
  %v3870 = vld [vmem:[%s15 + $0x330] sm:$0xff]
  %v3871 = vld [vmem:[%s15 + $0x338] sm:$0xff]
  %v3872 = vld [vmem:[%s15 + $0x340] sm:$0xff]
  %v3873 = vld [vmem:[%s15 + $0x348] sm:$0xff]
  %v3874 = vld [vmem:[%s15 + $0x350] sm:$0xff]
  %v3875 = vld [vmem:[%s15 + $0x358] sm:$0xff]
  %v3876 = vld [vmem:[%s15 + $0x360] sm:$0xff]
  %v3877 = vld [vmem:[%s15 + $0x368] sm:$0xff]
  %v3878 = vld [vmem:[%s15 + $0x370] sm:$0xff]
  %v3879 = vld [vmem:[%s15 + $0x378] sm:$0xff]
  %v3880 = vld [vmem:[%s15 + $0x380] sm:$0xff]
  %v3881 = vld [vmem:[%s15 + $0x388] sm:$0xff]
  %v3882 = vld [vmem:[%s15 + $0x390] sm:$0xff]
  %v3883 = vld [vmem:[%s15 + $0x398] sm:$0xff]
  %v3884 = vld [vmem:[%s15 + $0x3a0] sm:$0xff]
  %v3885 = vld [vmem:[%s15 + $0x3a8] sm:$0xff]
  %v3886 = vld [vmem:[%s15 + $0x3b0] sm:$0xff]
  %v3887 = vld [vmem:[%s15 + $0x3b8] sm:$0xff]
  %v3888 = vld [vmem:[%s15 + $0x3c0] sm:$0xff]
  %v3889 = vld [vmem:[%s15 + $0x3c8] sm:$0xff]
  %v3890 = vld [vmem:[%s15 + $0x3d0] sm:$0xff]
  %v3891 = vld [vmem:[%s15 + $0x3d8] sm:$0xff]
  %v3892 = vld [vmem:[%s15 + $0x3e0] sm:$0xff]
  %v3893 = vld [vmem:[%s15 + $0x3e8] sm:$0xff]
  %v3894 = vld [vmem:[%s15 + $0x3f0] sm:$0xff]
  %v3895 = vld [vmem:[%s15 + $0x3f8] sm:$0xff]
  %v3896 = vld [vmem:[%s16] sm:$0x3]
  %v3898 = vlaneseq
  %v3899 = vshrl.u32 %v3898, 7
  %v3900 = vsub.s32 0, %v3899
  %v3901 = vrot.slane %v3896, %v3900
  %v3902 = vlaneseq
  %v3903 = vshrl.u32 %v3902, 7
  %v3904 = vsub.s32 1, %v3903
  %v3905 = vrot.slane %v3896, %v3904
  %v4036 = vunpack.c.l.b16 %v3768
  %v4037 = vunpack.c.h.b16 %v3768
  %v4038 = vunpack.c.l.b16 %v3769
  %v4039 = vunpack.c.h.b16 %v3769
  %v4040 = vunpack.c.l.b16 %v3770
  %v4041 = vunpack.c.h.b16 %v3770
  %v4042 = vunpack.c.l.b16 %v3771
  %v4043 = vunpack.c.h.b16 %v3771
  %v4044 = vunpack.c.l.b16 %v3772
  %v4045 = vunpack.c.h.b16 %v3772
  %v4046 = vunpack.c.l.b16 %v3773
  %v4047 = vunpack.c.h.b16 %v3773
  %v4048 = vunpack.c.l.b16 %v3774
  %v4049 = vunpack.c.h.b16 %v3774
  %v4050 = vunpack.c.l.b16 %v3775
  %v4051 = vunpack.c.h.b16 %v3775
  %v4052 = vunpack.c.l.b16 %v3776
  %v4053 = vunpack.c.h.b16 %v3776
  %v4054 = vunpack.c.l.b16 %v3777
  %v4055 = vunpack.c.h.b16 %v3777
  %v4056 = vunpack.c.l.b16 %v3778
  %v4057 = vunpack.c.h.b16 %v3778
  %v4058 = vunpack.c.l.b16 %v3779
  %v4059 = vunpack.c.h.b16 %v3779
  %v4060 = vunpack.c.l.b16 %v3780
  %v4061 = vunpack.c.h.b16 %v3780
  %v4062 = vunpack.c.l.b16 %v3781
  %v4063 = vunpack.c.h.b16 %v3781
  %v4064 = vunpack.c.l.b16 %v3782
  %v4065 = vunpack.c.h.b16 %v3782
  %v4066 = vunpack.c.l.b16 %v3783
  %v4067 = vunpack.c.h.b16 %v3783
  %v4068 = vunpack.c.l.b16 %v3784
  %v4069 = vunpack.c.h.b16 %v3784
  %v4070 = vunpack.c.l.b16 %v3785
  %v4071 = vunpack.c.h.b16 %v3785
  %v4072 = vunpack.c.l.b16 %v3786
  %v4073 = vunpack.c.h.b16 %v3786
  %v4074 = vunpack.c.l.b16 %v3787
  %v4075 = vunpack.c.h.b16 %v3787
  %v4076 = vunpack.c.l.b16 %v3788
  %v4077 = vunpack.c.h.b16 %v3788
  %v4078 = vunpack.c.l.b16 %v3789
  %v4079 = vunpack.c.h.b16 %v3789
  %v4080 = vunpack.c.l.b16 %v3790
  %v4081 = vunpack.c.h.b16 %v3790
  %v4082 = vunpack.c.l.b16 %v3791
  %v4083 = vunpack.c.h.b16 %v3791
  %v4084 = vunpack.c.l.b16 %v3792
  %v4085 = vunpack.c.h.b16 %v3792
  %v4086 = vunpack.c.l.b16 %v3793
  %v4087 = vunpack.c.h.b16 %v3793
  %v4088 = vunpack.c.l.b16 %v3794
  %v4089 = vunpack.c.h.b16 %v3794
  %v4090 = vunpack.c.l.b16 %v3795
  %v4091 = vunpack.c.h.b16 %v3795
  %v4092 = vunpack.c.l.b16 %v3796
  %v4093 = vunpack.c.h.b16 %v3796
  %v4094 = vunpack.c.l.b16 %v3797
  %v4095 = vunpack.c.h.b16 %v3797
  %v4096 = vunpack.c.l.b16 %v3798
  %v4097 = vunpack.c.h.b16 %v3798
  %v4098 = vunpack.c.l.b16 %v3799
  %v4099 = vunpack.c.h.b16 %v3799
  %v4100 = vunpack.c.l.b16 %v3800
  %v4101 = vunpack.c.h.b16 %v3800
  %v4102 = vunpack.c.l.b16 %v3801
  %v4103 = vunpack.c.h.b16 %v3801
  %v4104 = vunpack.c.l.b16 %v3802
  %v4105 = vunpack.c.h.b16 %v3802
  %v4106 = vunpack.c.l.b16 %v3803
  %v4107 = vunpack.c.h.b16 %v3803
  %v4108 = vunpack.c.l.b16 %v3804
  %v4109 = vunpack.c.h.b16 %v3804
  %v4110 = vunpack.c.l.b16 %v3805
  %v4111 = vunpack.c.h.b16 %v3805
  %v4112 = vunpack.c.l.b16 %v3806
  %v4113 = vunpack.c.h.b16 %v3806
  %v4114 = vunpack.c.l.b16 %v3807
  %v4115 = vunpack.c.h.b16 %v3807
  %v4116 = vunpack.c.l.b16 %v3808
  %v4117 = vunpack.c.h.b16 %v3808
  %v4118 = vunpack.c.l.b16 %v3809
  %v4119 = vunpack.c.h.b16 %v3809
  %v4120 = vunpack.c.l.b16 %v3810
  %v4121 = vunpack.c.h.b16 %v3810
  %v4122 = vunpack.c.l.b16 %v3811
  %v4123 = vunpack.c.h.b16 %v3811
  %v4124 = vunpack.c.l.b16 %v3812
  %v4125 = vunpack.c.h.b16 %v3812
  %v4126 = vunpack.c.l.b16 %v3813
  %v4127 = vunpack.c.h.b16 %v3813
  %v4128 = vunpack.c.l.b16 %v3814
  %v4129 = vunpack.c.h.b16 %v3814
  %v4130 = vunpack.c.l.b16 %v3815
  %v4131 = vunpack.c.h.b16 %v3815
  %v4132 = vunpack.c.l.b16 %v3816
  %v4133 = vunpack.c.h.b16 %v3816
  %v4134 = vunpack.c.l.b16 %v3817
  %v4135 = vunpack.c.h.b16 %v3817
  %v4136 = vunpack.c.l.b16 %v3818
  %v4137 = vunpack.c.h.b16 %v3818
  %v4138 = vunpack.c.l.b16 %v3819
  %v4139 = vunpack.c.h.b16 %v3819
  %v4140 = vunpack.c.l.b16 %v3820
  %v4141 = vunpack.c.h.b16 %v3820
  %v4142 = vunpack.c.l.b16 %v3821
  %v4143 = vunpack.c.h.b16 %v3821
  %v4144 = vunpack.c.l.b16 %v3822
  %v4145 = vunpack.c.h.b16 %v3822
  %v4146 = vunpack.c.l.b16 %v3823
  %v4147 = vunpack.c.h.b16 %v3823
  %v4148 = vunpack.c.l.b16 %v3824
  %v4149 = vunpack.c.h.b16 %v3824
  %v4150 = vunpack.c.l.b16 %v3825
  %v4151 = vunpack.c.h.b16 %v3825
  %v4152 = vunpack.c.l.b16 %v3826
  %v4153 = vunpack.c.h.b16 %v3826
  %v4154 = vunpack.c.l.b16 %v3827
  %v4155 = vunpack.c.h.b16 %v3827
  %v4156 = vunpack.c.l.b16 %v3828
  %v4157 = vunpack.c.h.b16 %v3828
  %v4158 = vunpack.c.l.b16 %v3829
  %v4159 = vunpack.c.h.b16 %v3829
  %v4160 = vunpack.c.l.b16 %v3830
  %v4161 = vunpack.c.h.b16 %v3830
  %v4162 = vunpack.c.l.b16 %v3831
  %v4163 = vunpack.c.h.b16 %v3831
  %v4164 = vunpack.c.l.b16 %v3832
  %v4165 = vunpack.c.h.b16 %v3832
  %v4166 = vunpack.c.l.b16 %v3833
  %v4167 = vunpack.c.h.b16 %v3833
  %v4168 = vunpack.c.l.b16 %v3834
  %v4169 = vunpack.c.h.b16 %v3834
  %v4170 = vunpack.c.l.b16 %v3835
  %v4171 = vunpack.c.h.b16 %v3835
  %v4172 = vunpack.c.l.b16 %v3836
  %v4173 = vunpack.c.h.b16 %v3836
  %v4174 = vunpack.c.l.b16 %v3837
  %v4175 = vunpack.c.h.b16 %v3837
  %v4176 = vunpack.c.l.b16 %v3838
  %v4177 = vunpack.c.h.b16 %v3838
  %v4178 = vunpack.c.l.b16 %v3839
  %v4179 = vunpack.c.h.b16 %v3839
  %v4180 = vunpack.c.l.b16 %v3840
  %v4181 = vunpack.c.h.b16 %v3840
  %v4182 = vunpack.c.l.b16 %v3841
  %v4183 = vunpack.c.h.b16 %v3841
  %v4184 = vunpack.c.l.b16 %v3842
  %v4185 = vunpack.c.h.b16 %v3842
  %v4186 = vunpack.c.l.b16 %v3843
  %v4187 = vunpack.c.h.b16 %v3843
  %v4188 = vunpack.c.l.b16 %v3844
  %v4189 = vunpack.c.h.b16 %v3844
  %v4190 = vunpack.c.l.b16 %v3845
  %v4191 = vunpack.c.h.b16 %v3845
  %v4192 = vunpack.c.l.b16 %v3846
  %v4193 = vunpack.c.h.b16 %v3846
  %v4194 = vunpack.c.l.b16 %v3847
  %v4195 = vunpack.c.h.b16 %v3847
  %v4196 = vunpack.c.l.b16 %v3848
  %v4197 = vunpack.c.h.b16 %v3848
  %v4198 = vunpack.c.l.b16 %v3849
  %v4199 = vunpack.c.h.b16 %v3849
  %v4200 = vunpack.c.l.b16 %v3850
  %v4201 = vunpack.c.h.b16 %v3850
  %v4202 = vunpack.c.l.b16 %v3851
  %v4203 = vunpack.c.h.b16 %v3851
  %v4204 = vunpack.c.l.b16 %v3852
  %v4205 = vunpack.c.h.b16 %v3852
  %v4206 = vunpack.c.l.b16 %v3853
  %v4207 = vunpack.c.h.b16 %v3853
  %v4208 = vunpack.c.l.b16 %v3854
  %v4209 = vunpack.c.h.b16 %v3854
  %v4210 = vunpack.c.l.b16 %v3855
  %v4211 = vunpack.c.h.b16 %v3855
  %v4212 = vunpack.c.l.b16 %v3856
  %v4213 = vunpack.c.h.b16 %v3856
  %v4214 = vunpack.c.l.b16 %v3857
  %v4215 = vunpack.c.h.b16 %v3857
  %v4216 = vunpack.c.l.b16 %v3858
  %v4217 = vunpack.c.h.b16 %v3858
  %v4218 = vunpack.c.l.b16 %v3859
  %v4219 = vunpack.c.h.b16 %v3859
  %v4220 = vunpack.c.l.b16 %v3860
  %v4221 = vunpack.c.h.b16 %v3860
  %v4222 = vunpack.c.l.b16 %v3861
  %v4223 = vunpack.c.h.b16 %v3861
  %v4224 = vunpack.c.l.b16 %v3862
  %v4225 = vunpack.c.h.b16 %v3862
  %v4226 = vunpack.c.l.b16 %v3863
  %v4227 = vunpack.c.h.b16 %v3863
  %v4228 = vunpack.c.l.b16 %v3864
  %v4229 = vunpack.c.h.b16 %v3864
  %v4230 = vunpack.c.l.b16 %v3865
  %v4231 = vunpack.c.h.b16 %v3865
  %v4232 = vunpack.c.l.b16 %v3866
  %v4233 = vunpack.c.h.b16 %v3866
  %v4234 = vunpack.c.l.b16 %v3867
  %v4235 = vunpack.c.h.b16 %v3867
  %v4236 = vunpack.c.l.b16 %v3868
  %v4237 = vunpack.c.h.b16 %v3868
  %v4238 = vunpack.c.l.b16 %v3869
  %v4239 = vunpack.c.h.b16 %v3869
  %v4240 = vunpack.c.l.b16 %v3870
  %v4241 = vunpack.c.h.b16 %v3870
  %v4242 = vunpack.c.l.b16 %v3871
  %v4243 = vunpack.c.h.b16 %v3871
  %v4244 = vunpack.c.l.b16 %v3872
  %v4245 = vunpack.c.h.b16 %v3872
  %v4246 = vunpack.c.l.b16 %v3873
  %v4247 = vunpack.c.h.b16 %v3873
  %v4248 = vunpack.c.l.b16 %v3874
  %v4249 = vunpack.c.h.b16 %v3874
  %v4250 = vunpack.c.l.b16 %v3875
  %v4251 = vunpack.c.h.b16 %v3875
  %v4252 = vunpack.c.l.b16 %v3876
  %v4253 = vunpack.c.h.b16 %v3876
  %v4254 = vunpack.c.l.b16 %v3877
  %v4255 = vunpack.c.h.b16 %v3877
  %v4256 = vunpack.c.l.b16 %v3878
  %v4257 = vunpack.c.h.b16 %v3878
  %v4258 = vunpack.c.l.b16 %v3879
  %v4259 = vunpack.c.h.b16 %v3879
  %v4260 = vunpack.c.l.b16 %v3880
  %v4261 = vunpack.c.h.b16 %v3880
  %v4262 = vunpack.c.l.b16 %v3881
  %v4263 = vunpack.c.h.b16 %v3881
  %v4264 = vunpack.c.l.b16 %v3882
  %v4265 = vunpack.c.h.b16 %v3882
  %v4266 = vunpack.c.l.b16 %v3883
  %v4267 = vunpack.c.h.b16 %v3883
  %v4268 = vunpack.c.l.b16 %v3884
  %v4269 = vunpack.c.h.b16 %v3884
  %v4270 = vunpack.c.l.b16 %v3885
  %v4271 = vunpack.c.h.b16 %v3885
  %v4272 = vunpack.c.l.b16 %v3886
  %v4273 = vunpack.c.h.b16 %v3886
  %v4274 = vunpack.c.l.b16 %v3887
  %v4275 = vunpack.c.h.b16 %v3887
  %v4276 = vunpack.c.l.b16 %v3888
  %v4277 = vunpack.c.h.b16 %v3888
  %v4278 = vunpack.c.l.b16 %v3889
  %v4279 = vunpack.c.h.b16 %v3889
  %v4280 = vunpack.c.l.b16 %v3890
  %v4281 = vunpack.c.h.b16 %v3890
  %v4282 = vunpack.c.l.b16 %v3891
  %v4283 = vunpack.c.h.b16 %v3891
  %v4284 = vunpack.c.l.b16 %v3892
  %v4285 = vunpack.c.h.b16 %v3892
  %v4286 = vunpack.c.l.b16 %v3893
  %v4287 = vunpack.c.h.b16 %v3893
  %v4288 = vunpack.c.l.b16 %v3894
  %v4289 = vunpack.c.h.b16 %v3894
  %v4290 = vunpack.c.l.b16 %v3895
  %v4291 = vunpack.c.h.b16 %v3895
  %v4292 = vpack.c.b16 %v4038, %v4036
  %v4293 = vpack.c.b16 %v4039, %v4037
  %v4294 = vpack.c.b16 %v4042, %v4040
  %v4295 = vpack.c.b16 %v4043, %v4041
  %v4296 = vpack.c.b16 %v4046, %v4044
  %v4297 = vpack.c.b16 %v4047, %v4045
  %v4298 = vpack.c.b16 %v4050, %v4048
  %v4299 = vpack.c.b16 %v4051, %v4049
  %v4300 = vpack.c.b16 %v4054, %v4052
  %v4301 = vpack.c.b16 %v4055, %v4053
  %v4302 = vpack.c.b16 %v4058, %v4056
  %v4303 = vpack.c.b16 %v4059, %v4057
  %v4304 = vpack.c.b16 %v4062, %v4060
  %v4305 = vpack.c.b16 %v4063, %v4061
  %v4306 = vpack.c.b16 %v4066, %v4064
  %v4307 = vpack.c.b16 %v4067, %v4065
  %v4308 = vpack.c.b16 %v4070, %v4068
  %v4309 = vpack.c.b16 %v4071, %v4069
  %v4310 = vpack.c.b16 %v4074, %v4072
  %v4311 = vpack.c.b16 %v4075, %v4073
  %v4312 = vpack.c.b16 %v4078, %v4076
  %v4313 = vpack.c.b16 %v4079, %v4077
  %v4314 = vpack.c.b16 %v4082, %v4080
  %v4315 = vpack.c.b16 %v4083, %v4081
  %v4316 = vpack.c.b16 %v4086, %v4084
  %v4317 = vpack.c.b16 %v4087, %v4085
  %v4318 = vpack.c.b16 %v4090, %v4088
  %v4319 = vpack.c.b16 %v4091, %v4089
  %v4320 = vpack.c.b16 %v4094, %v4092
  %v4321 = vpack.c.b16 %v4095, %v4093
  %v4322 = vpack.c.b16 %v4098, %v4096
  %v4323 = vpack.c.b16 %v4099, %v4097
  %v4324 = vpack.c.b16 %v4102, %v4100
  %v4325 = vpack.c.b16 %v4103, %v4101
  %v4326 = vpack.c.b16 %v4106, %v4104
  %v4327 = vpack.c.b16 %v4107, %v4105
  %v4328 = vpack.c.b16 %v4110, %v4108
  %v4329 = vpack.c.b16 %v4111, %v4109
  %v4330 = vpack.c.b16 %v4114, %v4112
  %v4331 = vpack.c.b16 %v4115, %v4113
  %v4332 = vpack.c.b16 %v4118, %v4116
  %v4333 = vpack.c.b16 %v4119, %v4117
  %v4334 = vpack.c.b16 %v4122, %v4120
  %v4335 = vpack.c.b16 %v4123, %v4121
  %v4336 = vpack.c.b16 %v4126, %v4124
  %v4337 = vpack.c.b16 %v4127, %v4125
  %v4338 = vpack.c.b16 %v4130, %v4128
  %v4339 = vpack.c.b16 %v4131, %v4129
  %v4340 = vpack.c.b16 %v4134, %v4132
  %v4341 = vpack.c.b16 %v4135, %v4133
  %v4342 = vpack.c.b16 %v4138, %v4136
  %v4343 = vpack.c.b16 %v4139, %v4137
  %v4344 = vpack.c.b16 %v4142, %v4140
  %v4345 = vpack.c.b16 %v4143, %v4141
  %v4346 = vpack.c.b16 %v4146, %v4144
  %v4347 = vpack.c.b16 %v4147, %v4145
  %v4348 = vpack.c.b16 %v4150, %v4148
  %v4349 = vpack.c.b16 %v4151, %v4149
  %v4350 = vpack.c.b16 %v4154, %v4152
  %v4351 = vpack.c.b16 %v4155, %v4153
  %v4352 = vpack.c.b16 %v4158, %v4156
  %v4353 = vpack.c.b16 %v4159, %v4157
  %v4354 = vpack.c.b16 %v4162, %v4160
  %v4355 = vpack.c.b16 %v4163, %v4161
  %v4356 = vpack.c.b16 %v4166, %v4164
  %v4357 = vpack.c.b16 %v4167, %v4165
  %v4358 = vpack.c.b16 %v4170, %v4168
  %v4359 = vpack.c.b16 %v4171, %v4169
  %v4360 = vpack.c.b16 %v4174, %v4172
  %v4361 = vpack.c.b16 %v4175, %v4173
  %v4362 = vpack.c.b16 %v4178, %v4176
  %v4363 = vpack.c.b16 %v4179, %v4177
  %v4364 = vpack.c.b16 %v4182, %v4180
  %v4365 = vpack.c.b16 %v4183, %v4181
  %v4366 = vpack.c.b16 %v4186, %v4184
  %v4367 = vpack.c.b16 %v4187, %v4185
  %v4368 = vpack.c.b16 %v4190, %v4188
  %v4369 = vpack.c.b16 %v4191, %v4189
  %v4370 = vpack.c.b16 %v4194, %v4192
  %v4371 = vpack.c.b16 %v4195, %v4193
  %v4372 = vpack.c.b16 %v4198, %v4196
  %v4373 = vpack.c.b16 %v4199, %v4197
  %v4374 = vpack.c.b16 %v4202, %v4200
  %v4375 = vpack.c.b16 %v4203, %v4201
  %v4376 = vpack.c.b16 %v4206, %v4204
  %v4377 = vpack.c.b16 %v4207, %v4205
  %v4378 = vpack.c.b16 %v4210, %v4208
  %v4379 = vpack.c.b16 %v4211, %v4209
  %v4380 = vpack.c.b16 %v4214, %v4212
  %v4381 = vpack.c.b16 %v4215, %v4213
  %v4382 = vpack.c.b16 %v4218, %v4216
  %v4383 = vpack.c.b16 %v4219, %v4217
  %v4384 = vpack.c.b16 %v4222, %v4220
  %v4385 = vpack.c.b16 %v4223, %v4221
  %v4386 = vpack.c.b16 %v4226, %v4224
  %v4387 = vpack.c.b16 %v4227, %v4225
  %v4388 = vpack.c.b16 %v4230, %v4228
  %v4389 = vpack.c.b16 %v4231, %v4229
  %v4390 = vpack.c.b16 %v4234, %v4232
  %v4391 = vpack.c.b16 %v4235, %v4233
  %v4392 = vpack.c.b16 %v4238, %v4236
  %v4393 = vpack.c.b16 %v4239, %v4237
  %v4394 = vpack.c.b16 %v4242, %v4240
  %v4395 = vpack.c.b16 %v4243, %v4241
  %v4396 = vpack.c.b16 %v4246, %v4244
  %v4397 = vpack.c.b16 %v4247, %v4245
  %v4398 = vpack.c.b16 %v4250, %v4248
  %v4399 = vpack.c.b16 %v4251, %v4249
  %v4400 = vpack.c.b16 %v4254, %v4252
  %v4401 = vpack.c.b16 %v4255, %v4253
  %v4402 = vpack.c.b16 %v4258, %v4256
  %v4403 = vpack.c.b16 %v4259, %v4257
  %v4404 = vpack.c.b16 %v4262, %v4260
  %v4405 = vpack.c.b16 %v4263, %v4261
  %v4406 = vpack.c.b16 %v4266, %v4264
  %v4407 = vpack.c.b16 %v4267, %v4265
  %v4408 = vpack.c.b16 %v4270, %v4268
  %v4409 = vpack.c.b16 %v4271, %v4269
  %v4410 = vpack.c.b16 %v4274, %v4272
  %v4411 = vpack.c.b16 %v4275, %v4273
  %v4412 = vpack.c.b16 %v4278, %v4276
  %v4413 = vpack.c.b16 %v4279, %v4277
  %v4414 = vpack.c.b16 %v4282, %v4280
  %v4415 = vpack.c.b16 %v4283, %v4281
  %v4416 = vpack.c.b16 %v4286, %v4284
  %v4417 = vpack.c.b16 %v4287, %v4285
  %v4418 = vpack.c.b16 %v4290, %v4288
  %v4419 = vpack.c.b16 %v4291, %v4289
  %4548 = vmatprep.subr.bf16.mxu0 %v4307
  %4549 = vmatpush1.bf16.msra.mxu0 %v4306
  %4550 = vmatprep.subr.bf16.mxu0 %v4305
  %4551 = vmatpush1.bf16.msra.mxu0 %v4304
  %4552 = vmatprep.subr.bf16.mxu0 %v4303
  %4553 = vmatpush1.bf16.msra.mxu0 %v4302
  %4554 = vmatprep.subr.bf16.mxu0 %v4301
  %4555 = vmatpush1.bf16.msra.mxu0 %v4300
  %4556 = vmatprep.subr.bf16.mxu0 %v4299
  %4557 = vmatpush1.bf16.msra.mxu0 %v4298
  %4558 = vmatprep.subr.bf16.mxu0 %v4297
  %4559 = vmatpush1.bf16.msra.mxu0 %v4296
  %4560 = vmatprep.subr.bf16.mxu0 %v4295
  %4561 = vmatpush1.bf16.msra.mxu0 %v4294
  %4562 = vmatprep.subr.bf16.mxu0 %v4293
  %4563 = vmatpush1.bf16.msra.mxu0 %v4292
  %4564 = vmatprep.subr.bf16.mxu0 %v4323
  %4565 = vmatpush2.bf16.msra.mxu0 %v4322
  %4566 = vmatprep.subr.bf16.mxu0 %v4321
  %4567 = vmatpush2.bf16.msra.mxu0 %v4320
  %4568 = vmatprep.subr.bf16.mxu0 %v4319
  %4569 = vmatpush2.bf16.msra.mxu0 %v4318
  %4570 = vmatprep.subr.bf16.mxu0 %v4317
  %4571 = vmatpush2.bf16.msra.mxu0 %v4316
  %4572 = vmatprep.subr.bf16.mxu0 %v4315
  %4573 = vmatpush2.bf16.msra.mxu0 %v4314
  %4574 = vmatprep.subr.bf16.mxu0 %v4313
  %4575 = vmatpush2.bf16.msra.mxu0 %v4312
  %4576 = vmatprep.subr.bf16.mxu0 %v4311
  %4577 = vmatpush2.bf16.msra.mxu0 %v4310
  %4578 = vmatprep.subr.bf16.mxu0 %v4309
  %4579 = vmatpush2.bf16.msra.mxu0 %v4308
  %4580 = vmatprep.mubr.bf16.mxu0 %v3753
  %4581 = vmatmul.mubr.bf16.gmra.mxu0 %v3752
  %v4582 = vpop.f32.mrf.mxu0
  %v4583 = vadd.f32 %v3901, %v4582
  %v4584 = vpop.f32.mrf.mxu0
  %v4585 = vadd.f32 %v3905, %v4584
  %v4586 = vpop.f32.mrf.mxu0
  %v4587 = vadd.f32 %v3901, %v4586
  %v4588 = vpop.f32.mrf.mxu0
  %v4589 = vadd.f32 %v3905, %v4588
  %4590 = vmatprep.mubr.bf16.mxu0 %v3761
  %4591 = vmatmul.mubr.bf16.gmra.mxu0 %v3760
  %v4592 = vpop.f32.mrf.mxu0
  %v4593 = vadd.f32 %v3901, %v4592
  %v4594 = vpop.f32.mrf.mxu0
  %v4595 = vadd.f32 %v3905, %v4594
  %v4596 = vpop.f32.mrf.mxu0
  %v4597 = vadd.f32 %v3901, %v4596
  %v4598 = vpop.f32.mrf.mxu0
  %v4599 = vadd.f32 %v3905, %v4598
  %4600 = vdwg.mxu0
  %4601 = vmatprep.subr.bf16.mxu0 %v4339
  %4602 = vmatpush1.bf16.msra.mxu0 %v4338
  %4603 = vmatprep.subr.bf16.mxu0 %v4337
  %4604 = vmatpush1.bf16.msra.mxu0 %v4336
  %4605 = vmatprep.subr.bf16.mxu0 %v4335
  %4606 = vmatpush1.bf16.msra.mxu0 %v4334
  %4607 = vmatprep.subr.bf16.mxu0 %v4333
  %4608 = vmatpush1.bf16.msra.mxu0 %v4332
  %4609 = vmatprep.subr.bf16.mxu0 %v4331
  %4610 = vmatpush1.bf16.msra.mxu0 %v4330
  %4611 = vmatprep.subr.bf16.mxu0 %v4329
  %4612 = vmatpush1.bf16.msra.mxu0 %v4328
  %4613 = vmatprep.subr.bf16.mxu0 %v4327
  %4614 = vmatpush1.bf16.msra.mxu0 %v4326
  %4615 = vmatprep.subr.bf16.mxu0 %v4325
  %4616 = vmatpush1.bf16.msra.mxu0 %v4324
  %4617 = vmatprep.subr.bf16.mxu0 %v4355
  %4618 = vmatpush2.bf16.msra.mxu0 %v4354
  %4619 = vmatprep.subr.bf16.mxu0 %v4353
  %4620 = vmatpush2.bf16.msra.mxu0 %v4352
  %4621 = vmatprep.subr.bf16.mxu0 %v4351
  %4622 = vmatpush2.bf16.msra.mxu0 %v4350
  %4623 = vmatprep.subr.bf16.mxu0 %v4349
  %4624 = vmatpush2.bf16.msra.mxu0 %v4348
  %4625 = vmatprep.subr.bf16.mxu0 %v4347
  %4626 = vmatpush2.bf16.msra.mxu0 %v4346
  %4627 = vmatprep.subr.bf16.mxu0 %v4345
  %4628 = vmatpush2.bf16.msra.mxu0 %v4344
  %4629 = vmatprep.subr.bf16.mxu0 %v4343
  %4630 = vmatpush2.bf16.msra.mxu0 %v4342
  %4631 = vmatprep.subr.bf16.mxu0 %v4341
  %4632 = vmatpush2.bf16.msra.mxu0 %v4340
  %4633 = vmatprep.mubr.bf16.mxu0 %v3755
  %4634 = vmatmul.mubr.bf16.gmra.mxu0 %v3754
  %v4635 = vpop.f32.mrf.mxu0
  %v4636 = vadd.f32 %v4583, %v4635
  %v4637 = vpop.f32.mrf.mxu0
  %v4638 = vadd.f32 %v4585, %v4637
  %v4639 = vpop.f32.mrf.mxu0
  %v4640 = vadd.f32 %v4587, %v4639
  %v4641 = vpop.f32.mrf.mxu0
  %v4642 = vadd.f32 %v4589, %v4641
  %4643 = vmatprep.mubr.bf16.mxu0 %v3763
  %4644 = vmatmul.mubr.bf16.gmra.mxu0 %v3762
  %v4645 = vpop.f32.mrf.mxu0
  %v4646 = vadd.f32 %v4593, %v4645
  %v4647 = vpop.f32.mrf.mxu0
  %v4648 = vadd.f32 %v4595, %v4647
  %v4649 = vpop.f32.mrf.mxu0
  %v4650 = vadd.f32 %v4597, %v4649
  %v4651 = vpop.f32.mrf.mxu0
  %v4652 = vadd.f32 %v4599, %v4651
  %4653 = vdwg.mxu0
  %4654 = vmatprep.subr.bf16.mxu0 %v4371
  %4655 = vmatpush1.bf16.msra.mxu0 %v4370
  %4656 = vmatprep.subr.bf16.mxu0 %v4369
  %4657 = vmatpush1.bf16.msra.mxu0 %v4368
  %4658 = vmatprep.subr.bf16.mxu0 %v4367
  %4659 = vmatpush1.bf16.msra.mxu0 %v4366
  %4660 = vmatprep.subr.bf16.mxu0 %v4365
  %4661 = vmatpush1.bf16.msra.mxu0 %v4364
  %4662 = vmatprep.subr.bf16.mxu0 %v4363
  %4663 = vmatpush1.bf16.msra.mxu0 %v4362
  %4664 = vmatprep.subr.bf16.mxu0 %v4361
  %4665 = vmatpush1.bf16.msra.mxu0 %v4360
  %4666 = vmatprep.subr.bf16.mxu0 %v4359
  %4667 = vmatpush1.bf16.msra.mxu0 %v4358
  %4668 = vmatprep.subr.bf16.mxu0 %v4357
  %4669 = vmatpush1.bf16.msra.mxu0 %v4356
  %4670 = vmatprep.subr.bf16.mxu0 %v4387
  %4671 = vmatpush2.bf16.msra.mxu0 %v4386
  %4672 = vmatprep.subr.bf16.mxu0 %v4385
  %4673 = vmatpush2.bf16.msra.mxu0 %v4384
  %4674 = vmatprep.subr.bf16.mxu0 %v4383
  %4675 = vmatpush2.bf16.msra.mxu0 %v4382
  %4676 = vmatprep.subr.bf16.mxu0 %v4381
  %4677 = vmatpush2.bf16.msra.mxu0 %v4380
  %4678 = vmatprep.subr.bf16.mxu0 %v4379
  %4679 = vmatpush2.bf16.msra.mxu0 %v4378
  %4680 = vmatprep.subr.bf16.mxu0 %v4377
  %4681 = vmatpush2.bf16.msra.mxu0 %v4376
  %4682 = vmatprep.subr.bf16.mxu0 %v4375
  %4683 = vmatpush2.bf16.msra.mxu0 %v4374
  %4684 = vmatprep.subr.bf16.mxu0 %v4373
  %4685 = vmatpush2.bf16.msra.mxu0 %v4372
  %4686 = vmatprep.mubr.bf16.mxu0 %v3757
  %4687 = vmatmul.mubr.bf16.gmra.mxu0 %v3756
  %v4688 = vpop.f32.mrf.mxu0
  %v4689 = vadd.f32 %v4636, %v4688
  %v4690 = vpop.f32.mrf.mxu0
  %v4691 = vadd.f32 %v4638, %v4690
  %v4692 = vpop.f32.mrf.mxu0
  %v4693 = vadd.f32 %v4640, %v4692
  %v4694 = vpop.f32.mrf.mxu0
  %v4695 = vadd.f32 %v4642, %v4694
  %4696 = vmatprep.mubr.bf16.mxu0 %v3765
  %4697 = vmatmul.mubr.bf16.gmra.mxu0 %v3764
  %v4698 = vpop.f32.mrf.mxu0
  %v4699 = vadd.f32 %v4646, %v4698
  %v4700 = vpop.f32.mrf.mxu0
  %v4701 = vadd.f32 %v4648, %v4700
  %v4702 = vpop.f32.mrf.mxu0
  %v4703 = vadd.f32 %v4650, %v4702
  %v4704 = vpop.f32.mrf.mxu0
  %v4705 = vadd.f32 %v4652, %v4704
  %4706 = vdwg.mxu0
  %4707 = vmatprep.subr.bf16.mxu0 %v4403
  %4708 = vmatpush1.bf16.msra.mxu0 %v4402
  %4709 = vmatprep.subr.bf16.mxu0 %v4401
  %4710 = vmatpush1.bf16.msra.mxu0 %v4400
  %4711 = vmatprep.subr.bf16.mxu0 %v4399
  %4712 = vmatpush1.bf16.msra.mxu0 %v4398
  %4713 = vmatprep.subr.bf16.mxu0 %v4397
  %4714 = vmatpush1.bf16.msra.mxu0 %v4396
  %4715 = vmatprep.subr.bf16.mxu0 %v4395
  %4716 = vmatpush1.bf16.msra.mxu0 %v4394
  %4717 = vmatprep.subr.bf16.mxu0 %v4393
  %4718 = vmatpush1.bf16.msra.mxu0 %v4392
  %4719 = vmatprep.subr.bf16.mxu0 %v4391
  %4720 = vmatpush1.bf16.msra.mxu0 %v4390
  %4721 = vmatprep.subr.bf16.mxu0 %v4389
  %4722 = vmatpush1.bf16.msra.mxu0 %v4388
  %4723 = vmatprep.subr.bf16.mxu0 %v4419
  %4724 = vmatpush2.bf16.msra.mxu0 %v4418
  %4725 = vmatprep.subr.bf16.mxu0 %v4417
  %4726 = vmatpush2.bf16.msra.mxu0 %v4416
  %4727 = vmatprep.subr.bf16.mxu0 %v4415
  %4728 = vmatpush2.bf16.msra.mxu0 %v4414
  %4729 = vmatprep.subr.bf16.mxu0 %v4413
  %4730 = vmatpush2.bf16.msra.mxu0 %v4412
  %4731 = vmatprep.subr.bf16.mxu0 %v4411
  %4732 = vmatpush2.bf16.msra.mxu0 %v4410
  %4733 = vmatprep.subr.bf16.mxu0 %v4409
  %4734 = vmatpush2.bf16.msra.mxu0 %v4408
  %4735 = vmatprep.subr.bf16.mxu0 %v4407
  %4736 = vmatpush2.bf16.msra.mxu0 %v4406
  %4737 = vmatprep.subr.bf16.mxu0 %v4405
  %4738 = vmatpush2.bf16.msra.mxu0 %v4404
  %4739 = vmatprep.mubr.bf16.mxu0 %v3759
  %4740 = vmatmul.mubr.bf16.gmra.mxu0 %v3758
  %v4741 = vpop.f32.mrf.mxu0
  %v4742 = vadd.f32 %v4689, %v4741
  %v4743 = vpop.f32.mrf.mxu0
  %v4744 = vadd.f32 %v4691, %v4743
  %v4745 = vpop.f32.mrf.mxu0
  %v4746 = vadd.f32 %v4693, %v4745
  %v4747 = vpop.f32.mrf.mxu0
  %v4748 = vadd.f32 %v4695, %v4747
  %4749 = vmatprep.mubr.bf16.mxu0 %v3767
  %4750 = vmatmul.mubr.bf16.gmra.mxu0 %v3766
  %v4751 = vpop.f32.mrf.mxu0
  %v4752 = vadd.f32 %v4699, %v4751
  %v4753 = vpop.f32.mrf.mxu0
  %v4754 = vadd.f32 %v4701, %v4753
  %v4755 = vpop.f32.mrf.mxu0
  %v4756 = vadd.f32 %v4703, %v4755
  %v4757 = vpop.f32.mrf.mxu0
  %v4758 = vadd.f32 %v4705, %v4757
  %4759 = vdwg.mxu0
  %v4760 = vtanh.pop %v4742
  %v4761 = vtanh.pop %v4744
  %v4762 = vtanh.pop %v4746
  %v4763 = vtanh.pop %v4748
  %v4764 = vtanh.pop %v4752
  %v4765 = vtanh.pop %v4754
  %v4766 = vtanh.pop %v4756
  %v4767 = vtanh.pop %v4758
  %4768 = vst [vmem:[%s17] sm:$0xff] %v4760
  %4769 = vst [vmem:[%s17 + $0x8] sm:$0xff] %v4761
  %4770 = vst [vmem:[%s17 + $0x10] sm:$0xff] %v4762
  %4771 = vst [vmem:[%s17 + $0x18] sm:$0xff] %v4763
  %4772 = vst [vmem:[%s17 + $0x20] sm:$0xff] %v4764
  %4773 = vst [vmem:[%s17 + $0x28] sm:$0xff] %v4765
  %4774 = vst [vmem:[%s17 + $0x30] sm:$0xff] %v4766
  %4775 = vst [vmem:[%s17 + $0x38] sm:$0xff] %v4767
  // Predicated region
  $region70: #{generator_forward.1} parent=0 // pred_check
    _
  $region71: #{generator_forward.1} parent=0 // pred_check_branch
    %4777 = sbr.rel (0) target = $region73
  $region72: #{generator_forward.1} parent=0 // pred_region
    _
  $region73: #{generator_forward.1} parent=0 // pred_fallthru
    _
  // Predicated region
  $region74: #{generator_forward.1} parent=0 // pred_check
    _
  $region75: #{generator_forward.1} parent=0 // pred_check_branch
    %4779 = sbr.rel (0) target = $region77
  $region76: #{generator_forward.1} parent=0 // pred_region
    _
  $region77: #{generator_forward.1} parent=0 // pred_fallthru
    _

</llo_original>
